<compile_context>
chip_gen: v7x
topology: tpu7x:2x2x1
jax: 0.10.0
libtpu: 0.0.40
codegen_flags: <defaults>
</compile_context>

<pallas_src>
import functools
import math

import jax
import jax.numpy as jnp
from jax.experimental import pallas as pl
from jax.experimental.pallas import tpu as pltpu  # noqa: F401  (kept for parity)

FC_PAD = 128  # lane-dense padded width for the 2-class fc head output

CFG = dict(vocab=100, max_pos=32, type_vocab=2, hidden=32, heads=4,
           layers=2, intermediate=64, labels=2)


# ----------------------------------------------------------------------------
# In-kernel helpers
# ----------------------------------------------------------------------------
def _layernorm(x, g, b, eps):
    mean = jnp.mean(x, axis=-1, keepdims=True)
    var = jnp.mean(jnp.square(x - mean), axis=-1, keepdims=True)
    return (x - mean) * jax.lax.rsqrt(var + eps) * g + b


def _dot(a, b):
    """bf16 MXU matmul with f32 accumulation."""
    return jnp.dot(a.astype(jnp.bfloat16), b.astype(jnp.bfloat16),
                   preferred_element_type=jnp.float32)


# ----------------------------------------------------------------------------
# The single fused whole-model kernel
# ----------------------------------------------------------------------------
def _bert_kernel(ids_ref, mask_ref, wemb_ref, pemb_ref, temb_ref,
                 elng_ref, elnb_ref,
                 wqkv_ref, bqkv_ref, wo_ref, bo_ref, ln1g_ref, ln1b_ref,
                 w1_ref, b1_ref, w2_ref, b2_ref, ln2g_ref, ln2b_ref,
                 poolw_ref, poolb_ref, densew_ref, denseb_ref, fcw_ref, fcb_ref,
                 hid_ref, pool_ref, fc_ref,
                 *, B, S, num_heads, num_layers, eps):
    H = wemb_ref.shape[1]
    dh = H // num_heads
    N = B * S
    vpad = wemb_ref.shape[0]           # vocab padded to a 128-lane multiple

    # ---- embeddings: one-hot MXU gather (f32, exact) + pos + type + LN ----
    ids = ids_ref[...]                                           # (N, 1) int32
    iota = jax.lax.broadcasted_iota(jnp.int32, (N, vpad), 1)
    onehot = (iota == ids).astype(jnp.float32)                   # (N, vpad)
    tok = jnp.dot(onehot, wemb_ref[...],
                  preferred_element_type=jnp.float32)            # (N, H)
    pos = pemb_ref[0:S, :]                                       # (S, H)
    pos_full = jnp.concatenate([pos] * B, axis=0)                # (N, H)
    # TODO(synk): token_type embedding hard-codes segment id 0 (matches the
    # harness's all-zero token_type_ids).
    x = tok + pos_full + temb_ref[...]
    x = _layernorm(x, elng_ref[...], elnb_ref[...], eps)         # (N, H) f32
    # embedding dropout: identity in eval mode

    # additive attention-mask bias shared by all layers/heads: (B, 1, S)
    neg_bias = (1.0 - mask_ref[...]) * -10000.0

    # ---- encoder: static unrolled loop over stacked per-layer weights ----
    for l in range(num_layers):
        # fused QKV projection: (N, H) @ (H, 3H); 1/sqrt(dh) pre-folded into Q.
        qkv = _dot(x, wqkv_ref[l]) + bqkv_ref[l]                 # (N, 3H) f32

        ctx_heads = []
        for h in range(num_heads):
            q = qkv[:, h * dh:(h + 1) * dh].reshape(B, S, dh)
            k = qkv[:, H + h * dh:H + (h + 1) * dh].reshape(B, S, dh)
            v = qkv[:, 2 * H + h * dh:2 * H + (h + 1) * dh].reshape(B, S, dh)
            s = jnp.einsum('bqd,bkd->bqk',
                           q.astype(jnp.bfloat16), k.astype(jnp.bfloat16),
                           preferred_element_type=jnp.float32)   # (B, S, S)
            s = s + neg_bias
            m = jnp.max(s, axis=-1, keepdims=True)
            p = jnp.exp(s - m)
            p = p * pl.reciprocal(jnp.sum(p, axis=-1, keepdims=True),
                                  approx=True)
            # attention-probs dropout: identity in eval mode
            c = jnp.einsum('bqk,bkd->bqd',
                           p.astype(jnp.bfloat16), v.astype(jnp.bfloat16),
                           preferred_element_type=jnp.float32)   # (B, S, dh)
            ctx_heads.append(c.reshape(N, dh))
        ctx = jnp.concatenate(ctx_heads, axis=-1)                # (N, H)

        # output projection + residual + LayerNorm
        attn = _dot(ctx, wo_ref[l]) + bo_ref[l]
        x = _layernorm(attn + x, ln1g_ref[l], ln1b_ref[l], eps)

        # FFN: w1 -> gelu -> w2, residual + LayerNorm
        # TODO(synk): HF BERT default 'gelu' is the exact erf form; tanh
        # approximation used here (erf has no guaranteed Mosaic lowering).
        h1 = jax.nn.gelu(_dot(x, w1_ref[l]) + b1_ref[l], approximate=True)
        ffn = _dot(h1, w2_ref[l]) + b2_ref[l]
        x = _layernorm(ffn + x, ln2g_ref[l], ln2b_ref[l], eps)

    # single HBM store of the final hidden states (accepted masked store)
    hid_ref[...] = x.reshape(B, S, H)

    # ---- pooler + dense/tanh + dropout(eval) + fc head on CLS rows ----
    cls = jnp.concatenate([x[b * S:b * S + 1, :] for b in range(B)], axis=0)
    pooled = jnp.tanh(_dot(cls, poolw_ref[...]) + poolb_ref[...])    # BERT pooler
    pool_ref[...] = pooled
    h2 = jnp.tanh(_dot(pooled, densew_ref[...]) + denseb_ref[...])   # dense+tanh
    # nn.Dropout(0.1): identity in eval mode.
    fc_ref[...] = _dot(h2, fcw_ref[...]) + fcb_ref[...]              # lane-padded fc


# ----------------------------------------------------------------------------
# Synthetic BERT parameters + kernel-layout prep
# ----------------------------------------------------------------------------
def init_params(key, cfg):
    H, I = cfg["hidden"], cfg["intermediate"]

    def nrm(k, shape):
        return 0.02 * jax.random.normal(k, shape, dtype=jnp.float32)

    keys = iter(jax.random.split(key, 64))
    p = {
        "word_emb": nrm(next(keys), (cfg["vocab"], H)),
        "pos_emb": nrm(next(keys), (cfg["max_pos"], H)),
        "type_emb": nrm(next(keys), (cfg["type_vocab"], H)),
        "emb_ln_g": jnp.ones((H,), jnp.float32),
        "emb_ln_b": jnp.zeros((H,), jnp.float32),
        "pool_w": nrm(next(keys), (H, H)),
        "pool_b": jnp.zeros((H,), jnp.float32),
        "dense_w": nrm(next(keys), (H, H)),
        "dense_b": jnp.zeros((H,), jnp.float32),
        "fc_w": nrm(next(keys), (H, cfg["labels"])),
        "fc_b": jnp.zeros((cfg["labels"],), jnp.float32),
        "layers": [],
    }
    for _ in range(cfg["layers"]):
        p["layers"].append({
            "wq": nrm(next(keys), (H, H)), "bq": jnp.zeros((H,), jnp.float32),
            "wk": nrm(next(keys), (H, H)), "bk": jnp.zeros((H,), jnp.float32),
            "wv": nrm(next(keys), (H, H)), "bv": jnp.zeros((H,), jnp.float32),
            "wo": nrm(next(keys), (H, H)), "bo": jnp.zeros((H,), jnp.float32),
            "ln1_g": jnp.ones((H,), jnp.float32), "ln1_b": jnp.zeros((H,), jnp.float32),
            "w1": nrm(next(keys), (H, I)), "b1": jnp.zeros((I,), jnp.float32),
            "w2": nrm(next(keys), (I, H)), "b2": jnp.zeros((H,), jnp.float32),
            "ln2_g": jnp.ones((H,), jnp.float32), "ln2_b": jnp.zeros((H,), jnp.float32),
        })
    return p


def prep_params(p, cfg):
    """Pack weights for the fused kernel: bf16 matmul weights, fused QKV with
    the attention scale folded into Q, per-layer stacks with a leading layer
    axis, row-vector (1,N) biases/LN params, 128-padded vocab table and
    lane-padded fc head."""
    H = cfg["hidden"]
    labels = cfg["labels"]
    scale = 1.0 / math.sqrt(H // cfg["heads"])
    vpad = ((cfg["vocab"] + 127) // 128) * 128

    def w(a):
        return a.astype(jnp.bfloat16)

    def row(a):
        return a.reshape(1, -1).astype(jnp.float32)

    out = {
        "word_emb": jnp.zeros((vpad, H), jnp.float32).at[:cfg["vocab"]].set(p["word_emb"]),
        "pos_emb": p["pos_emb"].astype(jnp.float32),
        "type_row": p["type_emb"][0:1].astype(jnp.float32),
        "emb_ln_g": row(p["emb_ln_g"]), "emb_ln_b": row(p["emb_ln_b"]),
        "pool_w": w(p["pool_w"]), "pool_b": row(p["pool_b"]),
        "dense_w": w(p["dense_w"]), "dense_b": row(p["dense_b"]),
    }
    fc_w_pad = jnp.zeros((H, FC_PAD), jnp.float32).at[:, :labels].set(p["fc_w"])
    fc_b_pad = jnp.zeros((FC_PAD,), jnp.float32).at[:labels].set(p["fc_b"])
    out["fc_w"] = w(fc_w_pad)
    out["fc_b"] = fc_b_pad.reshape(1, -1)

    wqkv, bqkv, wo, bo = [], [], [], []
    ln1g, ln1b, w1, b1, w2, b2, ln2g, ln2b = [], [], [], [], [], [], [], []
    for lp in p["layers"]:
        wq = lp["wq"] * scale            # fold 1/sqrt(dh) into Q weight/bias
        bq = lp["bq"] * scale
        wqkv.append(w(jnp.concatenate([wq, lp["wk"], lp["wv"]], axis=1)))     # (H,3H)
        bqkv.append(jnp.concatenate([bq, lp["bk"], lp["bv"]]).reshape(1, -1))
        wo.append(w(lp["wo"])); bo.append(row(lp["bo"]))
        ln1g.append(row(lp["ln1_g"])); ln1b.append(row(lp["ln1_b"]))
        w1.append(w(lp["w1"])); b1.append(row(lp["b1"]))
        w2.append(w(lp["w2"])); b2.append(row(lp["b2"]))
        ln2g.append(row(lp["ln2_g"])); ln2b.append(row(lp["ln2_b"]))

    stack = lambda xs: jnp.stack(xs, axis=0)
    out.update(
        wqkv=stack(wqkv), bqkv=stack(bqkv), wo=stack(wo), bo=stack(bo),
        ln1_g=stack(ln1g), ln1_b=stack(ln1b), w1=stack(w1), b1=stack(b1),
        w2=stack(w2), b2=stack(b2), ln2_g=stack(ln2g), ln2_b=stack(ln2b))
    return out


# ----------------------------------------------------------------------------
# Forward pass: one pallas_call for the whole model
# ----------------------------------------------------------------------------
def bert_forward(params, bert_ids, bert_mask, cfg):
    B, S = bert_ids.shape
    H = cfg["hidden"]

    # trivial input formatting (bytes, not tensors): ids as a (B*S,1) column
    # for the in-kernel one-hot gather, mask as a (B,1,S) f32 row.
    ids_col = bert_ids.astype(jnp.int32).reshape(B * S, 1)
    mask3 = bert_mask.astype(jnp.float32).reshape(B, 1, S)

    kernel = functools.partial(
        _bert_kernel, B=B, S=S, num_heads=cfg["heads"],
        num_layers=cfg["layers"], eps=1e-12)

    last_hidden, pooler_output, fc_pad = pl.pallas_call(
        kernel,
        out_shape=(jax.ShapeDtypeStruct((B, S, H), jnp.float32),
                   jax.ShapeDtypeStruct((B, H), jnp.float32),
                   jax.ShapeDtypeStruct((B, FC_PAD), jnp.float32)),
    )(ids_col, mask3,
      params["word_emb"], params["pos_emb"], params["type_row"],
      params["emb_ln_g"], params["emb_ln_b"],
      params["wqkv"], params["bqkv"], params["wo"], params["bo"],
      params["ln1_g"], params["ln1_b"], params["w1"], params["b1"],
      params["w2"], params["b2"], params["ln2_g"], params["ln2_b"],
      params["pool_w"], params["pool_b"], params["dense_w"], params["dense_b"],
      params["fc_w"], params["fc_b"])

    fc_output = fc_pad[:, :cfg["labels"]]                         # (B, 2)

    # TODO(synk): HF BertModel with output_hidden_states/output_attentions=True
    # also returns per-layer tuples; only last_hidden_state / pooler_output here.
    outputs = {"last_hidden_state": last_hidden,
               "pooler_output": pooler_output}
    return fc_output, outputs


# ----------------------------------------------------------------------------
if __name__ == "__main__":
    B, S = 2, 8
    root = jax.random.PRNGKey(0)
    k_param, k_ids, _ = jax.random.split(root, 3)

    params = prep_params(init_params(k_param, CFG), CFG)
    bert_ids = jax.random.randint(k_ids, (B, S), 0, CFG["vocab"], dtype=jnp.int32)
    # deterministic mask: first sequence fully valid, second has last 3 tokens padded
    bert_mask = jnp.array([[1] * S, [1] * (S - 3) + [0] * 3], dtype=jnp.int32)

    fwd = jax.jit(functools.partial(bert_forward, cfg=CFG))
    fc_out, outputs = fwd(params, bert_ids, bert_mask)
    jax.block_until_ready(fc_out)
    jax.block_until_ready(outputs["pooler_output"])
    jax.block_until_ready(outputs["last_hidden_state"])

    assert fc_out.shape == (B, CFG["labels"])
    assert outputs["last_hidden_state"].shape == (B, S, CFG["hidden"])
    assert outputs["pooler_output"].shape == (B, CFG["hidden"])
    assert bool(jnp.all(jnp.isfinite(fc_out)))
    print("KERNEL_OK")
</pallas_src>

<mosaic_0001>
module attributes {stable_mosaic.version = 11 : i64} {
  func.func @_bert_kernel(%arg0: memref<16x1xi32, #tpu.memory_space<vmem>>, %arg1: memref<2x1x8xf32, #tpu.memory_space<vmem>>, %arg2: memref<128x32xf32, #tpu.memory_space<vmem>>, %arg3: memref<32x32xf32, #tpu.memory_space<vmem>>, %arg4: memref<1x32xf32, #tpu.memory_space<vmem>>, %arg5: memref<1x32xf32, #tpu.memory_space<vmem>>, %arg6: memref<1x32xf32, #tpu.memory_space<vmem>>, %arg7: memref<2x32x96xbf16, #tpu.memory_space<vmem>>, %arg8: memref<2x1x96xf32, #tpu.memory_space<vmem>>, %arg9: memref<2x32x32xbf16, #tpu.memory_space<vmem>>, %arg10: memref<2x1x32xf32, #tpu.memory_space<vmem>>, %arg11: memref<2x1x32xf32, #tpu.memory_space<vmem>>, %arg12: memref<2x1x32xf32, #tpu.memory_space<vmem>>, %arg13: memref<2x32x64xbf16, #tpu.memory_space<vmem>>, %arg14: memref<2x1x64xf32, #tpu.memory_space<vmem>>, %arg15: memref<2x64x32xbf16, #tpu.memory_space<vmem>>, %arg16: memref<2x1x32xf32, #tpu.memory_space<vmem>>, %arg17: memref<2x1x32xf32, #tpu.memory_space<vmem>>, %arg18: memref<2x1x32xf32, #tpu.memory_space<vmem>>, %arg19: memref<32x32xbf16, #tpu.memory_space<vmem>>, %arg20: memref<1x32xf32, #tpu.memory_space<vmem>>, %arg21: memref<32x32xbf16, #tpu.memory_space<vmem>>, %arg22: memref<1x32xf32, #tpu.memory_space<vmem>>, %arg23: memref<32x128xbf16, #tpu.memory_space<vmem>>, %arg24: memref<1x128xf32, #tpu.memory_space<vmem>>, %arg25: memref<2x8x32xf32, #tpu.memory_space<vmem>>, %arg26: memref<2x32xf32, #tpu.memory_space<vmem>>, %arg27: memref<2x128xf32, #tpu.memory_space<vmem>>) attributes {dimension_semantics = [], scalar_prefetch = 0 : i64, scratch_operands = 0 : i64, tpu.core_type = #tpu.core_type<tc>} {
    %c0 = arith.constant 0 : index
    %c0_0 = arith.constant 0 : index
    %0 = vector.load %arg0[%c0, %c0_0] : memref<16x1xi32, #tpu.memory_space<vmem>>, vector<16x1xi32>
    %1 = tpu.iota {dimensions = array<i32: 1>} : vector<16x128xi32>
    %2 = vector.broadcast %0 : vector<16x1xi32> to vector<16x128xi32>
    %3 = arith.cmpi eq, %1, %2 : vector<16x128xi32>
    %4 = arith.extui %3 : vector<16x128xi1> to vector<16x128xi32>
    %5 = arith.sitofp %4 : vector<16x128xi32> to vector<16x128xf32>
    %c0_1 = arith.constant 0 : index
    %c0_2 = arith.constant 0 : index
    %6 = vector.load %arg2[%c0_1, %c0_2] : memref<128x32xf32, #tpu.memory_space<vmem>>, vector<128x32xf32>
    %cst = arith.constant dense<0.000000e+00> : vector<16x32xf32>
    %7 = tpu.matmul %5, %6, %cst {dimension_numbers = #tpu.dot_dimension_numbers<[1], [0], [0], [1], [0, 0, 1, 1], [], []>} : vector<16x128xf32>, vector<128x32xf32>, vector<16x32xf32> -> vector<16x32xf32>
    %c0_3 = arith.constant 0 : index
    %c0_4 = arith.constant 0 : index
    %8 = vector.load %arg3[%c0_3, %c0_4] : memref<32x32xf32, #tpu.memory_space<vmem>>, vector<8x32xf32>
    %9 = tpu.concatenate %8, %8 in 0 : vector<8x32xf32>, vector<8x32xf32> -> vector<16x32xf32>
    %10 = arith.addf %7, %9 : vector<16x32xf32>
    %c0_5 = arith.constant 0 : index
    %c0_6 = arith.constant 0 : index
    %11 = vector.load %arg4[%c0_5, %c0_6] : memref<1x32xf32, #tpu.memory_space<vmem>>, vector<1x32xf32>
    %12 = vector.broadcast %11 : vector<1x32xf32> to vector<16x32xf32>
    %13 = arith.addf %10, %12 : vector<16x32xf32>
    %c0_7 = arith.constant 0 : index
    %c0_8 = arith.constant 0 : index
    %14 = vector.load %arg5[%c0_7, %c0_8] : memref<1x32xf32, #tpu.memory_space<vmem>>, vector<1x32xf32>
    %c0_9 = arith.constant 0 : index
    %c0_10 = arith.constant 0 : index
    %15 = vector.load %arg6[%c0_9, %c0_10] : memref<1x32xf32, #tpu.memory_space<vmem>>, vector<1x32xf32>
    %cst_11 = arith.constant dense<0.000000e+00> : vector<16xf32>
    %16 = vector.multi_reduction <add>, %13, %cst_11 [1] : vector<16x32xf32> to vector<16xf32>
    %17 = vector.shape_cast %16 : vector<16xf32> to vector<16x1xf32>
    %cst_12 = arith.constant 3.200000e+01 : f32
    %18 = vector.broadcast %cst_12 : f32 to vector<16x1xf32>
    %19 = arith.divf %17, %18 : vector<16x1xf32>
    %20 = vector.broadcast %19 : vector<16x1xf32> to vector<16x32xf32>
    %21 = arith.subf %13, %20 : vector<16x32xf32>
    %22 = arith.mulf %21, %21 : vector<16x32xf32>
    %cst_13 = arith.constant dense<0.000000e+00> : vector<16xf32>
    %23 = vector.multi_reduction <add>, %22, %cst_13 [1] : vector<16x32xf32> to vector<16xf32>
    %24 = vector.shape_cast %23 : vector<16xf32> to vector<16x1xf32>
    %cst_14 = arith.constant 3.200000e+01 : f32
    %25 = vector.broadcast %cst_14 : f32 to vector<16x1xf32>
    %26 = arith.divf %24, %25 : vector<16x1xf32>
    %27 = vector.broadcast %19 : vector<16x1xf32> to vector<16x32xf32>
    %28 = arith.subf %13, %27 : vector<16x32xf32>
    %cst_15 = arith.constant 9.99999996E-13 : f32
    %29 = vector.broadcast %cst_15 : f32 to vector<16x1xf32>
    %30 = arith.addf %26, %29 : vector<16x1xf32>
    %31 = math.rsqrt %30 : vector<16x1xf32>
    %32 = vector.broadcast %31 : vector<16x1xf32> to vector<16x32xf32>
    %33 = arith.mulf %28, %32 : vector<16x32xf32>
    %34 = vector.broadcast %14 : vector<1x32xf32> to vector<16x32xf32>
    %35 = arith.mulf %33, %34 : vector<16x32xf32>
    %36 = vector.broadcast %15 : vector<1x32xf32> to vector<16x32xf32>
    %37 = arith.addf %35, %36 : vector<16x32xf32>
    %c0_16 = arith.constant 0 : index
    %c0_17 = arith.constant 0 : index
    %c0_18 = arith.constant 0 : index
    %38 = vector.load %arg1[%c0_16, %c0_17, %c0_18] : memref<2x1x8xf32, #tpu.memory_space<vmem>>, vector<2x1x8xf32>
    %cst_19 = arith.constant 1.000000e+00 : f32
    %39 = vector.broadcast %cst_19 : f32 to vector<2x1x8xf32>
    %40 = arith.subf %39, %38 : vector<2x1x8xf32>
    %cst_20 = arith.constant -1.000000e+04 : f32
    %41 = vector.broadcast %cst_20 : f32 to vector<2x1x8xf32>
    %42 = arith.mulf %40, %41 : vector<2x1x8xf32>
    %c0_21 = arith.constant 0 : index
    %c0_22 = arith.constant 0 : index
    %c0_23 = arith.constant 0 : index
    %43 = vector.load %arg7[%c0_21, %c0_22, %c0_23] : memref<2x32x96xbf16, #tpu.memory_space<vmem>>, vector<1x32x96xbf16>
    %44 = vector.shape_cast %43 : vector<1x32x96xbf16> to vector<32x96xbf16>
    %45 = arith.truncf %37 : vector<16x32xf32> to vector<16x32xbf16>
    %cst_24 = arith.constant dense<0.000000e+00> : vector<16x96xf32>
    %46 = tpu.matmul %45, %44, %cst_24 {dimension_numbers = #tpu.dot_dimension_numbers<[1], [0], [0], [1], [0, 0, 1, 1], [], []>} : vector<16x32xbf16>, vector<32x96xbf16>, vector<16x96xf32> -> vector<16x96xf32>
    %c0_25 = arith.constant 0 : index
    %c0_26 = arith.constant 0 : index
    %c0_27 = arith.constant 0 : index
    %47 = vector.load %arg8[%c0_25, %c0_26, %c0_27] : memref<2x1x96xf32, #tpu.memory_space<vmem>>, vector<1x1x96xf32>
    %48 = vector.shape_cast %47 : vector<1x1x96xf32> to vector<1x96xf32>
    %49 = vector.broadcast %48 : vector<1x96xf32> to vector<16x96xf32>
    %50 = arith.addf %46, %49 : vector<16x96xf32>
    %51 = vector.extract_strided_slice %50 {offsets = [0, 0], sizes = [16, 8], strides = [1, 1]} : vector<16x96xf32> to vector<16x8xf32>
    %52 = vector.shape_cast %51 : vector<16x8xf32> to vector<2x8x8xf32>
    %53 = vector.extract_strided_slice %50 {offsets = [0, 32], sizes = [16, 8], strides = [1, 1]} : vector<16x96xf32> to vector<16x8xf32>
    %54 = vector.shape_cast %53 : vector<16x8xf32> to vector<2x8x8xf32>
    %55 = vector.extract_strided_slice %50 {offsets = [0, 64], sizes = [16, 8], strides = [1, 1]} : vector<16x96xf32> to vector<16x8xf32>
    %56 = vector.shape_cast %55 : vector<16x8xf32> to vector<2x8x8xf32>
    %57 = arith.truncf %52 : vector<2x8x8xf32> to vector<2x8x8xbf16>
    %58 = arith.truncf %54 : vector<2x8x8xf32> to vector<2x8x8xbf16>
    "tpu.trace_start"() <{level = 10 : i32, message = "bqd,bkd->bqk"}> : () -> ()
    %cst_28 = arith.constant dense<0.000000e+00> : vector<2x8x8xf32>
    %59 = tpu.matmul %57, %58, %cst_28 {dimension_numbers = #tpu.dot_dimension_numbers<[2], [2], [1], [1], [0, 0, 0, 1, 1, 1], [0], [0]>} : vector<2x8x8xbf16>, vector<2x8x8xbf16>, vector<2x8x8xf32> -> vector<2x8x8xf32>
    "tpu.trace_stop"() : () -> ()
    %60 = vector.broadcast %42 : vector<2x1x8xf32> to vector<2x8x8xf32>
    %61 = arith.addf %59, %60 : vector<2x8x8xf32>
    %cst_29 = arith.constant dense<0xFF800000> : vector<2x8xf32>
    %62 = vector.multi_reduction <maximumf>, %61, %cst_29 [2] : vector<2x8x8xf32> to vector<2x8xf32>
    %63 = vector.shape_cast %62 : vector<2x8xf32> to vector<2x8x1xf32>
    %64 = vector.broadcast %63 : vector<2x8x1xf32> to vector<2x8x8xf32>
    %65 = arith.subf %61, %64 : vector<2x8x8xf32>
    %66 = math.exp %65 : vector<2x8x8xf32>
    %cst_30 = arith.constant dense<0.000000e+00> : vector<2x8xf32>
    %67 = vector.multi_reduction <add>, %66, %cst_30 [2] : vector<2x8x8xf32> to vector<2x8xf32>
    %68 = vector.shape_cast %67 : vector<2x8xf32> to vector<2x8x1xf32>
    %69 = tpu.reciprocal %68 {approx = true} : vector<2x8x1xf32> -> vector<2x8x1xf32>
    %70 = vector.broadcast %69 : vector<2x8x1xf32> to vector<2x8x8xf32>
    %71 = arith.mulf %66, %70 : vector<2x8x8xf32>
    %72 = arith.truncf %71 : vector<2x8x8xf32> to vector<2x8x8xbf16>
    %73 = arith.truncf %56 : vector<2x8x8xf32> to vector<2x8x8xbf16>
    "tpu.trace_start"() <{level = 10 : i32, message = "bqk,bkd->bqd"}> : () -> ()
    %cst_31 = arith.constant dense<0.000000e+00> : vector<2x8x8xf32>
    %74 = tpu.matmul %72, %73, %cst_31 {dimension_numbers = #tpu.dot_dimension_numbers<[2], [1], [1], [2], [0, 0, 0, 1, 1, 2], [0], [0]>} : vector<2x8x8xbf16>, vector<2x8x8xbf16>, vector<2x8x8xf32> -> vector<2x8x8xf32>
    "tpu.trace_stop"() : () -> ()
    %75 = vector.shape_cast %74 : vector<2x8x8xf32> to vector<16x8xf32>
    %76 = vector.extract_strided_slice %50 {offsets = [0, 8], sizes = [16, 8], strides = [1, 1]} : vector<16x96xf32> to vector<16x8xf32>
    %77 = vector.shape_cast %76 : vector<16x8xf32> to vector<2x8x8xf32>
    %78 = vector.extract_strided_slice %50 {offsets = [0, 40], sizes = [16, 8], strides = [1, 1]} : vector<16x96xf32> to vector<16x8xf32>
    %79 = vector.shape_cast %78 : vector<16x8xf32> to vector<2x8x8xf32>
    %80 = vector.extract_strided_slice %50 {offsets = [0, 72], sizes = [16, 8], strides = [1, 1]} : vector<16x96xf32> to vector<16x8xf32>
    %81 = vector.shape_cast %80 : vector<16x8xf32> to vector<2x8x8xf32>
    %82 = arith.truncf %77 : vector<2x8x8xf32> to vector<2x8x8xbf16>
    %83 = arith.truncf %79 : vector<2x8x8xf32> to vector<2x8x8xbf16>
    "tpu.trace_start"() <{level = 10 : i32, message = "bqd,bkd->bqk"}> : () -> ()
    %cst_32 = arith.constant dense<0.000000e+00> : vector<2x8x8xf32>
    %84 = tpu.matmul %82, %83, %cst_32 {dimension_numbers = #tpu.dot_dimension_numbers<[2], [2], [1], [1], [0, 0, 0, 1, 1, 1], [0], [0]>} : vector<2x8x8xbf16>, vector<2x8x8xbf16>, vector<2x8x8xf32> -> vector<2x8x8xf32>
    "tpu.trace_stop"() : () -> ()
    %85 = vector.broadcast %42 : vector<2x1x8xf32> to vector<2x8x8xf32>
    %86 = arith.addf %84, %85 : vector<2x8x8xf32>
    %cst_33 = arith.constant dense<0xFF800000> : vector<2x8xf32>
    %87 = vector.multi_reduction <maximumf>, %86, %cst_33 [2] : vector<2x8x8xf32> to vector<2x8xf32>
    %88 = vector.shape_cast %87 : vector<2x8xf32> to vector<2x8x1xf32>
    %89 = vector.broadcast %88 : vector<2x8x1xf32> to vector<2x8x8xf32>
    %90 = arith.subf %86, %89 : vector<2x8x8xf32>
    %91 = math.exp %90 : vector<2x8x8xf32>
    %cst_34 = arith.constant dense<0.000000e+00> : vector<2x8xf32>
    %92 = vector.multi_reduction <add>, %91, %cst_34 [2] : vector<2x8x8xf32> to vector<2x8xf32>
    %93 = vector.shape_cast %92 : vector<2x8xf32> to vector<2x8x1xf32>
    %94 = tpu.reciprocal %93 {approx = true} : vector<2x8x1xf32> -> vector<2x8x1xf32>
    %95 = vector.broadcast %94 : vector<2x8x1xf32> to vector<2x8x8xf32>
    %96 = arith.mulf %91, %95 : vector<2x8x8xf32>
    %97 = arith.truncf %96 : vector<2x8x8xf32> to vector<2x8x8xbf16>
    %98 = arith.truncf %81 : vector<2x8x8xf32> to vector<2x8x8xbf16>
    "tpu.trace_start"() <{level = 10 : i32, message = "bqk,bkd->bqd"}> : () -> ()
    %cst_35 = arith.constant dense<0.000000e+00> : vector<2x8x8xf32>
    %99 = tpu.matmul %97, %98, %cst_35 {dimension_numbers = #tpu.dot_dimension_numbers<[2], [1], [1], [2], [0, 0, 0, 1, 1, 2], [0], [0]>} : vector<2x8x8xbf16>, vector<2x8x8xbf16>, vector<2x8x8xf32> -> vector<2x8x8xf32>
    "tpu.trace_stop"() : () -> ()
    %100 = vector.shape_cast %99 : vector<2x8x8xf32> to vector<16x8xf32>
    %101 = vector.extract_strided_slice %50 {offsets = [0, 16], sizes = [16, 8], strides = [1, 1]} : vector<16x96xf32> to vector<16x8xf32>
    %102 = vector.shape_cast %101 : vector<16x8xf32> to vector<2x8x8xf32>
    %103 = vector.extract_strided_slice %50 {offsets = [0, 48], sizes = [16, 8], strides = [1, 1]} : vector<16x96xf32> to vector<16x8xf32>
    %104 = vector.shape_cast %103 : vector<16x8xf32> to vector<2x8x8xf32>
    %105 = vector.extract_strided_slice %50 {offsets = [0, 80], sizes = [16, 8], strides = [1, 1]} : vector<16x96xf32> to vector<16x8xf32>
    %106 = vector.shape_cast %105 : vector<16x8xf32> to vector<2x8x8xf32>
    %107 = arith.truncf %102 : vector<2x8x8xf32> to vector<2x8x8xbf16>
    %108 = arith.truncf %104 : vector<2x8x8xf32> to vector<2x8x8xbf16>
    "tpu.trace_start"() <{level = 10 : i32, message = "bqd,bkd->bqk"}> : () -> ()
    %cst_36 = arith.constant dense<0.000000e+00> : vector<2x8x8xf32>
    %109 = tpu.matmul %107, %108, %cst_36 {dimension_numbers = #tpu.dot_dimension_numbers<[2], [2], [1], [1], [0, 0, 0, 1, 1, 1], [0], [0]>} : vector<2x8x8xbf16>, vector<2x8x8xbf16>, vector<2x8x8xf32> -> vector<2x8x8xf32>
    "tpu.trace_stop"() : () -> ()
    %110 = vector.broadcast %42 : vector<2x1x8xf32> to vector<2x8x8xf32>
    %111 = arith.addf %109, %110 : vector<2x8x8xf32>
    %cst_37 = arith.constant dense<0xFF800000> : vector<2x8xf32>
    %112 = vector.multi_reduction <maximumf>, %111, %cst_37 [2] : vector<2x8x8xf32> to vector<2x8xf32>
    %113 = vector.shape_cast %112 : vector<2x8xf32> to vector<2x8x1xf32>
    %114 = vector.broadcast %113 : vector<2x8x1xf32> to vector<2x8x8xf32>
    %115 = arith.subf %111, %114 : vector<2x8x8xf32>
    %116 = math.exp %115 : vector<2x8x8xf32>
    %cst_38 = arith.constant dense<0.000000e+00> : vector<2x8xf32>
    %117 = vector.multi_reduction <add>, %116, %cst_38 [2] : vector<2x8x8xf32> to vector<2x8xf32>
    %118 = vector.shape_cast %117 : vector<2x8xf32> to vector<2x8x1xf32>
    %119 = tpu.reciprocal %118 {approx = true} : vector<2x8x1xf32> -> vector<2x8x1xf32>
    %120 = vector.broadcast %119 : vector<2x8x1xf32> to vector<2x8x8xf32>
    %121 = arith.mulf %116, %120 : vector<2x8x8xf32>
    %122 = arith.truncf %121 : vector<2x8x8xf32> to vector<2x8x8xbf16>
    %123 = arith.truncf %106 : vector<2x8x8xf32> to vector<2x8x8xbf16>
    "tpu.trace_start"() <{level = 10 : i32, message = "bqk,bkd->bqd"}> : () -> ()
    %cst_39 = arith.constant dense<0.000000e+00> : vector<2x8x8xf32>
    %124 = tpu.matmul %122, %123, %cst_39 {dimension_numbers = #tpu.dot_dimension_numbers<[2], [1], [1], [2], [0, 0, 0, 1, 1, 2], [0], [0]>} : vector<2x8x8xbf16>, vector<2x8x8xbf16>, vector<2x8x8xf32> -> vector<2x8x8xf32>
    "tpu.trace_stop"() : () -> ()
    %125 = vector.shape_cast %124 : vector<2x8x8xf32> to vector<16x8xf32>
    %126 = vector.extract_strided_slice %50 {offsets = [0, 24], sizes = [16, 8], strides = [1, 1]} : vector<16x96xf32> to vector<16x8xf32>
    %127 = vector.shape_cast %126 : vector<16x8xf32> to vector<2x8x8xf32>
    %128 = vector.extract_strided_slice %50 {offsets = [0, 56], sizes = [16, 8], strides = [1, 1]} : vector<16x96xf32> to vector<16x8xf32>
    %129 = vector.shape_cast %128 : vector<16x8xf32> to vector<2x8x8xf32>
    %130 = vector.extract_strided_slice %50 {offsets = [0, 88], sizes = [16, 8], strides = [1, 1]} : vector<16x96xf32> to vector<16x8xf32>
    %131 = vector.shape_cast %130 : vector<16x8xf32> to vector<2x8x8xf32>
    %132 = arith.truncf %127 : vector<2x8x8xf32> to vector<2x8x8xbf16>
    %133 = arith.truncf %129 : vector<2x8x8xf32> to vector<2x8x8xbf16>
    "tpu.trace_start"() <{level = 10 : i32, message = "bqd,bkd->bqk"}> : () -> ()
    %cst_40 = arith.constant dense<0.000000e+00> : vector<2x8x8xf32>
    %134 = tpu.matmul %132, %133, %cst_40 {dimension_numbers = #tpu.dot_dimension_numbers<[2], [2], [1], [1], [0, 0, 0, 1, 1, 1], [0], [0]>} : vector<2x8x8xbf16>, vector<2x8x8xbf16>, vector<2x8x8xf32> -> vector<2x8x8xf32>
    "tpu.trace_stop"() : () -> ()
    %135 = vector.broadcast %42 : vector<2x1x8xf32> to vector<2x8x8xf32>
    %136 = arith.addf %134, %135 : vector<2x8x8xf32>
    %cst_41 = arith.constant dense<0xFF800000> : vector<2x8xf32>
    %137 = vector.multi_reduction <maximumf>, %136, %cst_41 [2] : vector<2x8x8xf32> to vector<2x8xf32>
    %138 = vector.shape_cast %137 : vector<2x8xf32> to vector<2x8x1xf32>
    %139 = vector.broadcast %138 : vector<2x8x1xf32> to vector<2x8x8xf32>
    %140 = arith.subf %136, %139 : vector<2x8x8xf32>
    %141 = math.exp %140 : vector<2x8x8xf32>
    %cst_42 = arith.constant dense<0.000000e+00> : vector<2x8xf32>
    %142 = vector.multi_reduction <add>, %141, %cst_42 [2] : vector<2x8x8xf32> to vector<2x8xf32>
    %143 = vector.shape_cast %142 : vector<2x8xf32> to vector<2x8x1xf32>
    %144 = tpu.reciprocal %143 {approx = true} : vector<2x8x1xf32> -> vector<2x8x1xf32>
    %145 = vector.broadcast %144 : vector<2x8x1xf32> to vector<2x8x8xf32>
    %146 = arith.mulf %141, %145 : vector<2x8x8xf32>
    %147 = arith.truncf %146 : vector<2x8x8xf32> to vector<2x8x8xbf16>
    %148 = arith.truncf %131 : vector<2x8x8xf32> to vector<2x8x8xbf16>
    "tpu.trace_start"() <{level = 10 : i32, message = "bqk,bkd->bqd"}> : () -> ()
    %cst_43 = arith.constant dense<0.000000e+00> : vector<2x8x8xf32>
    %149 = tpu.matmul %147, %148, %cst_43 {dimension_numbers = #tpu.dot_dimension_numbers<[2], [1], [1], [2], [0, 0, 0, 1, 1, 2], [0], [0]>} : vector<2x8x8xbf16>, vector<2x8x8xbf16>, vector<2x8x8xf32> -> vector<2x8x8xf32>
    "tpu.trace_stop"() : () -> ()
    %150 = vector.shape_cast %149 : vector<2x8x8xf32> to vector<16x8xf32>
    %151 = tpu.concatenate %75, %100, %125, %150 in 1 : vector<16x8xf32>, vector<16x8xf32>, vector<16x8xf32>, vector<16x8xf32> -> vector<16x32xf32>
    %c0_44 = arith.constant 0 : index
    %c0_45 = arith.constant 0 : index
    %c0_46 = arith.constant 0 : index
    %152 = vector.load %arg9[%c0_44, %c0_45, %c0_46] : memref<2x32x32xbf16, #tpu.memory_space<vmem>>, vector<1x32x32xbf16>
    %153 = vector.shape_cast %152 : vector<1x32x32xbf16> to vector<32x32xbf16>
    %154 = arith.truncf %151 : vector<16x32xf32> to vector<16x32xbf16>
    %cst_47 = arith.constant dense<0.000000e+00> : vector<16x32xf32>
    %155 = tpu.matmul %154, %153, %cst_47 {dimension_numbers = #tpu.dot_dimension_numbers<[1], [0], [0], [1], [0, 0, 1, 1], [], []>} : vector<16x32xbf16>, vector<32x32xbf16>, vector<16x32xf32> -> vector<16x32xf32>
    %c0_48 = arith.constant 0 : index
    %c0_49 = arith.constant 0 : index
    %c0_50 = arith.constant 0 : index
    %156 = vector.load %arg10[%c0_48, %c0_49, %c0_50] : memref<2x1x32xf32, #tpu.memory_space<vmem>>, vector<1x1x32xf32>
    %157 = vector.shape_cast %156 : vector<1x1x32xf32> to vector<1x32xf32>
    %158 = vector.broadcast %157 : vector<1x32xf32> to vector<16x32xf32>
    %159 = arith.addf %155, %158 : vector<16x32xf32>
    %160 = arith.addf %159, %37 : vector<16x32xf32>
    %c0_51 = arith.constant 0 : index
    %c0_52 = arith.constant 0 : index
    %c0_53 = arith.constant 0 : index
    %161 = vector.load %arg11[%c0_51, %c0_52, %c0_53] : memref<2x1x32xf32, #tpu.memory_space<vmem>>, vector<1x1x32xf32>
    %162 = vector.shape_cast %161 : vector<1x1x32xf32> to vector<1x32xf32>
    %c0_54 = arith.constant 0 : index
    %c0_55 = arith.constant 0 : index
    %c0_56 = arith.constant 0 : index
    %163 = vector.load %arg12[%c0_54, %c0_55, %c0_56] : memref<2x1x32xf32, #tpu.memory_space<vmem>>, vector<1x1x32xf32>
    %164 = vector.shape_cast %163 : vector<1x1x32xf32> to vector<1x32xf32>
    %cst_57 = arith.constant dense<0.000000e+00> : vector<16xf32>
    %165 = vector.multi_reduction <add>, %160, %cst_57 [1] : vector<16x32xf32> to vector<16xf32>
    %166 = vector.shape_cast %165 : vector<16xf32> to vector<16x1xf32>
    %cst_58 = arith.constant 3.200000e+01 : f32
    %167 = vector.broadcast %cst_58 : f32 to vector<16x1xf32>
    %168 = arith.divf %166, %167 : vector<16x1xf32>
    %169 = vector.broadcast %168 : vector<16x1xf32> to vector<16x32xf32>
    %170 = arith.subf %160, %169 : vector<16x32xf32>
    %171 = arith.mulf %170, %170 : vector<16x32xf32>
    %cst_59 = arith.constant dense<0.000000e+00> : vector<16xf32>
    %172 = vector.multi_reduction <add>, %171, %cst_59 [1] : vector<16x32xf32> to vector<16xf32>
    %173 = vector.shape_cast %172 : vector<16xf32> to vector<16x1xf32>
    %cst_60 = arith.constant 3.200000e+01 : f32
    %174 = vector.broadcast %cst_60 : f32 to vector<16x1xf32>
    %175 = arith.divf %173, %174 : vector<16x1xf32>
    %176 = vector.broadcast %168 : vector<16x1xf32> to vector<16x32xf32>
    %177 = arith.subf %160, %176 : vector<16x32xf32>
    %cst_61 = arith.constant 9.99999996E-13 : f32
    %178 = vector.broadcast %cst_61 : f32 to vector<16x1xf32>
    %179 = arith.addf %175, %178 : vector<16x1xf32>
    %180 = math.rsqrt %179 : vector<16x1xf32>
    %181 = vector.broadcast %180 : vector<16x1xf32> to vector<16x32xf32>
    %182 = arith.mulf %177, %181 : vector<16x32xf32>
    %183 = vector.broadcast %162 : vector<1x32xf32> to vector<16x32xf32>
    %184 = arith.mulf %182, %183 : vector<16x32xf32>
    %185 = vector.broadcast %164 : vector<1x32xf32> to vector<16x32xf32>
    %186 = arith.addf %184, %185 : vector<16x32xf32>
    %c0_62 = arith.constant 0 : index
    %c0_63 = arith.constant 0 : index
    %c0_64 = arith.constant 0 : index
    %187 = vector.load %arg13[%c0_62, %c0_63, %c0_64] : memref<2x32x64xbf16, #tpu.memory_space<vmem>>, vector<1x32x64xbf16>
    %188 = vector.shape_cast %187 : vector<1x32x64xbf16> to vector<32x64xbf16>
    %189 = arith.truncf %186 : vector<16x32xf32> to vector<16x32xbf16>
    %cst_65 = arith.constant dense<0.000000e+00> : vector<16x64xf32>
    %190 = tpu.matmul %189, %188, %cst_65 {dimension_numbers = #tpu.dot_dimension_numbers<[1], [0], [0], [1], [0, 0, 1, 1], [], []>} : vector<16x32xbf16>, vector<32x64xbf16>, vector<16x64xf32> -> vector<16x64xf32>
    %c0_66 = arith.constant 0 : index
    %c0_67 = arith.constant 0 : index
    %c0_68 = arith.constant 0 : index
    %191 = vector.load %arg14[%c0_66, %c0_67, %c0_68] : memref<2x1x64xf32, #tpu.memory_space<vmem>>, vector<1x1x64xf32>
    %192 = vector.shape_cast %191 : vector<1x1x64xf32> to vector<1x64xf32>
    %193 = vector.broadcast %192 : vector<1x64xf32> to vector<16x64xf32>
    %194 = arith.addf %190, %193 : vector<16x64xf32>
    %195 = arith.mulf %194, %194 : vector<16x64xf32>
    %196 = arith.mulf %194, %195 : vector<16x64xf32>
    %cst_69 = arith.constant 4.471500e-02 : f32
    %197 = vector.broadcast %cst_69 : f32 to vector<16x64xf32>
    %198 = arith.mulf %197, %196 : vector<16x64xf32>
    %199 = arith.addf %194, %198 : vector<16x64xf32>
    %cst_70 = arith.constant 0.797884583 : f32
    %200 = vector.broadcast %cst_70 : f32 to vector<16x64xf32>
    %201 = arith.mulf %200, %199 : vector<16x64xf32>
    %202 = math.tanh %201 : vector<16x64xf32>
    %cst_71 = arith.constant 1.000000e+00 : f32
    %203 = vector.broadcast %cst_71 : f32 to vector<16x64xf32>
    %204 = arith.addf %203, %202 : vector<16x64xf32>
    %cst_72 = arith.constant 5.000000e-01 : f32
    %205 = vector.broadcast %cst_72 : f32 to vector<16x64xf32>
    %206 = arith.mulf %205, %204 : vector<16x64xf32>
    %207 = arith.mulf %194, %206 : vector<16x64xf32>
    %c0_73 = arith.constant 0 : index
    %c0_74 = arith.constant 0 : index
    %c0_75 = arith.constant 0 : index
    %208 = vector.load %arg15[%c0_73, %c0_74, %c0_75] : memref<2x64x32xbf16, #tpu.memory_space<vmem>>, vector<1x64x32xbf16>
    %209 = vector.shape_cast %208 : vector<1x64x32xbf16> to vector<64x32xbf16>
    %210 = arith.truncf %207 : vector<16x64xf32> to vector<16x64xbf16>
    %cst_76 = arith.constant dense<0.000000e+00> : vector<16x32xf32>
    %211 = tpu.matmul %210, %209, %cst_76 {dimension_numbers = #tpu.dot_dimension_numbers<[1], [0], [0], [1], [0, 0, 1, 1], [], []>} : vector<16x64xbf16>, vector<64x32xbf16>, vector<16x32xf32> -> vector<16x32xf32>
    %c0_77 = arith.constant 0 : index
    %c0_78 = arith.constant 0 : index
    %c0_79 = arith.constant 0 : index
    %212 = vector.load %arg16[%c0_77, %c0_78, %c0_79] : memref<2x1x32xf32, #tpu.memory_space<vmem>>, vector<1x1x32xf32>
    %213 = vector.shape_cast %212 : vector<1x1x32xf32> to vector<1x32xf32>
    %214 = vector.broadcast %213 : vector<1x32xf32> to vector<16x32xf32>
    %215 = arith.addf %211, %214 : vector<16x32xf32>
    %216 = arith.addf %215, %186 : vector<16x32xf32>
    %c0_80 = arith.constant 0 : index
    %c0_81 = arith.constant 0 : index
    %c0_82 = arith.constant 0 : index
    %217 = vector.load %arg17[%c0_80, %c0_81, %c0_82] : memref<2x1x32xf32, #tpu.memory_space<vmem>>, vector<1x1x32xf32>
    %218 = vector.shape_cast %217 : vector<1x1x32xf32> to vector<1x32xf32>
    %c0_83 = arith.constant 0 : index
    %c0_84 = arith.constant 0 : index
    %c0_85 = arith.constant 0 : index
    %219 = vector.load %arg18[%c0_83, %c0_84, %c0_85] : memref<2x1x32xf32, #tpu.memory_space<vmem>>, vector<1x1x32xf32>
    %220 = vector.shape_cast %219 : vector<1x1x32xf32> to vector<1x32xf32>
    %cst_86 = arith.constant dense<0.000000e+00> : vector<16xf32>
    %221 = vector.multi_reduction <add>, %216, %cst_86 [1] : vector<16x32xf32> to vector<16xf32>
    %222 = vector.shape_cast %221 : vector<16xf32> to vector<16x1xf32>
    %cst_87 = arith.constant 3.200000e+01 : f32
    %223 = vector.broadcast %cst_87 : f32 to vector<16x1xf32>
    %224 = arith.divf %222, %223 : vector<16x1xf32>
    %225 = vector.broadcast %224 : vector<16x1xf32> to vector<16x32xf32>
    %226 = arith.subf %216, %225 : vector<16x32xf32>
    %227 = arith.mulf %226, %226 : vector<16x32xf32>
    %cst_88 = arith.constant dense<0.000000e+00> : vector<16xf32>
    %228 = vector.multi_reduction <add>, %227, %cst_88 [1] : vector<16x32xf32> to vector<16xf32>
    %229 = vector.shape_cast %228 : vector<16xf32> to vector<16x1xf32>
    %cst_89 = arith.constant 3.200000e+01 : f32
    %230 = vector.broadcast %cst_89 : f32 to vector<16x1xf32>
    %231 = arith.divf %229, %230 : vector<16x1xf32>
    %232 = vector.broadcast %224 : vector<16x1xf32> to vector<16x32xf32>
    %233 = arith.subf %216, %232 : vector<16x32xf32>
    %cst_90 = arith.constant 9.99999996E-13 : f32
    %234 = vector.broadcast %cst_90 : f32 to vector<16x1xf32>
    %235 = arith.addf %231, %234 : vector<16x1xf32>
    %236 = math.rsqrt %235 : vector<16x1xf32>
    %237 = vector.broadcast %236 : vector<16x1xf32> to vector<16x32xf32>
    %238 = arith.mulf %233, %237 : vector<16x32xf32>
    %239 = vector.broadcast %218 : vector<1x32xf32> to vector<16x32xf32>
    %240 = arith.mulf %238, %239 : vector<16x32xf32>
    %241 = vector.broadcast %220 : vector<1x32xf32> to vector<16x32xf32>
    %242 = arith.addf %240, %241 : vector<16x32xf32>
    %c1 = arith.constant 1 : index
    %c0_91 = arith.constant 0 : index
    %c0_92 = arith.constant 0 : index
    %243 = vector.load %arg7[%c1, %c0_91, %c0_92] : memref<2x32x96xbf16, #tpu.memory_space<vmem>>, vector<1x32x96xbf16>
    %244 = vector.shape_cast %243 : vector<1x32x96xbf16> to vector<32x96xbf16>
    %245 = arith.truncf %242 : vector<16x32xf32> to vector<16x32xbf16>
    %cst_93 = arith.constant dense<0.000000e+00> : vector<16x96xf32>
    %246 = tpu.matmul %245, %244, %cst_93 {dimension_numbers = #tpu.dot_dimension_numbers<[1], [0], [0], [1], [0, 0, 1, 1], [], []>} : vector<16x32xbf16>, vector<32x96xbf16>, vector<16x96xf32> -> vector<16x96xf32>
    %c1_94 = arith.constant 1 : index
    %c0_95 = arith.constant 0 : index
    %c0_96 = arith.constant 0 : index
    %247 = vector.load %arg8[%c1_94, %c0_95, %c0_96] : memref<2x1x96xf32, #tpu.memory_space<vmem>>, vector<1x1x96xf32>
    %248 = vector.shape_cast %247 : vector<1x1x96xf32> to vector<1x96xf32>
    %249 = vector.broadcast %248 : vector<1x96xf32> to vector<16x96xf32>
    %250 = arith.addf %246, %249 : vector<16x96xf32>
    %251 = vector.extract_strided_slice %250 {offsets = [0, 0], sizes = [16, 8], strides = [1, 1]} : vector<16x96xf32> to vector<16x8xf32>
    %252 = vector.shape_cast %251 : vector<16x8xf32> to vector<2x8x8xf32>
    %253 = vector.extract_strided_slice %250 {offsets = [0, 32], sizes = [16, 8], strides = [1, 1]} : vector<16x96xf32> to vector<16x8xf32>
    %254 = vector.shape_cast %253 : vector<16x8xf32> to vector<2x8x8xf32>
    %255 = vector.extract_strided_slice %250 {offsets = [0, 64], sizes = [16, 8], strides = [1, 1]} : vector<16x96xf32> to vector<16x8xf32>
    %256 = vector.shape_cast %255 : vector<16x8xf32> to vector<2x8x8xf32>
    %257 = arith.truncf %252 : vector<2x8x8xf32> to vector<2x8x8xbf16>
    %258 = arith.truncf %254 : vector<2x8x8xf32> to vector<2x8x8xbf16>
    "tpu.trace_start"() <{level = 10 : i32, message = "bqd,bkd->bqk"}> : () -> ()
    %cst_97 = arith.constant dense<0.000000e+00> : vector<2x8x8xf32>
    %259 = tpu.matmul %257, %258, %cst_97 {dimension_numbers = #tpu.dot_dimension_numbers<[2], [2], [1], [1], [0, 0, 0, 1, 1, 1], [0], [0]>} : vector<2x8x8xbf16>, vector<2x8x8xbf16>, vector<2x8x8xf32> -> vector<2x8x8xf32>
    "tpu.trace_stop"() : () -> ()
    %260 = vector.broadcast %42 : vector<2x1x8xf32> to vector<2x8x8xf32>
    %261 = arith.addf %259, %260 : vector<2x8x8xf32>
    %cst_98 = arith.constant dense<0xFF800000> : vector<2x8xf32>
    %262 = vector.multi_reduction <maximumf>, %261, %cst_98 [2] : vector<2x8x8xf32> to vector<2x8xf32>
    %263 = vector.shape_cast %262 : vector<2x8xf32> to vector<2x8x1xf32>
    %264 = vector.broadcast %263 : vector<2x8x1xf32> to vector<2x8x8xf32>
    %265 = arith.subf %261, %264 : vector<2x8x8xf32>
    %266 = math.exp %265 : vector<2x8x8xf32>
    %cst_99 = arith.constant dense<0.000000e+00> : vector<2x8xf32>
    %267 = vector.multi_reduction <add>, %266, %cst_99 [2] : vector<2x8x8xf32> to vector<2x8xf32>
    %268 = vector.shape_cast %267 : vector<2x8xf32> to vector<2x8x1xf32>
    %269 = tpu.reciprocal %268 {approx = true} : vector<2x8x1xf32> -> vector<2x8x1xf32>
    %270 = vector.broadcast %269 : vector<2x8x1xf32> to vector<2x8x8xf32>
    %271 = arith.mulf %266, %270 : vector<2x8x8xf32>
    %272 = arith.truncf %271 : vector<2x8x8xf32> to vector<2x8x8xbf16>
    %273 = arith.truncf %256 : vector<2x8x8xf32> to vector<2x8x8xbf16>
    "tpu.trace_start"() <{level = 10 : i32, message = "bqk,bkd->bqd"}> : () -> ()
    %cst_100 = arith.constant dense<0.000000e+00> : vector<2x8x8xf32>
    %274 = tpu.matmul %272, %273, %cst_100 {dimension_numbers = #tpu.dot_dimension_numbers<[2], [1], [1], [2], [0, 0, 0, 1, 1, 2], [0], [0]>} : vector<2x8x8xbf16>, vector<2x8x8xbf16>, vector<2x8x8xf32> -> vector<2x8x8xf32>
    "tpu.trace_stop"() : () -> ()
    %275 = vector.shape_cast %274 : vector<2x8x8xf32> to vector<16x8xf32>
    %276 = vector.extract_strided_slice %250 {offsets = [0, 8], sizes = [16, 8], strides = [1, 1]} : vector<16x96xf32> to vector<16x8xf32>
    %277 = vector.shape_cast %276 : vector<16x8xf32> to vector<2x8x8xf32>
    %278 = vector.extract_strided_slice %250 {offsets = [0, 40], sizes = [16, 8], strides = [1, 1]} : vector<16x96xf32> to vector<16x8xf32>
    %279 = vector.shape_cast %278 : vector<16x8xf32> to vector<2x8x8xf32>
    %280 = vector.extract_strided_slice %250 {offsets = [0, 72], sizes = [16, 8], strides = [1, 1]} : vector<16x96xf32> to vector<16x8xf32>
    %281 = vector.shape_cast %280 : vector<16x8xf32> to vector<2x8x8xf32>
    %282 = arith.truncf %277 : vector<2x8x8xf32> to vector<2x8x8xbf16>
    %283 = arith.truncf %279 : vector<2x8x8xf32> to vector<2x8x8xbf16>
    "tpu.trace_start"() <{level = 10 : i32, message = "bqd,bkd->bqk"}> : () -> ()
    %cst_101 = arith.constant dense<0.000000e+00> : vector<2x8x8xf32>
    %284 = tpu.matmul %282, %283, %cst_101 {dimension_numbers = #tpu.dot_dimension_numbers<[2], [2], [1], [1], [0, 0, 0, 1, 1, 1], [0], [0]>} : vector<2x8x8xbf16>, vector<2x8x8xbf16>, vector<2x8x8xf32> -> vector<2x8x8xf32>
    "tpu.trace_stop"() : () -> ()
    %285 = vector.broadcast %42 : vector<2x1x8xf32> to vector<2x8x8xf32>
    %286 = arith.addf %284, %285 : vector<2x8x8xf32>
    %cst_102 = arith.constant dense<0xFF800000> : vector<2x8xf32>
    %287 = vector.multi_reduction <maximumf>, %286, %cst_102 [2] : vector<2x8x8xf32> to vector<2x8xf32>
    %288 = vector.shape_cast %287 : vector<2x8xf32> to vector<2x8x1xf32>
    %289 = vector.broadcast %288 : vector<2x8x1xf32> to vector<2x8x8xf32>
    %290 = arith.subf %286, %289 : vector<2x8x8xf32>
    %291 = math.exp %290 : vector<2x8x8xf32>
    %cst_103 = arith.constant dense<0.000000e+00> : vector<2x8xf32>
    %292 = vector.multi_reduction <add>, %291, %cst_103 [2] : vector<2x8x8xf32> to vector<2x8xf32>
    %293 = vector.shape_cast %292 : vector<2x8xf32> to vector<2x8x1xf32>
    %294 = tpu.reciprocal %293 {approx = true} : vector<2x8x1xf32> -> vector<2x8x1xf32>
    %295 = vector.broadcast %294 : vector<2x8x1xf32> to vector<2x8x8xf32>
    %296 = arith.mulf %291, %295 : vector<2x8x8xf32>
    %297 = arith.truncf %296 : vector<2x8x8xf32> to vector<2x8x8xbf16>
    %298 = arith.truncf %281 : vector<2x8x8xf32> to vector<2x8x8xbf16>
    "tpu.trace_start"() <{level = 10 : i32, message = "bqk,bkd->bqd"}> : () -> ()
    %cst_104 = arith.constant dense<0.000000e+00> : vector<2x8x8xf32>
    %299 = tpu.matmul %297, %298, %cst_104 {dimension_numbers = #tpu.dot_dimension_numbers<[2], [1], [1], [2], [0, 0, 0, 1, 1, 2], [0], [0]>} : vector<2x8x8xbf16>, vector<2x8x8xbf16>, vector<2x8x8xf32> -> vector<2x8x8xf32>
    "tpu.trace_stop"() : () -> ()
    %300 = vector.shape_cast %299 : vector<2x8x8xf32> to vector<16x8xf32>
    %301 = vector.extract_strided_slice %250 {offsets = [0, 16], sizes = [16, 8], strides = [1, 1]} : vector<16x96xf32> to vector<16x8xf32>
    %302 = vector.shape_cast %301 : vector<16x8xf32> to vector<2x8x8xf32>
    %303 = vector.extract_strided_slice %250 {offsets = [0, 48], sizes = [16, 8], strides = [1, 1]} : vector<16x96xf32> to vector<16x8xf32>
    %304 = vector.shape_cast %303 : vector<16x8xf32> to vector<2x8x8xf32>
    %305 = vector.extract_strided_slice %250 {offsets = [0, 80], sizes = [16, 8], strides = [1, 1]} : vector<16x96xf32> to vector<16x8xf32>
    %306 = vector.shape_cast %305 : vector<16x8xf32> to vector<2x8x8xf32>
    %307 = arith.truncf %302 : vector<2x8x8xf32> to vector<2x8x8xbf16>
    %308 = arith.truncf %304 : vector<2x8x8xf32> to vector<2x8x8xbf16>
    "tpu.trace_start"() <{level = 10 : i32, message = "bqd,bkd->bqk"}> : () -> ()
    %cst_105 = arith.constant dense<0.000000e+00> : vector<2x8x8xf32>
    %309 = tpu.matmul %307, %308, %cst_105 {dimension_numbers = #tpu.dot_dimension_numbers<[2], [2], [1], [1], [0, 0, 0, 1, 1, 1], [0], [0]>} : vector<2x8x8xbf16>, vector<2x8x8xbf16>, vector<2x8x8xf32> -> vector<2x8x8xf32>
    "tpu.trace_stop"() : () -> ()
    %310 = vector.broadcast %42 : vector<2x1x8xf32> to vector<2x8x8xf32>
    %311 = arith.addf %309, %310 : vector<2x8x8xf32>
    %cst_106 = arith.constant dense<0xFF800000> : vector<2x8xf32>
    %312 = vector.multi_reduction <maximumf>, %311, %cst_106 [2] : vector<2x8x8xf32> to vector<2x8xf32>
    %313 = vector.shape_cast %312 : vector<2x8xf32> to vector<2x8x1xf32>
    %314 = vector.broadcast %313 : vector<2x8x1xf32> to vector<2x8x8xf32>
    %315 = arith.subf %311, %314 : vector<2x8x8xf32>
    %316 = math.exp %315 : vector<2x8x8xf32>
    %cst_107 = arith.constant dense<0.000000e+00> : vector<2x8xf32>
    %317 = vector.multi_reduction <add>, %316, %cst_107 [2] : vector<2x8x8xf32> to vector<2x8xf32>
    %318 = vector.shape_cast %317 : vector<2x8xf32> to vector<2x8x1xf32>
    %319 = tpu.reciprocal %318 {approx = true} : vector<2x8x1xf32> -> vector<2x8x1xf32>
    %320 = vector.broadcast %319 : vector<2x8x1xf32> to vector<2x8x8xf32>
    %321 = arith.mulf %316, %320 : vector<2x8x8xf32>
    %322 = arith.truncf %321 : vector<2x8x8xf32> to vector<2x8x8xbf16>
    %323 = arith.truncf %306 : vector<2x8x8xf32> to vector<2x8x8xbf16>
    "tpu.trace_start"() <{level = 10 : i32, message = "bqk,bkd->bqd"}> : () -> ()
    %cst_108 = arith.constant dense<0.000000e+00> : vector<2x8x8xf32>
    %324 = tpu.matmul %322, %323, %cst_108 {dimension_numbers = #tpu.dot_dimension_numbers<[2], [1], [1], [2], [0, 0, 0, 1, 1, 2], [0], [0]>} : vector<2x8x8xbf16>, vector<2x8x8xbf16>, vector<2x8x8xf32> -> vector<2x8x8xf32>
    "tpu.trace_stop"() : () -> ()
    %325 = vector.shape_cast %324 : vector<2x8x8xf32> to vector<16x8xf32>
    %326 = vector.extract_strided_slice %250 {offsets = [0, 24], sizes = [16, 8], strides = [1, 1]} : vector<16x96xf32> to vector<16x8xf32>
    %327 = vector.shape_cast %326 : vector<16x8xf32> to vector<2x8x8xf32>
    %328 = vector.extract_strided_slice %250 {offsets = [0, 56], sizes = [16, 8], strides = [1, 1]} : vector<16x96xf32> to vector<16x8xf32>
    %329 = vector.shape_cast %328 : vector<16x8xf32> to vector<2x8x8xf32>
    %330 = vector.extract_strided_slice %250 {offsets = [0, 88], sizes = [16, 8], strides = [1, 1]} : vector<16x96xf32> to vector<16x8xf32>
    %331 = vector.shape_cast %330 : vector<16x8xf32> to vector<2x8x8xf32>
    %332 = arith.truncf %327 : vector<2x8x8xf32> to vector<2x8x8xbf16>
    %333 = arith.truncf %329 : vector<2x8x8xf32> to vector<2x8x8xbf16>
    "tpu.trace_start"() <{level = 10 : i32, message = "bqd,bkd->bqk"}> : () -> ()
    %cst_109 = arith.constant dense<0.000000e+00> : vector<2x8x8xf32>
    %334 = tpu.matmul %332, %333, %cst_109 {dimension_numbers = #tpu.dot_dimension_numbers<[2], [2], [1], [1], [0, 0, 0, 1, 1, 1], [0], [0]>} : vector<2x8x8xbf16>, vector<2x8x8xbf16>, vector<2x8x8xf32> -> vector<2x8x8xf32>
    "tpu.trace_stop"() : () -> ()
    %335 = vector.broadcast %42 : vector<2x1x8xf32> to vector<2x8x8xf32>
    %336 = arith.addf %334, %335 : vector<2x8x8xf32>
    %cst_110 = arith.constant dense<0xFF800000> : vector<2x8xf32>
    %337 = vector.multi_reduction <maximumf>, %336, %cst_110 [2] : vector<2x8x8xf32> to vector<2x8xf32>
    %338 = vector.shape_cast %337 : vector<2x8xf32> to vector<2x8x1xf32>
    %339 = vector.broadcast %338 : vector<2x8x1xf32> to vector<2x8x8xf32>
    %340 = arith.subf %336, %339 : vector<2x8x8xf32>
    %341 = math.exp %340 : vector<2x8x8xf32>
    %cst_111 = arith.constant dense<0.000000e+00> : vector<2x8xf32>
    %342 = vector.multi_reduction <add>, %341, %cst_111 [2] : vector<2x8x8xf32> to vector<2x8xf32>
    %343 = vector.shape_cast %342 : vector<2x8xf32> to vector<2x8x1xf32>
    %344 = tpu.reciprocal %343 {approx = true} : vector<2x8x1xf32> -> vector<2x8x1xf32>
    %345 = vector.broadcast %344 : vector<2x8x1xf32> to vector<2x8x8xf32>
    %346 = arith.mulf %341, %345 : vector<2x8x8xf32>
    %347 = arith.truncf %346 : vector<2x8x8xf32> to vector<2x8x8xbf16>
    %348 = arith.truncf %331 : vector<2x8x8xf32> to vector<2x8x8xbf16>
    "tpu.trace_start"() <{level = 10 : i32, message = "bqk,bkd->bqd"}> : () -> ()
    %cst_112 = arith.constant dense<0.000000e+00> : vector<2x8x8xf32>
    %349 = tpu.matmul %347, %348, %cst_112 {dimension_numbers = #tpu.dot_dimension_numbers<[2], [1], [1], [2], [0, 0, 0, 1, 1, 2], [0], [0]>} : vector<2x8x8xbf16>, vector<2x8x8xbf16>, vector<2x8x8xf32> -> vector<2x8x8xf32>
    "tpu.trace_stop"() : () -> ()
    %350 = vector.shape_cast %349 : vector<2x8x8xf32> to vector<16x8xf32>
    %351 = tpu.concatenate %275, %300, %325, %350 in 1 : vector<16x8xf32>, vector<16x8xf32>, vector<16x8xf32>, vector<16x8xf32> -> vector<16x32xf32>
    %c1_113 = arith.constant 1 : index
    %c0_114 = arith.constant 0 : index
    %c0_115 = arith.constant 0 : index
    %352 = vector.load %arg9[%c1_113, %c0_114, %c0_115] : memref<2x32x32xbf16, #tpu.memory_space<vmem>>, vector<1x32x32xbf16>
    %353 = vector.shape_cast %352 : vector<1x32x32xbf16> to vector<32x32xbf16>
    %354 = arith.truncf %351 : vector<16x32xf32> to vector<16x32xbf16>
    %cst_116 = arith.constant dense<0.000000e+00> : vector<16x32xf32>
    %355 = tpu.matmul %354, %353, %cst_116 {dimension_numbers = #tpu.dot_dimension_numbers<[1], [0], [0], [1], [0, 0, 1, 1], [], []>} : vector<16x32xbf16>, vector<32x32xbf16>, vector<16x32xf32> -> vector<16x32xf32>
    %c1_117 = arith.constant 1 : index
    %c0_118 = arith.constant 0 : index
    %c0_119 = arith.constant 0 : index
    %356 = vector.load %arg10[%c1_117, %c0_118, %c0_119] : memref<2x1x32xf32, #tpu.memory_space<vmem>>, vector<1x1x32xf32>
    %357 = vector.shape_cast %356 : vector<1x1x32xf32> to vector<1x32xf32>
    %358 = vector.broadcast %357 : vector<1x32xf32> to vector<16x32xf32>
    %359 = arith.addf %355, %358 : vector<16x32xf32>
    %360 = arith.addf %359, %242 : vector<16x32xf32>
    %c1_120 = arith.constant 1 : index
    %c0_121 = arith.constant 0 : index
    %c0_122 = arith.constant 0 : index
    %361 = vector.load %arg11[%c1_120, %c0_121, %c0_122] : memref<2x1x32xf32, #tpu.memory_space<vmem>>, vector<1x1x32xf32>
    %362 = vector.shape_cast %361 : vector<1x1x32xf32> to vector<1x32xf32>
    %c1_123 = arith.constant 1 : index
    %c0_124 = arith.constant 0 : index
    %c0_125 = arith.constant 0 : index
    %363 = vector.load %arg12[%c1_123, %c0_124, %c0_125] : memref<2x1x32xf32, #tpu.memory_space<vmem>>, vector<1x1x32xf32>
    %364 = vector.shape_cast %363 : vector<1x1x32xf32> to vector<1x32xf32>
    %cst_126 = arith.constant dense<0.000000e+00> : vector<16xf32>
    %365 = vector.multi_reduction <add>, %360, %cst_126 [1] : vector<16x32xf32> to vector<16xf32>
    %366 = vector.shape_cast %365 : vector<16xf32> to vector<16x1xf32>
    %cst_127 = arith.constant 3.200000e+01 : f32
    %367 = vector.broadcast %cst_127 : f32 to vector<16x1xf32>
    %368 = arith.divf %366, %367 : vector<16x1xf32>
    %369 = vector.broadcast %368 : vector<16x1xf32> to vector<16x32xf32>
    %370 = arith.subf %360, %369 : vector<16x32xf32>
    %371 = arith.mulf %370, %370 : vector<16x32xf32>
    %cst_128 = arith.constant dense<0.000000e+00> : vector<16xf32>
    %372 = vector.multi_reduction <add>, %371, %cst_128 [1] : vector<16x32xf32> to vector<16xf32>
    %373 = vector.shape_cast %372 : vector<16xf32> to vector<16x1xf32>
    %cst_129 = arith.constant 3.200000e+01 : f32
    %374 = vector.broadcast %cst_129 : f32 to vector<16x1xf32>
    %375 = arith.divf %373, %374 : vector<16x1xf32>
    %376 = vector.broadcast %368 : vector<16x1xf32> to vector<16x32xf32>
    %377 = arith.subf %360, %376 : vector<16x32xf32>
    %cst_130 = arith.constant 9.99999996E-13 : f32
    %378 = vector.broadcast %cst_130 : f32 to vector<16x1xf32>
    %379 = arith.addf %375, %378 : vector<16x1xf32>
    %380 = math.rsqrt %379 : vector<16x1xf32>
    %381 = vector.broadcast %380 : vector<16x1xf32> to vector<16x32xf32>
    %382 = arith.mulf %377, %381 : vector<16x32xf32>
    %383 = vector.broadcast %362 : vector<1x32xf32> to vector<16x32xf32>
    %384 = arith.mulf %382, %383 : vector<16x32xf32>
    %385 = vector.broadcast %364 : vector<1x32xf32> to vector<16x32xf32>
    %386 = arith.addf %384, %385 : vector<16x32xf32>
    %c1_131 = arith.constant 1 : index
    %c0_132 = arith.constant 0 : index
    %c0_133 = arith.constant 0 : index
    %387 = vector.load %arg13[%c1_131, %c0_132, %c0_133] : memref<2x32x64xbf16, #tpu.memory_space<vmem>>, vector<1x32x64xbf16>
    %388 = vector.shape_cast %387 : vector<1x32x64xbf16> to vector<32x64xbf16>
    %389 = arith.truncf %386 : vector<16x32xf32> to vector<16x32xbf16>
    %cst_134 = arith.constant dense<0.000000e+00> : vector<16x64xf32>
    %390 = tpu.matmul %389, %388, %cst_134 {dimension_numbers = #tpu.dot_dimension_numbers<[1], [0], [0], [1], [0, 0, 1, 1], [], []>} : vector<16x32xbf16>, vector<32x64xbf16>, vector<16x64xf32> -> vector<16x64xf32>
    %c1_135 = arith.constant 1 : index
    %c0_136 = arith.constant 0 : index
    %c0_137 = arith.constant 0 : index
    %391 = vector.load %arg14[%c1_135, %c0_136, %c0_137] : memref<2x1x64xf32, #tpu.memory_space<vmem>>, vector<1x1x64xf32>
    %392 = vector.shape_cast %391 : vector<1x1x64xf32> to vector<1x64xf32>
    %393 = vector.broadcast %392 : vector<1x64xf32> to vector<16x64xf32>
    %394 = arith.addf %390, %393 : vector<16x64xf32>
    %395 = arith.mulf %394, %394 : vector<16x64xf32>
    %396 = arith.mulf %394, %395 : vector<16x64xf32>
    %cst_138 = arith.constant 4.471500e-02 : f32
    %397 = vector.broadcast %cst_138 : f32 to vector<16x64xf32>
    %398 = arith.mulf %397, %396 : vector<16x64xf32>
    %399 = arith.addf %394, %398 : vector<16x64xf32>
    %cst_139 = arith.constant 0.797884583 : f32
    %400 = vector.broadcast %cst_139 : f32 to vector<16x64xf32>
    %401 = arith.mulf %400, %399 : vector<16x64xf32>
    %402 = math.tanh %401 : vector<16x64xf32>
    %cst_140 = arith.constant 1.000000e+00 : f32
    %403 = vector.broadcast %cst_140 : f32 to vector<16x64xf32>
    %404 = arith.addf %403, %402 : vector<16x64xf32>
    %cst_141 = arith.constant 5.000000e-01 : f32
    %405 = vector.broadcast %cst_141 : f32 to vector<16x64xf32>
    %406 = arith.mulf %405, %404 : vector<16x64xf32>
    %407 = arith.mulf %394, %406 : vector<16x64xf32>
    %c1_142 = arith.constant 1 : index
    %c0_143 = arith.constant 0 : index
    %c0_144 = arith.constant 0 : index
    %408 = vector.load %arg15[%c1_142, %c0_143, %c0_144] : memref<2x64x32xbf16, #tpu.memory_space<vmem>>, vector<1x64x32xbf16>
    %409 = vector.shape_cast %408 : vector<1x64x32xbf16> to vector<64x32xbf16>
    %410 = arith.truncf %407 : vector<16x64xf32> to vector<16x64xbf16>
    %cst_145 = arith.constant dense<0.000000e+00> : vector<16x32xf32>
    %411 = tpu.matmul %410, %409, %cst_145 {dimension_numbers = #tpu.dot_dimension_numbers<[1], [0], [0], [1], [0, 0, 1, 1], [], []>} : vector<16x64xbf16>, vector<64x32xbf16>, vector<16x32xf32> -> vector<16x32xf32>
    %c1_146 = arith.constant 1 : index
    %c0_147 = arith.constant 0 : index
    %c0_148 = arith.constant 0 : index
    %412 = vector.load %arg16[%c1_146, %c0_147, %c0_148] : memref<2x1x32xf32, #tpu.memory_space<vmem>>, vector<1x1x32xf32>
    %413 = vector.shape_cast %412 : vector<1x1x32xf32> to vector<1x32xf32>
    %414 = vector.broadcast %413 : vector<1x32xf32> to vector<16x32xf32>
    %415 = arith.addf %411, %414 : vector<16x32xf32>
    %416 = arith.addf %415, %386 : vector<16x32xf32>
    %c1_149 = arith.constant 1 : index
    %c0_150 = arith.constant 0 : index
    %c0_151 = arith.constant 0 : index
    %417 = vector.load %arg17[%c1_149, %c0_150, %c0_151] : memref<2x1x32xf32, #tpu.memory_space<vmem>>, vector<1x1x32xf32>
    %418 = vector.shape_cast %417 : vector<1x1x32xf32> to vector<1x32xf32>
    %c1_152 = arith.constant 1 : index
    %c0_153 = arith.constant 0 : index
    %c0_154 = arith.constant 0 : index
    %419 = vector.load %arg18[%c1_152, %c0_153, %c0_154] : memref<2x1x32xf32, #tpu.memory_space<vmem>>, vector<1x1x32xf32>
    %420 = vector.shape_cast %419 : vector<1x1x32xf32> to vector<1x32xf32>
    %cst_155 = arith.constant dense<0.000000e+00> : vector<16xf32>
    %421 = vector.multi_reduction <add>, %416, %cst_155 [1] : vector<16x32xf32> to vector<16xf32>
    %422 = vector.shape_cast %421 : vector<16xf32> to vector<16x1xf32>
    %cst_156 = arith.constant 3.200000e+01 : f32
    %423 = vector.broadcast %cst_156 : f32 to vector<16x1xf32>
    %424 = arith.divf %422, %423 : vector<16x1xf32>
    %425 = vector.broadcast %424 : vector<16x1xf32> to vector<16x32xf32>
    %426 = arith.subf %416, %425 : vector<16x32xf32>
    %427 = arith.mulf %426, %426 : vector<16x32xf32>
    %cst_157 = arith.constant dense<0.000000e+00> : vector<16xf32>
    %428 = vector.multi_reduction <add>, %427, %cst_157 [1] : vector<16x32xf32> to vector<16xf32>
    %429 = vector.shape_cast %428 : vector<16xf32> to vector<16x1xf32>
    %cst_158 = arith.constant 3.200000e+01 : f32
    %430 = vector.broadcast %cst_158 : f32 to vector<16x1xf32>
    %431 = arith.divf %429, %430 : vector<16x1xf32>
    %432 = vector.broadcast %424 : vector<16x1xf32> to vector<16x32xf32>
    %433 = arith.subf %416, %432 : vector<16x32xf32>
    %cst_159 = arith.constant 9.99999996E-13 : f32
    %434 = vector.broadcast %cst_159 : f32 to vector<16x1xf32>
    %435 = arith.addf %431, %434 : vector<16x1xf32>
    %436 = math.rsqrt %435 : vector<16x1xf32>
    %437 = vector.broadcast %436 : vector<16x1xf32> to vector<16x32xf32>
    %438 = arith.mulf %433, %437 : vector<16x32xf32>
    %439 = vector.broadcast %418 : vector<1x32xf32> to vector<16x32xf32>
    %440 = arith.mulf %438, %439 : vector<16x32xf32>
    %441 = vector.broadcast %420 : vector<1x32xf32> to vector<16x32xf32>
    %442 = arith.addf %440, %441 : vector<16x32xf32>
    %443 = vector.shape_cast %442 : vector<16x32xf32> to vector<2x8x32xf32>
    %c0_160 = arith.constant 0 : index
    %c0_161 = arith.constant 0 : index
    %c0_162 = arith.constant 0 : index
    %444 = vector.load %arg25[%c0_160, %c0_161, %c0_162] : memref<2x8x32xf32, #tpu.memory_space<vmem>>, vector<2x8x32xf32>
    tpu.vector_store %arg25[%c0_160, %c0_161, %c0_162], %443 {strides = array<i32>} : memref<2x8x32xf32, #tpu.memory_space<vmem>>, vector<2x8x32xf32>,
    %445 = vector.extract_strided_slice %442 {offsets = [0, 0], sizes = [1, 32], strides = [1, 1]} : vector<16x32xf32> to vector<1x32xf32>
    %446 = vector.extract_strided_slice %442 {offsets = [8, 0], sizes = [1, 32], strides = [1, 1]} : vector<16x32xf32> to vector<1x32xf32>
    %447 = tpu.concatenate %445, %446 in 0 : vector<1x32xf32>, vector<1x32xf32> -> vector<2x32xf32>
    %c0_163 = arith.constant 0 : index
    %c0_164 = arith.constant 0 : index
    %448 = vector.load %arg19[%c0_163, %c0_164] : memref<32x32xbf16, #tpu.memory_space<vmem>>, vector<32x32xbf16>
    %449 = arith.truncf %447 : vector<2x32xf32> to vector<2x32xbf16>
    %cst_165 = arith.constant dense<0.000000e+00> : vector<2x32xf32>
    %450 = tpu.matmul %449, %448, %cst_165 {dimension_numbers = #tpu.dot_dimension_numbers<[1], [0], [0], [1], [0, 0, 1, 1], [], []>} : vector<2x32xbf16>, vector<32x32xbf16>, vector<2x32xf32> -> vector<2x32xf32>
    %c0_166 = arith.constant 0 : index
    %c0_167 = arith.constant 0 : index
    %451 = vector.load %arg20[%c0_166, %c0_167] : memref<1x32xf32, #tpu.memory_space<vmem>>, vector<1x32xf32>
    %452 = vector.broadcast %451 : vector<1x32xf32> to vector<2x32xf32>
    %453 = arith.addf %450, %452 : vector<2x32xf32>
    %454 = math.tanh %453 : vector<2x32xf32>
    %c0_168 = arith.constant 0 : index
    %c0_169 = arith.constant 0 : index
    %455 = vector.load %arg26[%c0_168, %c0_169] : memref<2x32xf32, #tpu.memory_space<vmem>>, vector<2x32xf32>
    tpu.vector_store %arg26[%c0_168, %c0_169], %454 {strides = array<i32>} : memref<2x32xf32, #tpu.memory_space<vmem>>, vector<2x32xf32>,
    %c0_170 = arith.constant 0 : index
    %c0_171 = arith.constant 0 : index
    %456 = vector.load %arg21[%c0_170, %c0_171] : memref<32x32xbf16, #tpu.memory_space<vmem>>, vector<32x32xbf16>
    %457 = arith.truncf %454 : vector<2x32xf32> to vector<2x32xbf16>
    %cst_172 = arith.constant dense<0.000000e+00> : vector<2x32xf32>
    %458 = tpu.matmul %457, %456, %cst_172 {dimension_numbers = #tpu.dot_dimension_numbers<[1], [0], [0], [1], [0, 0, 1, 1], [], []>} : vector<2x32xbf16>, vector<32x32xbf16>, vector<2x32xf32> -> vector<2x32xf32>
    %c0_173 = arith.constant 0 : index
    %c0_174 = arith.constant 0 : index
    %459 = vector.load %arg22[%c0_173, %c0_174] : memref<1x32xf32, #tpu.memory_space<vmem>>, vector<1x32xf32>
    %460 = vector.broadcast %459 : vector<1x32xf32> to vector<2x32xf32>
    %461 = arith.addf %458, %460 : vector<2x32xf32>
    %462 = math.tanh %461 : vector<2x32xf32>
    %c0_175 = arith.constant 0 : index
    %c0_176 = arith.constant 0 : index
    %463 = vector.load %arg23[%c0_175, %c0_176] : memref<32x128xbf16, #tpu.memory_space<vmem>>, vector<32x128xbf16>
    %464 = arith.truncf %462 : vector<2x32xf32> to vector<2x32xbf16>
    %cst_177 = arith.constant dense<0.000000e+00> : vector<2x128xf32>
    %465 = tpu.matmul %464, %463, %cst_177 {dimension_numbers = #tpu.dot_dimension_numbers<[1], [0], [0], [1], [0, 0, 1, 1], [], []>} : vector<2x32xbf16>, vector<32x128xbf16>, vector<2x128xf32> -> vector<2x128xf32>
    %c0_178 = arith.constant 0 : index
    %c0_179 = arith.constant 0 : index
    %466 = vector.load %arg24[%c0_178, %c0_179] : memref<1x128xf32, #tpu.memory_space<vmem>>, vector<1x128xf32>
    %467 = vector.broadcast %466 : vector<1x128xf32> to vector<2x128xf32>
    %468 = arith.addf %465, %467 : vector<2x128xf32>
    %c0_180 = arith.constant 0 : index
    %c0_181 = arith.constant 0 : index
    %469 = vector.load %arg27[%c0_180, %c0_181] : memref<2x128xf32, #tpu.memory_space<vmem>>, vector<2x128xf32>
    tpu.vector_store %arg27[%c0_180, %c0_181], %468 {strides = array<i32>} : memref<2x128xf32, #tpu.memory_space<vmem>>, vector<2x128xf32>,
    return
  }
}

</mosaic_0001>

<llo_original>
// kernel: bert_forward.1
$region0: #{bert_forward.1}
  #allocation0 [shape = 'u32[]', space=smem, size = 0x4, offset = 0x4, fixed_abs, tag = 'smem constant byte address 0x4 - core index']
  #allocation1 [shape = 'u32[144,128]{1,0:T(1,128)}', space=vmem, size = 0x12000, scoped, tag = 'internal scratch']
  %s0 = inlined_call_operand.vmem [shape: s32[16,1], index: 0, kind: input, shape index: {}]
  %s1 = inlined_call_operand.vmem [shape: f32[2,1,8], index: 1, kind: input, shape index: {}]
  %s2 = inlined_call_operand.vmem [shape: f32[128,32], index: 2, kind: input, shape index: {}]
  %s3 = inlined_call_operand.vmem [shape: f32[32,32], index: 3, kind: input, shape index: {}]
  %s4 = inlined_call_operand.vmem [shape: f32[1,32], index: 4, kind: input, shape index: {}]
  %s5 = inlined_call_operand.vmem [shape: f32[1,32], index: 5, kind: input, shape index: {}]
  %s6 = inlined_call_operand.vmem [shape: f32[1,32], index: 6, kind: input, shape index: {}]
  %s7 = inlined_call_operand.vmem [shape: bf16[2,32,96], index: 7, kind: input, shape index: {}]
  %s8 = inlined_call_operand.vmem [shape: f32[2,1,96], index: 8, kind: input, shape index: {}]
  %s9 = inlined_call_operand.vmem [shape: bf16[2,32,32], index: 9, kind: input, shape index: {}]
  %s10 = inlined_call_operand.vmem [shape: f32[2,1,32], index: 10, kind: input, shape index: {}]
  %s11 = inlined_call_operand.vmem [shape: f32[2,1,32], index: 11, kind: input, shape index: {}]
  %s12 = inlined_call_operand.vmem [shape: f32[2,1,32], index: 12, kind: input, shape index: {}]
  %s13 = inlined_call_operand.vmem [shape: bf16[2,32,64], index: 13, kind: input, shape index: {}]
  %s14 = inlined_call_operand.vmem [shape: f32[2,1,64], index: 14, kind: input, shape index: {}]
  %s15 = inlined_call_operand.vmem [shape: bf16[2,64,32], index: 15, kind: input, shape index: {}]
  %s16 = inlined_call_operand.vmem [shape: f32[2,1,32], index: 16, kind: input, shape index: {}]
  %s17 = inlined_call_operand.vmem [shape: f32[2,1,32], index: 17, kind: input, shape index: {}]
  %s18 = inlined_call_operand.vmem [shape: f32[2,1,32], index: 18, kind: input, shape index: {}]
  %s19 = inlined_call_operand.vmem [shape: bf16[32,32], index: 19, kind: input, shape index: {}]
  %s20 = inlined_call_operand.vmem [shape: f32[1,32], index: 20, kind: input, shape index: {}]
  %s21 = inlined_call_operand.vmem [shape: bf16[32,32], index: 21, kind: input, shape index: {}]
  %s22 = inlined_call_operand.vmem [shape: f32[1,32], index: 22, kind: input, shape index: {}]
  %s23 = inlined_call_operand.vmem [shape: bf16[32,128], index: 23, kind: input, shape index: {}]
  %s24 = inlined_call_operand.vmem [shape: f32[1,128], index: 24, kind: input, shape index: {}]
  %s25 = inlined_call_operand.hbm [shape: f32[2,8,32], index: 25, kind: output, shape index: {0}]
  %s26 = inlined_call_operand.hbm [shape: f32[2,32], index: 26, kind: output, shape index: {1}]
  %s27 = inlined_call_operand.hbm [shape: f32[2,128], index: 27, kind: output, shape index: {2}]
  %28 = xla_tuple %s25, %s26, %s27
  %s29 = sld [smem:[#allocation0]]
  $region126: #{bert_forward.1} parent=0
    _
  %s31 = ssub.s32 1, %s29
  %s32 = scalar_select 0, %s31, %s29
  $region1: #{bert_forward.1} parent=0
    #allocation2 [shape = 'u8[8192]{0}', space=vmem, size = 0x2000, scoped, tag = 'output window, operand 0, single buffered']
    #allocation3 [shape = 's32[1]{0}', space=sflag, size = 0x4, scoped, tag = 'scoped memory for bert_forward.1']
    #allocation4 [shape = 'u8[1024]{0}', space=vmem, size = 0x400, scoped, tag = 'output window, operand 1, single buffered']
    #allocation5 [shape = 's32[1]{0}', space=sflag, size = 0x4, scoped, tag = 'scoped memory for bert_forward.1']
    #allocation6 [shape = 'u8[1024]{0}', space=vmem, size = 0x400, scoped, tag = 'output window, operand 2, single buffered']
    %33 = vsyncpa [#allocation3], 0
    %34 = vsyncpa [#allocation5], 0
    // Predicated region
    $region2: #{bert_forward.1} parent=1 // pred_check
      _
    $region3: #{bert_forward.1} parent=1 // pred_check_branch
      %36 = sbr.rel (0) target = $region5
    $region4: #{bert_forward.1} parent=1 // pred_region
      _
    $region5: #{bert_forward.1} parent=1 // pred_fallthru
      _
    // Predicated region
    $region6: #{bert_forward.1} parent=1 // pred_check
      _
    $region7: #{bert_forward.1} parent=1 // pred_check_branch
      %38 = sbr.rel (0) target = $region9
    $region8: #{bert_forward.1} parent=1 // pred_region
      _
    $region9: #{bert_forward.1} parent=1 // pred_fallthru
      _
    // Predicated region
    $region10: #{bert_forward.1} parent=1 // pred_check
      _
    $region11: #{bert_forward.1} parent=1 // pred_check_branch
      %40 = sbr.rel (0) target = $region13
    $region12: #{bert_forward.1} parent=1 // pred_region
      _
    $region13: #{bert_forward.1} parent=1 // pred_fallthru
      _
    // Predicated region
    $region14: #{bert_forward.1} parent=1 // pred_check
      _
    $region15: #{bert_forward.1} parent=1 // pred_check_branch
      %42 = sbr.rel (0) target = $region17
    $region16: #{bert_forward.1} parent=1 // pred_region
      _
    $region17: #{bert_forward.1} parent=1 // pred_fallthru
      _
    // Predicated region
    $region18: #{bert_forward.1} parent=1 // pred_check
      _
    $region19: #{bert_forward.1} parent=1 // pred_check_branch
      %44 = sbr.rel (0) target = $region21
    $region20: #{bert_forward.1} parent=1 // pred_region
      _
    $region21: #{bert_forward.1} parent=1 // pred_fallthru
      _
    // Predicated region
    $region22: #{bert_forward.1} parent=1 // pred_check
      _
    $region23: #{bert_forward.1} parent=1 // pred_check_branch
      %46 = sbr.rel (0) target = $region25
    $region24: #{bert_forward.1} parent=1 // pred_region
      _
    $region25: #{bert_forward.1} parent=1 // pred_fallthru
      _
    // Predicated region
    $region26: #{bert_forward.1} parent=1 // pred_check
      _
    $region27: #{bert_forward.1} parent=1 // pred_check_branch
      %48 = sbr.rel (0) target = $region29
    $region28: #{bert_forward.1} parent=1 // pred_region
      _
    $region29: #{bert_forward.1} parent=1 // pred_fallthru
      _
    // Predicated region
    $region30: #{bert_forward.1} parent=1 // pred_check
      _
    $region31: #{bert_forward.1} parent=1 // pred_check_branch
      %50 = sbr.rel (0) target = $region33
    $region32: #{bert_forward.1} parent=1 // pred_region
      _
    $region33: #{bert_forward.1} parent=1 // pred_fallthru
      _
    // Predicated region
    $region34: #{bert_forward.1} parent=1 // pred_check
      _
    $region35: #{bert_forward.1} parent=1 // pred_check_branch
      %52 = sbr.rel (0) target = $region37
    $region36: #{bert_forward.1} parent=1 // pred_region
      _
    $region37: #{bert_forward.1} parent=1 // pred_fallthru
      _
    // Predicated region
    $region38: #{bert_forward.1} parent=1 // pred_check
      _
    $region39: #{bert_forward.1} parent=1 // pred_check_branch
      %54 = sbr.rel (0) target = $region41
    $region40: #{bert_forward.1} parent=1 // pred_region
      _
    $region41: #{bert_forward.1} parent=1 // pred_fallthru
      _
    // Predicated region
    $region42: #{bert_forward.1} parent=1 // pred_check
      _
    $region43: #{bert_forward.1} parent=1 // pred_check_branch
      %56 = sbr.rel (0) target = $region45
    $region44: #{bert_forward.1} parent=1 // pred_region
      _
    $region45: #{bert_forward.1} parent=1 // pred_fallthru
      _
    // Predicated region
    $region46: #{bert_forward.1} parent=1 // pred_check
      _
    $region47: #{bert_forward.1} parent=1 // pred_check_branch
      %58 = sbr.rel (0) target = $region49
    $region48: #{bert_forward.1} parent=1 // pred_region
      _
    $region49: #{bert_forward.1} parent=1 // pred_fallthru
      _
    // Predicated region
    $region50: #{bert_forward.1} parent=1 // pred_check
      _
    $region51: #{bert_forward.1} parent=1 // pred_check_branch
      %60 = sbr.rel (0) target = $region53
    $region52: #{bert_forward.1} parent=1 // pred_region
      _
    $region53: #{bert_forward.1} parent=1 // pred_fallthru
      _
    // Predicated region
    $region54: #{bert_forward.1} parent=1 // pred_check
      _
    $region55: #{bert_forward.1} parent=1 // pred_check_branch
      %62 = sbr.rel (0) target = $region57
    $region56: #{bert_forward.1} parent=1 // pred_region
      _
    $region57: #{bert_forward.1} parent=1 // pred_fallthru
      _
    // Predicated region
    $region58: #{bert_forward.1} parent=1 // pred_check
      _
    $region59: #{bert_forward.1} parent=1 // pred_check_branch
      %64 = sbr.rel (0) target = $region61
    $region60: #{bert_forward.1} parent=1 // pred_region
      _
    $region61: #{bert_forward.1} parent=1 // pred_fallthru
      _
    // Predicated region
    $region62: #{bert_forward.1} parent=1 // pred_check
      _
    $region63: #{bert_forward.1} parent=1 // pred_check_branch
      %66 = sbr.rel (0) target = $region65
    $region64: #{bert_forward.1} parent=1 // pred_region
      _
    $region65: #{bert_forward.1} parent=1 // pred_fallthru
      _
    // Predicated region
    $region66: #{bert_forward.1} parent=1 // pred_check
      _
    $region67: #{bert_forward.1} parent=1 // pred_check_branch
      %68 = sbr.rel (0) target = $region69
    $region68: #{bert_forward.1} parent=1 // pred_region
      _
    $region69: #{bert_forward.1} parent=1 // pred_fallthru
      _
    // Predicated region
    $region70: #{bert_forward.1} parent=1 // pred_check
      _
    $region71: #{bert_forward.1} parent=1 // pred_check_branch
      %70 = sbr.rel (0) target = $region73
    $region72: #{bert_forward.1} parent=1 // pred_region
      _
    $region73: #{bert_forward.1} parent=1 // pred_fallthru
      _
    // Predicated region
    $region74: #{bert_forward.1} parent=1 // pred_check
      _
    $region75: #{bert_forward.1} parent=1 // pred_check_branch
      %72 = sbr.rel (0) target = $region77
    $region76: #{bert_forward.1} parent=1 // pred_region
      _
    $region77: #{bert_forward.1} parent=1 // pred_fallthru
      _
    // Predicated region
    $region78: #{bert_forward.1} parent=1 // pred_check
      _
    $region79: #{bert_forward.1} parent=1 // pred_check_branch
      %74 = sbr.rel (0) target = $region81
    $region80: #{bert_forward.1} parent=1 // pred_region
      _
    $region81: #{bert_forward.1} parent=1 // pred_fallthru
      _
    // Predicated region
    $region82: #{bert_forward.1} parent=1 // pred_check
      _
    $region83: #{bert_forward.1} parent=1 // pred_check_branch
      %76 = sbr.rel (0) target = $region85
    $region84: #{bert_forward.1} parent=1 // pred_region
      _
    $region85: #{bert_forward.1} parent=1 // pred_fallthru
      _
    // Predicated region
    $region86: #{bert_forward.1} parent=1 // pred_check
      _
    $region87: #{bert_forward.1} parent=1 // pred_check_branch
      %78 = sbr.rel (0) target = $region89
    $region88: #{bert_forward.1} parent=1 // pred_region
      _
    $region89: #{bert_forward.1} parent=1 // pred_fallthru
      _
    // Predicated region
    $region90: #{bert_forward.1} parent=1 // pred_check
      _
    $region91: #{bert_forward.1} parent=1 // pred_check_branch
      %80 = sbr.rel (0) target = $region93
    $region92: #{bert_forward.1} parent=1 // pred_region
      _
    $region93: #{bert_forward.1} parent=1 // pred_fallthru
      _
    // Predicated region
    $region94: #{bert_forward.1} parent=1 // pred_check
      _
    $region95: #{bert_forward.1} parent=1 // pred_check_branch
      %82 = sbr.rel (0) target = $region97
    $region96: #{bert_forward.1} parent=1 // pred_region
      _
    $region97: #{bert_forward.1} parent=1 // pred_fallthru
      _
    // Predicated region
    $region98: #{bert_forward.1} parent=1 // pred_check
      _
    $region99: #{bert_forward.1} parent=1 // pred_check_branch
      %84 = sbr.rel (0) target = $region101
    $region100: #{bert_forward.1} parent=1 // pred_region
      _
    $region101: #{bert_forward.1} parent=1 // pred_fallthru
      _
    %v86 = vld [vmem:[%s0] sm:$0xff]
    %v87 = vld [vmem:[%s0 + $0x8] sm:$0xff]
    %v88 = vlaneseq
    %v89 = vand.u32 %v88, 127
    %90 = vset.pattern.permute.xlu0 0
    %91 = vperm.xlu0 %90, %v86
    %v92 = vpop.permute.xlu0 %91
    %93 = vset.pattern.permute.xlu0 0
    %94 = vperm.xlu0 %93, %v87
    %v95 = vpop.permute.xlu0 %94
    %vm96 = vcmp.eq.s32.totalorder %v89, %v92
    %vm97 = vcmp.eq.s32.totalorder %v89, %v95
    %v98 = vsel %vm96, 1, 0
    %v99 = vsel %vm97, 1, 0
    %v100 = vcvt.s32.f32 %v98
    %v101 = vcvt.s32.f32 %v99
    %v102 = vld [vmem:[%s2] sm:$0xff]
    %v103 = vld [vmem:[%s2 + $0x8] sm:$0xff]
    %v104 = vld [vmem:[%s2 + $0x10] sm:$0xff]
    %v105 = vld [vmem:[%s2 + $0x18] sm:$0xff]
    %v106 = vld [vmem:[%s2 + $0x20] sm:$0xff]
    %v107 = vld [vmem:[%s2 + $0x28] sm:$0xff]
    %v108 = vld [vmem:[%s2 + $0x30] sm:$0xff]
    %v109 = vld [vmem:[%s2 + $0x38] sm:$0xff]
    %v110 = vld [vmem:[%s2 + $0x40] sm:$0xff]
    %v111 = vld [vmem:[%s2 + $0x48] sm:$0xff]
    %v112 = vld [vmem:[%s2 + $0x50] sm:$0xff]
    %v113 = vld [vmem:[%s2 + $0x58] sm:$0xff]
    %v114 = vld [vmem:[%s2 + $0x60] sm:$0xff]
    %v115 = vld [vmem:[%s2 + $0x68] sm:$0xff]
    %v116 = vld [vmem:[%s2 + $0x70] sm:$0xff]
    %v117 = vld [vmem:[%s2 + $0x78] sm:$0xff]
    %v118 = vld [vmem:[%s3] sm:$0xff]
    %119 = vmatprep.subr.mxu0 0.0
    %120 = vmatpush1.msra.mxu0 %v102
    %121 = vmatprep.subr.mxu0 0.0
    %122 = vmatpush1.msra.mxu0 %v103
    %123 = vmatprep.subr.mxu0 0.0
    %124 = vmatpush1.msra.mxu0 %v104
    %125 = vmatprep.subr.mxu0 0.0
    %126 = vmatpush1.msra.mxu0 %v105
    %127 = vmatprep.subr.mxu0 0.0
    %128 = vmatpush1.msra.mxu0 %v106
    %129 = vmatprep.subr.mxu0 0.0
    %130 = vmatpush1.msra.mxu0 %v107
    %131 = vmatprep.subr.mxu0 0.0
    %132 = vmatpush1.msra.mxu0 %v108
    %133 = vmatprep.subr.mxu0 0.0
    %134 = vmatpush1.msra.mxu0 %v109
    %135 = vmatprep.subr.mxu0 0.0
    %136 = vmatpush1.msra.mxu0 %v110
    %137 = vmatprep.subr.mxu0 0.0
    %138 = vmatpush1.msra.mxu0 %v111
    %139 = vmatprep.subr.mxu0 0.0
    %140 = vmatpush1.msra.mxu0 %v112
    %141 = vmatprep.subr.mxu0 0.0
    %142 = vmatpush1.msra.mxu0 %v113
    %143 = vmatprep.subr.mxu0 0.0
    %144 = vmatpush1.msra.mxu0 %v114
    %145 = vmatprep.subr.mxu0 0.0
    %146 = vmatpush1.msra.mxu0 %v115
    %147 = vmatprep.subr.mxu0 0.0
    %148 = vmatpush1.msra.mxu0 %v116
    %149 = vmatprep.subr.mxu0 0.0
    %150 = vmatpush1.msra.mxu0 %v117
    %151 = vmatprep.subr.mxu0 0.0
    %152 = vmatpush1.msra.mxu0 0.0
    %153 = vmatprep.subr.mxu0 0.0
    %154 = vmatpush1.msra.mxu0 0.0
    %155 = vmatprep.subr.mxu0 0.0
    %156 = vmatpush1.msra.mxu0 0.0
    %157 = vmatprep.subr.mxu0 0.0
    %158 = vmatpush1.msra.mxu0 0.0
    %159 = vmatprep.subr.mxu0 0.0
    %160 = vmatpush1.msra.mxu0 0.0
    %161 = vmatprep.subr.mxu0 0.0
    %162 = vmatpush1.msra.mxu0 0.0
    %163 = vmatprep.subr.mxu0 0.0
    %164 = vmatpush1.msra.mxu0 0.0
    %165 = vmatprep.subr.mxu0 0.0
    %166 = vmatpush1.msra.mxu0 0.0
    %167 = vmatprep.subr.mxu0 0.0
    %168 = vmatpush1.msra.mxu0 0.0
    %169 = vmatprep.subr.mxu0 0.0
    %170 = vmatpush1.msra.mxu0 0.0
    %171 = vmatprep.subr.mxu0 0.0
    %172 = vmatpush1.msra.mxu0 0.0
    %173 = vmatprep.subr.mxu0 0.0
    %174 = vmatpush1.msra.mxu0 0.0
    %175 = vmatprep.subr.mxu0 0.0
    %176 = vmatpush1.msra.mxu0 0.0
    %177 = vmatprep.subr.mxu0 0.0
    %178 = vmatpush1.msra.mxu0 0.0
    %179 = vmatprep.subr.mxu0 0.0
    %180 = vmatpush1.msra.mxu0 0.0
    %181 = vmatprep.subr.mxu0 0.0
    %182 = vmatpush1.msra.mxu0 0.0
    %183 = vmatprep.mubr.f32.mxu0 0.0
    %184 = vmatmul.mubr.f32.gmra.mrb[0].mxu0 %v100
    %v185 = vpop.f32.mrb[0].mxu0
    %v186 = vadd.f32 %v118, %v185
    %v187 = vpop.f32.mrb[0].mxu0
    %188 = vmatprep.mubr.f32.mxu0 0.0
    %189 = vmatmul.mubr.f32.gmra.mrb[0].mxu0 %v101
    %v190 = vpop.f32.mrb[0].mxu0
    %v191 = vadd.f32 %v118, %v190
    %v192 = vpop.f32.mrb[0].mxu0
    %193 = vdwg.mxu0
    %v194 = vld [vmem:[%s4] sm:$0x1]
    %v196 = vlaneseq
    %v197 = vshrl.u32 %v196, 7
    %v198 = vsub.s32 0, %v197
    %v199 = vrot.slane %v194, %v198
    %v201 = vadd.f32 %v186, %v199
    %v202 = vadd.f32 %v191, %v199
    %v203 = vld [vmem:[%s5] sm:$0x1]
    %v204 = vld [vmem:[%s6] sm:$0x1]
    %vm205 = vcmask 261120
    %v206 = vsel %vm205, %v201, 0.0
    %207 = vadd.xlane.f32.xlu0 %v206
    %v208 = vpop.xlane.xlu0 %207
    %v209 = vsel %vm205, %v202, 0.0
    %210 = vadd.xlane.f32.xlu0 %v209
    %v211 = vpop.xlane.xlu0 %210
    %v212 = vrcp.pop 32.0
    %v213 = vmul.f32 %v208, %v212
    %v214 = vmul.f32 %v211, %v212
    %v215 = vsub.f32 %v201, %v213
    %v216 = vsub.f32 %v202, %v214
    %v217 = vmul.f32 %v215, %v215
    %v218 = vmul.f32 %v216, %v216
    %v219 = vsel %vm205, %v217, 0.0
    %220 = vadd.xlane.f32.xlu0 %v219
    %v221 = vpop.xlane.xlu0 %220
    %v222 = vsel %vm205, %v218, 0.0
    %223 = vadd.xlane.f32.xlu0 %v222
    %v224 = vpop.xlane.xlu0 %223
    %v225 = vmul.f32 %v221, %v212
    %v226 = vmul.f32 %v224, %v212
    %v227 = vadd.f32 %v225, 1e-12
    %v228 = vadd.f32 %v226, 1e-12
    %v229 = vrsqrt.pop %v227
    %v230 = vrsqrt.pop %v228
    %v231 = vmul.f32 %v215, %v229
    %v232 = vmul.f32 %v216, %v230
    %v234 = vlaneseq
    %v235 = vshrl.u32 %v234, 7
    %v236 = vsub.s32 0, %v235
    %v237 = vrot.slane %v203, %v236
    %v239 = vmul.f32 %v231, %v237
    %v240 = vmul.f32 %v232, %v237
    %v242 = vlaneseq
    %v243 = vshrl.u32 %v242, 7
    %v244 = vsub.s32 0, %v243
    %v245 = vrot.slane %v204, %v244
    %v247 = vadd.f32 %v239, %v245
    %v248 = vadd.f32 %v240, %v245
    %v249 = vld [vmem:[%s1] sm:$0x1]
    %v250 = vld [vmem:[%s1 + $0x1] sm:$0x1]
    %v251 = vsub.f32 1.0, %v249
    %v252 = vsub.f32 1.0, %v250
    %v253 = vmul.f32 %v251, -10000.0
    %v254 = vmul.f32 %v252, -10000.0
    %v255 = vld [vmem:[%s7] sm:$0xf]
    %v256 = vld [vmem:[%s7 + $0x4] sm:$0xf]
    %v257 = vld [vmem:[%s7 + $0x8] sm:$0xf]
    %v258 = vld [vmem:[%s7 + $0xc] sm:$0xf]
    %v259 = vpack.c.bf16 %v248, %v247
    %v260 = vld [vmem:[%s8] sm:$0x1]
    %v262 = vlaneseq
    %v263 = vshrl.u32 %v262, 7
    %v264 = vsub.s32 0, %v263
    %v265 = vrot.slane %v260, %v264
    %v271 = vunpack.c.l.b16 %v255
    %v272 = vunpack.c.l.b16 %v256
    %v273 = vunpack.c.l.b16 %v257
    %v274 = vunpack.c.l.b16 %v258
    %v275 = vpack.c.b16 %v272, %v271
    %v276 = vpack.c.b16 %v274, %v273
    %v280 = vsel %vm205, %v259, 0
    %282 = vmatprep.subr.bf16.mxu0 0
    %283 = vmatpush1.bf16.msra.mxu0 %v275
    %284 = vmatprep.subr.bf16.mxu0 0
    %285 = vmatpush1.bf16.msra.mxu0 %v276
    %286 = vmatprep.subr.bf16.mxu0 0
    %287 = vmatpush1.bf16.msra.mxu0 0
    %288 = vmatprep.subr.bf16.mxu0 0
    %289 = vmatpush1.bf16.msra.mxu0 0
    %290 = vmatprep.subr.bf16.mxu0 0
    %291 = vmatpush1.bf16.msra.mxu0 0
    %292 = vmatprep.subr.bf16.mxu0 0
    %293 = vmatpush1.bf16.msra.mxu0 0
    %294 = vmatprep.subr.bf16.mxu0 0
    %295 = vmatpush1.bf16.msra.mxu0 0
    %296 = vmatprep.subr.bf16.mxu0 0
    %297 = vmatpush1.bf16.msra.mxu0 0
    %298 = vmatprep.subr.bf16.mxu0 0
    %299 = vmatpush1.bf16.msra.mxu0 0
    %300 = vmatprep.subr.bf16.mxu0 0
    %301 = vmatpush1.bf16.msra.mxu0 0
    %302 = vmatprep.subr.bf16.mxu0 0
    %303 = vmatpush1.bf16.msra.mxu0 0
    %304 = vmatprep.subr.bf16.mxu0 0
    %305 = vmatpush1.bf16.msra.mxu0 0
    %306 = vmatprep.subr.bf16.mxu0 0
    %307 = vmatpush1.bf16.msra.mxu0 0
    %308 = vmatprep.subr.bf16.mxu0 0
    %309 = vmatpush1.bf16.msra.mxu0 0
    %310 = vmatprep.subr.bf16.mxu0 0
    %311 = vmatpush1.bf16.msra.mxu0 0
    %312 = vmatprep.subr.bf16.mxu0 0
    %313 = vmatpush1.bf16.msra.mxu0 0
    %314 = vmatprep.mubr.bf16.mxu0 0
    %315 = vmatmul.mubr.bf16.gmra.mrb[0].mxu0 %v280
    %v316 = vpop.f32.mrb[0].mxu0
    %v317 = vadd.f32 %v265, %v316
    %v318 = vpop.f32.mrb[0].mxu0
    %v319 = vpop.f32.mrb[0].mxu0
    %v320 = vadd.f32 %v265, %v319
    %v321 = vpop.f32.mrb[0].mxu0
    %322 = vdwg.mxu0
    %v323 = vpack.c.bf16 %v317, %v317
    %v324 = vpack.c.bf16 %v320, %v320
    %v327 = vlaneseq
    %v328 = vshrl.u32 %v327, 7
    %v329 = vsub.s32 0, %v328
    %v330 = vrot.slane %v253, %v329
    %v331 = vlaneseq
    %v332 = vshrl.u32 %v331, 7
    %v333 = vsub.s32 0, %v332
    %v334 = vrot.slane %v254, %v333
    %338 = vrot.lane.b32.xlu0 %v323, 96
    %v339 = vpop.permute.xlu0 %338
    %vm340 = vcmask 64512
    %v342 = vsel %vm340, %v323, 0
    %v345 = vsel %vm340, %v339, 0
    %347 = vmatprep.subr.bf16.mxu0 0
    %348 = vmatpush1.bf16.xpose.msra.mxu0 %v345
    %349 = vmatprep.subr.bf16.mxu0 0
    %350 = vmatpush1.bf16.xpose.msra.mxu0 0
    %351 = vmatprep.subr.bf16.mxu0 0
    %352 = vmatpush1.bf16.xpose.msra.mxu0 0
    %353 = vmatprep.subr.bf16.mxu0 0
    %354 = vmatpush1.bf16.xpose.msra.mxu0 0
    %355 = vmatprep.subr.bf16.mxu0 0
    %356 = vmatpush1.bf16.xpose.msra.mxu0 0
    %357 = vmatprep.subr.bf16.mxu0 0
    %358 = vmatpush1.bf16.xpose.msra.mxu0 0
    %359 = vmatprep.subr.bf16.mxu0 0
    %360 = vmatpush1.bf16.xpose.msra.mxu0 0
    %361 = vmatprep.subr.bf16.mxu0 0
    %362 = vmatpush1.bf16.xpose.msra.mxu0 0
    %363 = vmatprep.subr.bf16.mxu0 0
    %364 = vmatpush1.bf16.xpose.msra.mxu0 0
    %365 = vmatprep.subr.bf16.mxu0 0
    %366 = vmatpush1.bf16.xpose.msra.mxu0 0
    %367 = vmatprep.subr.bf16.mxu0 0
    %368 = vmatpush1.bf16.xpose.msra.mxu0 0
    %369 = vmatprep.subr.bf16.mxu0 0
    %370 = vmatpush1.bf16.xpose.msra.mxu0 0
    %371 = vmatprep.subr.bf16.mxu0 0
    %372 = vmatpush1.bf16.xpose.msra.mxu0 0
    %373 = vmatprep.subr.bf16.mxu0 0
    %374 = vmatpush1.bf16.xpose.msra.mxu0 0
    %375 = vmatprep.subr.bf16.mxu0 0
    %376 = vmatpush1.bf16.xpose.msra.mxu0 0
    %377 = vmatprep.subr.bf16.mxu0 0
    %378 = vmatpush1.bf16.xpose.msra.mxu0 0
    %379 = vmatprep.mubr.bf16.mxu0 0
    %380 = vmatmul.mubr.bf16.gmra.mrb[0].mxu0 %v342
    %v381 = vpop.f32.mrb[0].mxu0
    %v382 = vadd.f32 %v330, %v381
    %v383 = vpop.f32.mrb[0].mxu0
    %v384 = vpop.f32.mrb[0].mxu0
    %v385 = vpop.f32.mrb[0].mxu0
    %386 = vdwg.mxu0
    %388 = vrot.lane.b32.xlu0 %v324, 96
    %v389 = vpop.permute.xlu0 %388
    %v391 = vsel %vm340, %v324, 0
    %v394 = vsel %vm340, %v389, 0
    %396 = vmatprep.subr.bf16.mxu0 0
    %397 = vmatpush1.bf16.xpose.msra.mxu0 %v394
    %398 = vmatprep.subr.bf16.mxu0 0
    %399 = vmatpush1.bf16.xpose.msra.mxu0 0
    %400 = vmatprep.subr.bf16.mxu0 0
    %401 = vmatpush1.bf16.xpose.msra.mxu0 0
    %402 = vmatprep.subr.bf16.mxu0 0
    %403 = vmatpush1.bf16.xpose.msra.mxu0 0
    %404 = vmatprep.subr.bf16.mxu0 0
    %405 = vmatpush1.bf16.xpose.msra.mxu0 0
    %406 = vmatprep.subr.bf16.mxu0 0
    %407 = vmatpush1.bf16.xpose.msra.mxu0 0
    %408 = vmatprep.subr.bf16.mxu0 0
    %409 = vmatpush1.bf16.xpose.msra.mxu0 0
    %410 = vmatprep.subr.bf16.mxu0 0
    %411 = vmatpush1.bf16.xpose.msra.mxu0 0
    %412 = vmatprep.subr.bf16.mxu0 0
    %413 = vmatpush1.bf16.xpose.msra.mxu0 0
    %414 = vmatprep.subr.bf16.mxu0 0
    %415 = vmatpush1.bf16.xpose.msra.mxu0 0
    %416 = vmatprep.subr.bf16.mxu0 0
    %417 = vmatpush1.bf16.xpose.msra.mxu0 0
    %418 = vmatprep.subr.bf16.mxu0 0
    %419 = vmatpush1.bf16.xpose.msra.mxu0 0
    %420 = vmatprep.subr.bf16.mxu0 0
    %421 = vmatpush1.bf16.xpose.msra.mxu0 0
    %422 = vmatprep.subr.bf16.mxu0 0
    %423 = vmatpush1.bf16.xpose.msra.mxu0 0
    %424 = vmatprep.subr.bf16.mxu0 0
    %425 = vmatpush1.bf16.xpose.msra.mxu0 0
    %426 = vmatprep.subr.bf16.mxu0 0
    %427 = vmatpush1.bf16.xpose.msra.mxu0 0
    %428 = vmatprep.mubr.bf16.mxu0 0
    %429 = vmatmul.mubr.bf16.gmra.mrb[0].mxu0 %v391
    %v430 = vpop.f32.mrb[0].mxu0
    %v431 = vadd.f32 %v334, %v430
    %v432 = vpop.f32.mrb[0].mxu0
    %v433 = vpop.f32.mrb[0].mxu0
    %v434 = vpop.f32.mrb[0].mxu0
    %435 = vdwg.mxu0
    %v436 = vsel %vm340, %v382, -inf
    %437 = vmax.xlane.f32.xlu0 %v436
    %v438 = vpop.xlane.xlu0 %437
    %v439 = vsel %vm340, %v431, -inf
    %440 = vmax.xlane.f32.xlu0 %v439
    %v441 = vpop.xlane.xlu0 %440
    %v442 = vsub.f32 %v382, %v438
    %v443 = vsub.f32 %v431, %v441
    %v444 = vmul.f32 %v442, 1.442695
    %v445 = vpow.pop %v444
    %v446 = vmul.f32 %v443, 1.442695
    %v447 = vpow.pop %v446
    %v448 = vsel %vm340, %v445, 0.0
    %449 = vadd.xlane.f32.xlu0 %v448
    %v450 = vpop.xlane.xlu0 %449
    %v451 = vsel %vm340, %v447, 0.0
    %452 = vadd.xlane.f32.xlu0 %v451
    %v453 = vpop.xlane.xlu0 %452
    %v454 = vrcp.pop %v450
    %v455 = vrcp.pop %v453
    %v456 = vmul.f32 %v445, %v454
    %v457 = vmul.f32 %v447, %v455
    %v458 = vpack.c.bf16 %v456, %v456
    %v459 = vpack.c.bf16 %v457, %v457
    %460 = vrot.lane.b32.xlu0 %v323, 64
    %v461 = vpop.permute.xlu0 %460
    %v463 = vsel %vm340, %v458, 0
    %vm465 = vcmask 1043456
    %v467 = vsel %vm465, %v461, 0
    %469 = vmatprep.subr.bf16.mxu0 0
    %470 = vmatpush1.bf16.msra.mxu0 %v467
    %471 = vmatprep.subr.bf16.mxu0 0
    %472 = vmatpush1.bf16.msra.mxu0 0
    %473 = vmatprep.subr.bf16.mxu0 0
    %474 = vmatpush1.bf16.msra.mxu0 0
    %475 = vmatprep.subr.bf16.mxu0 0
    %476 = vmatpush1.bf16.msra.mxu0 0
    %477 = vmatprep.subr.bf16.mxu0 0
    %478 = vmatpush1.bf16.msra.mxu0 0
    %479 = vmatprep.subr.bf16.mxu0 0
    %480 = vmatpush1.bf16.msra.mxu0 0
    %481 = vmatprep.subr.bf16.mxu0 0
    %482 = vmatpush1.bf16.msra.mxu0 0
    %483 = vmatprep.subr.bf16.mxu0 0
    %484 = vmatpush1.bf16.msra.mxu0 0
    %485 = vmatprep.subr.bf16.mxu0 0
    %486 = vmatpush1.bf16.msra.mxu0 0
    %487 = vmatprep.subr.bf16.mxu0 0
    %488 = vmatpush1.bf16.msra.mxu0 0
    %489 = vmatprep.subr.bf16.mxu0 0
    %490 = vmatpush1.bf16.msra.mxu0 0
    %491 = vmatprep.subr.bf16.mxu0 0
    %492 = vmatpush1.bf16.msra.mxu0 0
    %493 = vmatprep.subr.bf16.mxu0 0
    %494 = vmatpush1.bf16.msra.mxu0 0
    %495 = vmatprep.subr.bf16.mxu0 0
    %496 = vmatpush1.bf16.msra.mxu0 0
    %497 = vmatprep.subr.bf16.mxu0 0
    %498 = vmatpush1.bf16.msra.mxu0 0
    %499 = vmatprep.subr.bf16.mxu0 0
    %500 = vmatpush1.bf16.msra.mxu0 0
    %501 = vmatprep.mubr.bf16.mxu0 0
    %502 = vmatmul.mubr.bf16.gmra.mrb[0].mxu0 %v463
    %v503 = vpop.f32.mrb[0].mxu0
    %v504 = vadd.f32 0.0, %v503
    %v505 = vpop.f32.mrb[0].mxu0
    %v506 = vpop.f32.mrb[0].mxu0
    %v507 = vpop.f32.mrb[0].mxu0
    %508 = vdwg.mxu0
    %509 = vrot.lane.b32.xlu0 %v324, 64
    %v510 = vpop.permute.xlu0 %509
    %v512 = vsel %vm340, %v459, 0
    %v515 = vsel %vm465, %v510, 0
    %517 = vmatprep.subr.bf16.mxu0 0
    %518 = vmatpush1.bf16.msra.mxu0 %v515
    %519 = vmatprep.subr.bf16.mxu0 0
    %520 = vmatpush1.bf16.msra.mxu0 0
    %521 = vmatprep.subr.bf16.mxu0 0
    %522 = vmatpush1.bf16.msra.mxu0 0
    %523 = vmatprep.subr.bf16.mxu0 0
    %524 = vmatpush1.bf16.msra.mxu0 0
    %525 = vmatprep.subr.bf16.mxu0 0
    %526 = vmatpush1.bf16.msra.mxu0 0
    %527 = vmatprep.subr.bf16.mxu0 0
    %528 = vmatpush1.bf16.msra.mxu0 0
    %529 = vmatprep.subr.bf16.mxu0 0
    %530 = vmatpush1.bf16.msra.mxu0 0
    %531 = vmatprep.subr.bf16.mxu0 0
    %532 = vmatpush1.bf16.msra.mxu0 0
    %533 = vmatprep.subr.bf16.mxu0 0
    %534 = vmatpush1.bf16.msra.mxu0 0
    %535 = vmatprep.subr.bf16.mxu0 0
    %536 = vmatpush1.bf16.msra.mxu0 0
    %537 = vmatprep.subr.bf16.mxu0 0
    %538 = vmatpush1.bf16.msra.mxu0 0
    %539 = vmatprep.subr.bf16.mxu0 0
    %540 = vmatpush1.bf16.msra.mxu0 0
    %541 = vmatprep.subr.bf16.mxu0 0
    %542 = vmatpush1.bf16.msra.mxu0 0
    %543 = vmatprep.subr.bf16.mxu0 0
    %544 = vmatpush1.bf16.msra.mxu0 0
    %545 = vmatprep.subr.bf16.mxu0 0
    %546 = vmatpush1.bf16.msra.mxu0 0
    %547 = vmatprep.subr.bf16.mxu0 0
    %548 = vmatpush1.bf16.msra.mxu0 0
    %549 = vmatprep.mubr.bf16.mxu0 0
    %550 = vmatmul.mubr.bf16.gmra.mrb[0].mxu0 %v512
    %v551 = vpop.f32.mrb[0].mxu0
    %v552 = vadd.f32 0.0, %v551
    %v553 = vpop.f32.mrb[0].mxu0
    %v554 = vpop.f32.mrb[0].mxu0
    %v555 = vpop.f32.mrb[0].mxu0
    %556 = vdwg.mxu0
    %557 = vrot.lane.b32.xlu0 %v323, 120
    %v558 = vpop.permute.xlu0 %557
    %559 = vrot.lane.b32.xlu0 %v323, 88
    %v560 = vpop.permute.xlu0 %559
    %v562 = vsel %vm340, %v558, 0
    %v565 = vsel %vm340, %v560, 0
    %567 = vmatprep.subr.bf16.mxu0 0
    %568 = vmatpush1.bf16.xpose.msra.mxu0 %v565
    %569 = vmatprep.subr.bf16.mxu0 0
    %570 = vmatpush1.bf16.xpose.msra.mxu0 0
    %571 = vmatprep.subr.bf16.mxu0 0
    %572 = vmatpush1.bf16.xpose.msra.mxu0 0
    %573 = vmatprep.subr.bf16.mxu0 0
    %574 = vmatpush1.bf16.xpose.msra.mxu0 0
    %575 = vmatprep.subr.bf16.mxu0 0
    %576 = vmatpush1.bf16.xpose.msra.mxu0 0
    %577 = vmatprep.subr.bf16.mxu0 0
    %578 = vmatpush1.bf16.xpose.msra.mxu0 0
    %579 = vmatprep.subr.bf16.mxu0 0
    %580 = vmatpush1.bf16.xpose.msra.mxu0 0
    %581 = vmatprep.subr.bf16.mxu0 0
    %582 = vmatpush1.bf16.xpose.msra.mxu0 0
    %583 = vmatprep.subr.bf16.mxu0 0
    %584 = vmatpush1.bf16.xpose.msra.mxu0 0
    %585 = vmatprep.subr.bf16.mxu0 0
    %586 = vmatpush1.bf16.xpose.msra.mxu0 0
    %587 = vmatprep.subr.bf16.mxu0 0
    %588 = vmatpush1.bf16.xpose.msra.mxu0 0
    %589 = vmatprep.subr.bf16.mxu0 0
    %590 = vmatpush1.bf16.xpose.msra.mxu0 0
    %591 = vmatprep.subr.bf16.mxu0 0
    %592 = vmatpush1.bf16.xpose.msra.mxu0 0
    %593 = vmatprep.subr.bf16.mxu0 0
    %594 = vmatpush1.bf16.xpose.msra.mxu0 0
    %595 = vmatprep.subr.bf16.mxu0 0
    %596 = vmatpush1.bf16.xpose.msra.mxu0 0
    %597 = vmatprep.subr.bf16.mxu0 0
    %598 = vmatpush1.bf16.xpose.msra.mxu0 0
    %599 = vmatprep.mubr.bf16.mxu0 0
    %600 = vmatmul.mubr.bf16.gmra.mrb[0].mxu0 %v562
    %v601 = vpop.f32.mrb[0].mxu0
    %v602 = vadd.f32 %v330, %v601
    %v603 = vpop.f32.mrb[0].mxu0
    %v604 = vpop.f32.mrb[0].mxu0
    %v605 = vpop.f32.mrb[0].mxu0
    %606 = vdwg.mxu0
    %607 = vrot.lane.b32.xlu0 %v324, 120
    %v608 = vpop.permute.xlu0 %607
    %609 = vrot.lane.b32.xlu0 %v324, 88
    %v610 = vpop.permute.xlu0 %609
    %v612 = vsel %vm340, %v608, 0
    %v615 = vsel %vm340, %v610, 0
    %617 = vmatprep.subr.bf16.mxu0 0
    %618 = vmatpush1.bf16.xpose.msra.mxu0 %v615
    %619 = vmatprep.subr.bf16.mxu0 0
    %620 = vmatpush1.bf16.xpose.msra.mxu0 0
    %621 = vmatprep.subr.bf16.mxu0 0
    %622 = vmatpush1.bf16.xpose.msra.mxu0 0
    %623 = vmatprep.subr.bf16.mxu0 0
    %624 = vmatpush1.bf16.xpose.msra.mxu0 0
    %625 = vmatprep.subr.bf16.mxu0 0
    %626 = vmatpush1.bf16.xpose.msra.mxu0 0
    %627 = vmatprep.subr.bf16.mxu0 0
    %628 = vmatpush1.bf16.xpose.msra.mxu0 0
    %629 = vmatprep.subr.bf16.mxu0 0
    %630 = vmatpush1.bf16.xpose.msra.mxu0 0
    %631 = vmatprep.subr.bf16.mxu0 0
    %632 = vmatpush1.bf16.xpose.msra.mxu0 0
    %633 = vmatprep.subr.bf16.mxu0 0
    %634 = vmatpush1.bf16.xpose.msra.mxu0 0
    %635 = vmatprep.subr.bf16.mxu0 0
    %636 = vmatpush1.bf16.xpose.msra.mxu0 0
    %637 = vmatprep.subr.bf16.mxu0 0
    %638 = vmatpush1.bf16.xpose.msra.mxu0 0
    %639 = vmatprep.subr.bf16.mxu0 0
    %640 = vmatpush1.bf16.xpose.msra.mxu0 0
    %641 = vmatprep.subr.bf16.mxu0 0
    %642 = vmatpush1.bf16.xpose.msra.mxu0 0
    %643 = vmatprep.subr.bf16.mxu0 0
    %644 = vmatpush1.bf16.xpose.msra.mxu0 0
    %645 = vmatprep.subr.bf16.mxu0 0
    %646 = vmatpush1.bf16.xpose.msra.mxu0 0
    %647 = vmatprep.subr.bf16.mxu0 0
    %648 = vmatpush1.bf16.xpose.msra.mxu0 0
    %649 = vmatprep.mubr.bf16.mxu0 0
    %650 = vmatmul.mubr.bf16.gmra.mrb[0].mxu0 %v612
    %v651 = vpop.f32.mrb[0].mxu0
    %v652 = vadd.f32 %v334, %v651
    %v653 = vpop.f32.mrb[0].mxu0
    %v654 = vpop.f32.mrb[0].mxu0
    %v655 = vpop.f32.mrb[0].mxu0
    %656 = vdwg.mxu0
    %v657 = vsel %vm340, %v602, -inf
    %658 = vmax.xlane.f32.xlu0 %v657
    %v659 = vpop.xlane.xlu0 %658
    %v660 = vsel %vm340, %v652, -inf
    %661 = vmax.xlane.f32.xlu0 %v660
    %v662 = vpop.xlane.xlu0 %661
    %v663 = vsub.f32 %v602, %v659
    %v664 = vsub.f32 %v652, %v662
    %v665 = vmul.f32 %v663, 1.442695
    %v666 = vpow.pop %v665
    %v667 = vmul.f32 %v664, 1.442695
    %v668 = vpow.pop %v667
    %v669 = vsel %vm340, %v666, 0.0
    %670 = vadd.xlane.f32.xlu0 %v669
    %v671 = vpop.xlane.xlu0 %670
    %v672 = vsel %vm340, %v668, 0.0
    %673 = vadd.xlane.f32.xlu0 %v672
    %v674 = vpop.xlane.xlu0 %673
    %v675 = vrcp.pop %v671
    %v676 = vrcp.pop %v674
    %v677 = vmul.f32 %v666, %v675
    %v678 = vmul.f32 %v668, %v676
    %v679 = vpack.c.bf16 %v677, %v677
    %v680 = vpack.c.bf16 %v678, %v678
    %681 = vrot.lane.b32.xlu0 %v323, 56
    %v682 = vpop.permute.xlu0 %681
    %v684 = vsel %vm340, %v679, 0
    %v687 = vsel %vm465, %v682, 0
    %689 = vmatprep.subr.bf16.mxu0 0
    %690 = vmatpush1.bf16.msra.mxu0 %v687
    %691 = vmatprep.subr.bf16.mxu0 0
    %692 = vmatpush1.bf16.msra.mxu0 0
    %693 = vmatprep.subr.bf16.mxu0 0
    %694 = vmatpush1.bf16.msra.mxu0 0
    %695 = vmatprep.subr.bf16.mxu0 0
    %696 = vmatpush1.bf16.msra.mxu0 0
    %697 = vmatprep.subr.bf16.mxu0 0
    %698 = vmatpush1.bf16.msra.mxu0 0
    %699 = vmatprep.subr.bf16.mxu0 0
    %700 = vmatpush1.bf16.msra.mxu0 0
    %701 = vmatprep.subr.bf16.mxu0 0
    %702 = vmatpush1.bf16.msra.mxu0 0
    %703 = vmatprep.subr.bf16.mxu0 0
    %704 = vmatpush1.bf16.msra.mxu0 0
    %705 = vmatprep.subr.bf16.mxu0 0
    %706 = vmatpush1.bf16.msra.mxu0 0
    %707 = vmatprep.subr.bf16.mxu0 0
    %708 = vmatpush1.bf16.msra.mxu0 0
    %709 = vmatprep.subr.bf16.mxu0 0
    %710 = vmatpush1.bf16.msra.mxu0 0
    %711 = vmatprep.subr.bf16.mxu0 0
    %712 = vmatpush1.bf16.msra.mxu0 0
    %713 = vmatprep.subr.bf16.mxu0 0
    %714 = vmatpush1.bf16.msra.mxu0 0
    %715 = vmatprep.subr.bf16.mxu0 0
    %716 = vmatpush1.bf16.msra.mxu0 0
    %717 = vmatprep.subr.bf16.mxu0 0
    %718 = vmatpush1.bf16.msra.mxu0 0
    %719 = vmatprep.subr.bf16.mxu0 0
    %720 = vmatpush1.bf16.msra.mxu0 0
    %721 = vmatprep.mubr.bf16.mxu0 0
    %722 = vmatmul.mubr.bf16.gmra.mrb[0].mxu0 %v684
    %v723 = vpop.f32.mrb[0].mxu0
    %v724 = vadd.f32 0.0, %v723
    %v725 = vpop.f32.mrb[0].mxu0
    %v726 = vpop.f32.mrb[0].mxu0
    %v727 = vpop.f32.mrb[0].mxu0
    %728 = vdwg.mxu0
    %729 = vrot.lane.b32.xlu0 %v324, 56
    %v730 = vpop.permute.xlu0 %729
    %v732 = vsel %vm340, %v680, 0
    %v735 = vsel %vm465, %v730, 0
    %737 = vmatprep.subr.bf16.mxu0 0
    %738 = vmatpush1.bf16.msra.mxu0 %v735
    %739 = vmatprep.subr.bf16.mxu0 0
    %740 = vmatpush1.bf16.msra.mxu0 0
    %741 = vmatprep.subr.bf16.mxu0 0
    %742 = vmatpush1.bf16.msra.mxu0 0
    %743 = vmatprep.subr.bf16.mxu0 0
    %744 = vmatpush1.bf16.msra.mxu0 0
    %745 = vmatprep.subr.bf16.mxu0 0
    %746 = vmatpush1.bf16.msra.mxu0 0
    %747 = vmatprep.subr.bf16.mxu0 0
    %748 = vmatpush1.bf16.msra.mxu0 0
    %749 = vmatprep.subr.bf16.mxu0 0
    %750 = vmatpush1.bf16.msra.mxu0 0
    %751 = vmatprep.subr.bf16.mxu0 0
    %752 = vmatpush1.bf16.msra.mxu0 0
    %753 = vmatprep.subr.bf16.mxu0 0
    %754 = vmatpush1.bf16.msra.mxu0 0
    %755 = vmatprep.subr.bf16.mxu0 0
    %756 = vmatpush1.bf16.msra.mxu0 0
    %757 = vmatprep.subr.bf16.mxu0 0
    %758 = vmatpush1.bf16.msra.mxu0 0
    %759 = vmatprep.subr.bf16.mxu0 0
    %760 = vmatpush1.bf16.msra.mxu0 0
    %761 = vmatprep.subr.bf16.mxu0 0
    %762 = vmatpush1.bf16.msra.mxu0 0
    %763 = vmatprep.subr.bf16.mxu0 0
    %764 = vmatpush1.bf16.msra.mxu0 0
    %765 = vmatprep.subr.bf16.mxu0 0
    %766 = vmatpush1.bf16.msra.mxu0 0
    %767 = vmatprep.subr.bf16.mxu0 0
    %768 = vmatpush1.bf16.msra.mxu0 0
    %769 = vmatprep.mubr.bf16.mxu0 0
    %770 = vmatmul.mubr.bf16.gmra.mrb[0].mxu0 %v732
    %v771 = vpop.f32.mrb[0].mxu0
    %v772 = vadd.f32 0.0, %v771
    %v773 = vpop.f32.mrb[0].mxu0
    %v774 = vpop.f32.mrb[0].mxu0
    %v775 = vpop.f32.mrb[0].mxu0
    %776 = vdwg.mxu0
    %777 = vrot.lane.b32.xlu0 %v323, 112
    %v778 = vpop.permute.xlu0 %777
    %779 = vrot.lane.b32.xlu0 %v323, 80
    %v780 = vpop.permute.xlu0 %779
    %v782 = vsel %vm340, %v778, 0
    %v785 = vsel %vm340, %v780, 0
    %787 = vmatprep.subr.bf16.mxu0 0
    %788 = vmatpush1.bf16.xpose.msra.mxu0 %v785
    %789 = vmatprep.subr.bf16.mxu0 0
    %790 = vmatpush1.bf16.xpose.msra.mxu0 0
    %791 = vmatprep.subr.bf16.mxu0 0
    %792 = vmatpush1.bf16.xpose.msra.mxu0 0
    %793 = vmatprep.subr.bf16.mxu0 0
    %794 = vmatpush1.bf16.xpose.msra.mxu0 0
    %795 = vmatprep.subr.bf16.mxu0 0
    %796 = vmatpush1.bf16.xpose.msra.mxu0 0
    %797 = vmatprep.subr.bf16.mxu0 0
    %798 = vmatpush1.bf16.xpose.msra.mxu0 0
    %799 = vmatprep.subr.bf16.mxu0 0
    %800 = vmatpush1.bf16.xpose.msra.mxu0 0
    %801 = vmatprep.subr.bf16.mxu0 0
    %802 = vmatpush1.bf16.xpose.msra.mxu0 0
    %803 = vmatprep.subr.bf16.mxu0 0
    %804 = vmatpush1.bf16.xpose.msra.mxu0 0
    %805 = vmatprep.subr.bf16.mxu0 0
    %806 = vmatpush1.bf16.xpose.msra.mxu0 0
    %807 = vmatprep.subr.bf16.mxu0 0
    %808 = vmatpush1.bf16.xpose.msra.mxu0 0
    %809 = vmatprep.subr.bf16.mxu0 0
    %810 = vmatpush1.bf16.xpose.msra.mxu0 0
    %811 = vmatprep.subr.bf16.mxu0 0
    %812 = vmatpush1.bf16.xpose.msra.mxu0 0
    %813 = vmatprep.subr.bf16.mxu0 0
    %814 = vmatpush1.bf16.xpose.msra.mxu0 0
    %815 = vmatprep.subr.bf16.mxu0 0
    %816 = vmatpush1.bf16.xpose.msra.mxu0 0
    %817 = vmatprep.subr.bf16.mxu0 0
    %818 = vmatpush1.bf16.xpose.msra.mxu0 0
    %819 = vmatprep.mubr.bf16.mxu0 0
    %820 = vmatmul.mubr.bf16.gmra.mrb[0].mxu0 %v782
    %v821 = vpop.f32.mrb[0].mxu0
    %v822 = vadd.f32 %v330, %v821
    %v823 = vpop.f32.mrb[0].mxu0
    %v824 = vpop.f32.mrb[0].mxu0
    %v825 = vpop.f32.mrb[0].mxu0
    %826 = vdwg.mxu0
    %827 = vrot.lane.b32.xlu0 %v324, 112
    %v828 = vpop.permute.xlu0 %827
    %829 = vrot.lane.b32.xlu0 %v324, 80
    %v830 = vpop.permute.xlu0 %829
    %v832 = vsel %vm340, %v828, 0
    %v835 = vsel %vm340, %v830, 0
    %837 = vmatprep.subr.bf16.mxu0 0
    %838 = vmatpush1.bf16.xpose.msra.mxu0 %v835
    %839 = vmatprep.subr.bf16.mxu0 0
    %840 = vmatpush1.bf16.xpose.msra.mxu0 0
    %841 = vmatprep.subr.bf16.mxu0 0
    %842 = vmatpush1.bf16.xpose.msra.mxu0 0
    %843 = vmatprep.subr.bf16.mxu0 0
    %844 = vmatpush1.bf16.xpose.msra.mxu0 0
    %845 = vmatprep.subr.bf16.mxu0 0
    %846 = vmatpush1.bf16.xpose.msra.mxu0 0
    %847 = vmatprep.subr.bf16.mxu0 0
    %848 = vmatpush1.bf16.xpose.msra.mxu0 0
    %849 = vmatprep.subr.bf16.mxu0 0
    %850 = vmatpush1.bf16.xpose.msra.mxu0 0
    %851 = vmatprep.subr.bf16.mxu0 0
    %852 = vmatpush1.bf16.xpose.msra.mxu0 0
    %853 = vmatprep.subr.bf16.mxu0 0
    %854 = vmatpush1.bf16.xpose.msra.mxu0 0
    %855 = vmatprep.subr.bf16.mxu0 0
    %856 = vmatpush1.bf16.xpose.msra.mxu0 0
    %857 = vmatprep.subr.bf16.mxu0 0
    %858 = vmatpush1.bf16.xpose.msra.mxu0 0
    %859 = vmatprep.subr.bf16.mxu0 0
    %860 = vmatpush1.bf16.xpose.msra.mxu0 0
    %861 = vmatprep.subr.bf16.mxu0 0
    %862 = vmatpush1.bf16.xpose.msra.mxu0 0
    %863 = vmatprep.subr.bf16.mxu0 0
    %864 = vmatpush1.bf16.xpose.msra.mxu0 0
    %865 = vmatprep.subr.bf16.mxu0 0
    %866 = vmatpush1.bf16.xpose.msra.mxu0 0
    %867 = vmatprep.subr.bf16.mxu0 0
    %868 = vmatpush1.bf16.xpose.msra.mxu0 0
    %869 = vmatprep.mubr.bf16.mxu0 0
    %870 = vmatmul.mubr.bf16.gmra.mrb[0].mxu0 %v832
    %v871 = vpop.f32.mrb[0].mxu0
    %v872 = vadd.f32 %v334, %v871
    %v873 = vpop.f32.mrb[0].mxu0
    %v874 = vpop.f32.mrb[0].mxu0
    %v875 = vpop.f32.mrb[0].mxu0
    %876 = vdwg.mxu0
    %v877 = vsel %vm340, %v822, -inf
    %878 = vmax.xlane.f32.xlu0 %v877
    %v879 = vpop.xlane.xlu0 %878
    %v880 = vsel %vm340, %v872, -inf
    %881 = vmax.xlane.f32.xlu0 %v880
    %v882 = vpop.xlane.xlu0 %881
    %v883 = vsub.f32 %v822, %v879
    %v884 = vsub.f32 %v872, %v882
    %v885 = vmul.f32 %v883, 1.442695
    %v886 = vpow.pop %v885
    %v887 = vmul.f32 %v884, 1.442695
    %v888 = vpow.pop %v887
    %v889 = vsel %vm340, %v886, 0.0
    %890 = vadd.xlane.f32.xlu0 %v889
    %v891 = vpop.xlane.xlu0 %890
    %v892 = vsel %vm340, %v888, 0.0
    %893 = vadd.xlane.f32.xlu0 %v892
    %v894 = vpop.xlane.xlu0 %893
    %v895 = vrcp.pop %v891
    %v896 = vrcp.pop %v894
    %v897 = vmul.f32 %v886, %v895
    %v898 = vmul.f32 %v888, %v896
    %v899 = vpack.c.bf16 %v897, %v897
    %v900 = vpack.c.bf16 %v898, %v898
    %901 = vrot.lane.b32.xlu0 %v323, 48
    %v902 = vpop.permute.xlu0 %901
    %v904 = vsel %vm340, %v899, 0
    %v907 = vsel %vm465, %v902, 0
    %909 = vmatprep.subr.bf16.mxu0 0
    %910 = vmatpush1.bf16.msra.mxu0 %v907
    %911 = vmatprep.subr.bf16.mxu0 0
    %912 = vmatpush1.bf16.msra.mxu0 0
    %913 = vmatprep.subr.bf16.mxu0 0
    %914 = vmatpush1.bf16.msra.mxu0 0
    %915 = vmatprep.subr.bf16.mxu0 0
    %916 = vmatpush1.bf16.msra.mxu0 0
    %917 = vmatprep.subr.bf16.mxu0 0
    %918 = vmatpush1.bf16.msra.mxu0 0
    %919 = vmatprep.subr.bf16.mxu0 0
    %920 = vmatpush1.bf16.msra.mxu0 0
    %921 = vmatprep.subr.bf16.mxu0 0
    %922 = vmatpush1.bf16.msra.mxu0 0
    %923 = vmatprep.subr.bf16.mxu0 0
    %924 = vmatpush1.bf16.msra.mxu0 0
    %925 = vmatprep.subr.bf16.mxu0 0
    %926 = vmatpush1.bf16.msra.mxu0 0
    %927 = vmatprep.subr.bf16.mxu0 0
    %928 = vmatpush1.bf16.msra.mxu0 0
    %929 = vmatprep.subr.bf16.mxu0 0
    %930 = vmatpush1.bf16.msra.mxu0 0
    %931 = vmatprep.subr.bf16.mxu0 0
    %932 = vmatpush1.bf16.msra.mxu0 0
    %933 = vmatprep.subr.bf16.mxu0 0
    %934 = vmatpush1.bf16.msra.mxu0 0
    %935 = vmatprep.subr.bf16.mxu0 0
    %936 = vmatpush1.bf16.msra.mxu0 0
    %937 = vmatprep.subr.bf16.mxu0 0
    %938 = vmatpush1.bf16.msra.mxu0 0
    %939 = vmatprep.subr.bf16.mxu0 0
    %940 = vmatpush1.bf16.msra.mxu0 0
    %941 = vmatprep.mubr.bf16.mxu0 0
    %942 = vmatmul.mubr.bf16.gmra.mrb[0].mxu0 %v904
    %v943 = vpop.f32.mrb[0].mxu0
    %v944 = vadd.f32 0.0, %v943
    %v945 = vpop.f32.mrb[0].mxu0
    %v946 = vpop.f32.mrb[0].mxu0
    %v947 = vpop.f32.mrb[0].mxu0
    %948 = vdwg.mxu0
    %949 = vrot.lane.b32.xlu0 %v324, 48
    %v950 = vpop.permute.xlu0 %949
    %v952 = vsel %vm340, %v900, 0
    %v955 = vsel %vm465, %v950, 0
    %957 = vmatprep.subr.bf16.mxu0 0
    %958 = vmatpush1.bf16.msra.mxu0 %v955
    %959 = vmatprep.subr.bf16.mxu0 0
    %960 = vmatpush1.bf16.msra.mxu0 0
    %961 = vmatprep.subr.bf16.mxu0 0
    %962 = vmatpush1.bf16.msra.mxu0 0
    %963 = vmatprep.subr.bf16.mxu0 0
    %964 = vmatpush1.bf16.msra.mxu0 0
    %965 = vmatprep.subr.bf16.mxu0 0
    %966 = vmatpush1.bf16.msra.mxu0 0
    %967 = vmatprep.subr.bf16.mxu0 0
    %968 = vmatpush1.bf16.msra.mxu0 0
    %969 = vmatprep.subr.bf16.mxu0 0
    %970 = vmatpush1.bf16.msra.mxu0 0
    %971 = vmatprep.subr.bf16.mxu0 0
    %972 = vmatpush1.bf16.msra.mxu0 0
    %973 = vmatprep.subr.bf16.mxu0 0
    %974 = vmatpush1.bf16.msra.mxu0 0
    %975 = vmatprep.subr.bf16.mxu0 0
    %976 = vmatpush1.bf16.msra.mxu0 0
    %977 = vmatprep.subr.bf16.mxu0 0
    %978 = vmatpush1.bf16.msra.mxu0 0
    %979 = vmatprep.subr.bf16.mxu0 0
    %980 = vmatpush1.bf16.msra.mxu0 0
    %981 = vmatprep.subr.bf16.mxu0 0
    %982 = vmatpush1.bf16.msra.mxu0 0
    %983 = vmatprep.subr.bf16.mxu0 0
    %984 = vmatpush1.bf16.msra.mxu0 0
    %985 = vmatprep.subr.bf16.mxu0 0
    %986 = vmatpush1.bf16.msra.mxu0 0
    %987 = vmatprep.subr.bf16.mxu0 0
    %988 = vmatpush1.bf16.msra.mxu0 0
    %989 = vmatprep.mubr.bf16.mxu0 0
    %990 = vmatmul.mubr.bf16.gmra.mrb[0].mxu0 %v952
    %v991 = vpop.f32.mrb[0].mxu0
    %v992 = vadd.f32 0.0, %v991
    %v993 = vpop.f32.mrb[0].mxu0
    %v994 = vpop.f32.mrb[0].mxu0
    %v995 = vpop.f32.mrb[0].mxu0
    %996 = vdwg.mxu0
    %997 = vrot.lane.b32.xlu0 %v323, 104
    %v998 = vpop.permute.xlu0 %997
    %999 = vrot.lane.b32.xlu0 %v323, 72
    %v1000 = vpop.permute.xlu0 %999
    %v1002 = vsel %vm340, %v998, 0
    %v1005 = vsel %vm340, %v1000, 0
    %1007 = vmatprep.subr.bf16.mxu0 0
    %1008 = vmatpush1.bf16.xpose.msra.mxu0 %v1005
    %1009 = vmatprep.subr.bf16.mxu0 0
    %1010 = vmatpush1.bf16.xpose.msra.mxu0 0
    %1011 = vmatprep.subr.bf16.mxu0 0
    %1012 = vmatpush1.bf16.xpose.msra.mxu0 0
    %1013 = vmatprep.subr.bf16.mxu0 0
    %1014 = vmatpush1.bf16.xpose.msra.mxu0 0
    %1015 = vmatprep.subr.bf16.mxu0 0
    %1016 = vmatpush1.bf16.xpose.msra.mxu0 0
    %1017 = vmatprep.subr.bf16.mxu0 0
    %1018 = vmatpush1.bf16.xpose.msra.mxu0 0
    %1019 = vmatprep.subr.bf16.mxu0 0
    %1020 = vmatpush1.bf16.xpose.msra.mxu0 0
    %1021 = vmatprep.subr.bf16.mxu0 0
    %1022 = vmatpush1.bf16.xpose.msra.mxu0 0
    %1023 = vmatprep.subr.bf16.mxu0 0
    %1024 = vmatpush1.bf16.xpose.msra.mxu0 0
    %1025 = vmatprep.subr.bf16.mxu0 0
    %1026 = vmatpush1.bf16.xpose.msra.mxu0 0
    %1027 = vmatprep.subr.bf16.mxu0 0
    %1028 = vmatpush1.bf16.xpose.msra.mxu0 0
    %1029 = vmatprep.subr.bf16.mxu0 0
    %1030 = vmatpush1.bf16.xpose.msra.mxu0 0
    %1031 = vmatprep.subr.bf16.mxu0 0
    %1032 = vmatpush1.bf16.xpose.msra.mxu0 0
    %1033 = vmatprep.subr.bf16.mxu0 0
    %1034 = vmatpush1.bf16.xpose.msra.mxu0 0
    %1035 = vmatprep.subr.bf16.mxu0 0
    %1036 = vmatpush1.bf16.xpose.msra.mxu0 0
    %1037 = vmatprep.subr.bf16.mxu0 0
    %1038 = vmatpush1.bf16.xpose.msra.mxu0 0
    %1039 = vmatprep.mubr.bf16.mxu0 0
    %1040 = vmatmul.mubr.bf16.gmra.mrb[0].mxu0 %v1002
    %v1041 = vpop.f32.mrb[0].mxu0
    %v1042 = vadd.f32 %v330, %v1041
    %v1043 = vpop.f32.mrb[0].mxu0
    %v1044 = vpop.f32.mrb[0].mxu0
    %v1045 = vpop.f32.mrb[0].mxu0
    %1046 = vdwg.mxu0
    %1047 = vrot.lane.b32.xlu0 %v324, 104
    %v1048 = vpop.permute.xlu0 %1047
    %1049 = vrot.lane.b32.xlu0 %v324, 72
    %v1050 = vpop.permute.xlu0 %1049
    %v1052 = vsel %vm340, %v1048, 0
    %v1055 = vsel %vm340, %v1050, 0
    %1057 = vmatprep.subr.bf16.mxu0 0
    %1058 = vmatpush1.bf16.xpose.msra.mxu0 %v1055
    %1059 = vmatprep.subr.bf16.mxu0 0
    %1060 = vmatpush1.bf16.xpose.msra.mxu0 0
    %1061 = vmatprep.subr.bf16.mxu0 0
    %1062 = vmatpush1.bf16.xpose.msra.mxu0 0
    %1063 = vmatprep.subr.bf16.mxu0 0
    %1064 = vmatpush1.bf16.xpose.msra.mxu0 0
    %1065 = vmatprep.subr.bf16.mxu0 0
    %1066 = vmatpush1.bf16.xpose.msra.mxu0 0
    %1067 = vmatprep.subr.bf16.mxu0 0
    %1068 = vmatpush1.bf16.xpose.msra.mxu0 0
    %1069 = vmatprep.subr.bf16.mxu0 0
    %1070 = vmatpush1.bf16.xpose.msra.mxu0 0
    %1071 = vmatprep.subr.bf16.mxu0 0
    %1072 = vmatpush1.bf16.xpose.msra.mxu0 0
    %1073 = vmatprep.subr.bf16.mxu0 0
    %1074 = vmatpush1.bf16.xpose.msra.mxu0 0
    %1075 = vmatprep.subr.bf16.mxu0 0
    %1076 = vmatpush1.bf16.xpose.msra.mxu0 0
    %1077 = vmatprep.subr.bf16.mxu0 0
    %1078 = vmatpush1.bf16.xpose.msra.mxu0 0
    %1079 = vmatprep.subr.bf16.mxu0 0
    %1080 = vmatpush1.bf16.xpose.msra.mxu0 0
    %1081 = vmatprep.subr.bf16.mxu0 0
    %1082 = vmatpush1.bf16.xpose.msra.mxu0 0
    %1083 = vmatprep.subr.bf16.mxu0 0
    %1084 = vmatpush1.bf16.xpose.msra.mxu0 0
    %1085 = vmatprep.subr.bf16.mxu0 0
    %1086 = vmatpush1.bf16.xpose.msra.mxu0 0
    %1087 = vmatprep.subr.bf16.mxu0 0
    %1088 = vmatpush1.bf16.xpose.msra.mxu0 0
    %1089 = vmatprep.mubr.bf16.mxu0 0
    %1090 = vmatmul.mubr.bf16.gmra.mrb[0].mxu0 %v1052
    %v1091 = vpop.f32.mrb[0].mxu0
    %v1092 = vadd.f32 %v334, %v1091
    %v1093 = vpop.f32.mrb[0].mxu0
    %v1094 = vpop.f32.mrb[0].mxu0
    %v1095 = vpop.f32.mrb[0].mxu0
    %1096 = vdwg.mxu0
    %v1097 = vsel %vm340, %v1042, -inf
    %1098 = vmax.xlane.f32.xlu0 %v1097
    %v1099 = vpop.xlane.xlu0 %1098
    %v1100 = vsel %vm340, %v1092, -inf
    %1101 = vmax.xlane.f32.xlu0 %v1100
    %v1102 = vpop.xlane.xlu0 %1101
    %v1103 = vsub.f32 %v1042, %v1099
    %v1104 = vsub.f32 %v1092, %v1102
    %v1105 = vmul.f32 %v1103, 1.442695
    %v1106 = vpow.pop %v1105
    %v1107 = vmul.f32 %v1104, 1.442695
    %v1108 = vpow.pop %v1107
    %v1109 = vsel %vm340, %v1106, 0.0
    %1110 = vadd.xlane.f32.xlu0 %v1109
    %v1111 = vpop.xlane.xlu0 %1110
    %v1112 = vsel %vm340, %v1108, 0.0
    %1113 = vadd.xlane.f32.xlu0 %v1112
    %v1114 = vpop.xlane.xlu0 %1113
    %v1115 = vrcp.pop %v1111
    %v1116 = vrcp.pop %v1114
    %v1117 = vmul.f32 %v1106, %v1115
    %v1118 = vmul.f32 %v1108, %v1116
    %v1119 = vpack.c.bf16 %v1117, %v1117
    %v1120 = vpack.c.bf16 %v1118, %v1118
    %1121 = vrot.lane.b32.xlu0 %v323, 40
    %v1122 = vpop.permute.xlu0 %1121
    %v1124 = vsel %vm340, %v1119, 0
    %v1127 = vsel %vm465, %v1122, 0
    %1129 = vmatprep.subr.bf16.mxu0 0
    %1130 = vmatpush1.bf16.msra.mxu0 %v1127
    %1131 = vmatprep.subr.bf16.mxu0 0
    %1132 = vmatpush1.bf16.msra.mxu0 0
    %1133 = vmatprep.subr.bf16.mxu0 0
    %1134 = vmatpush1.bf16.msra.mxu0 0
    %1135 = vmatprep.subr.bf16.mxu0 0
    %1136 = vmatpush1.bf16.msra.mxu0 0
    %1137 = vmatprep.subr.bf16.mxu0 0
    %1138 = vmatpush1.bf16.msra.mxu0 0
    %1139 = vmatprep.subr.bf16.mxu0 0
    %1140 = vmatpush1.bf16.msra.mxu0 0
    %1141 = vmatprep.subr.bf16.mxu0 0
    %1142 = vmatpush1.bf16.msra.mxu0 0
    %1143 = vmatprep.subr.bf16.mxu0 0
    %1144 = vmatpush1.bf16.msra.mxu0 0
    %1145 = vmatprep.subr.bf16.mxu0 0
    %1146 = vmatpush1.bf16.msra.mxu0 0
    %1147 = vmatprep.subr.bf16.mxu0 0
    %1148 = vmatpush1.bf16.msra.mxu0 0
    %1149 = vmatprep.subr.bf16.mxu0 0
    %1150 = vmatpush1.bf16.msra.mxu0 0
    %1151 = vmatprep.subr.bf16.mxu0 0
    %1152 = vmatpush1.bf16.msra.mxu0 0
    %1153 = vmatprep.subr.bf16.mxu0 0
    %1154 = vmatpush1.bf16.msra.mxu0 0
    %1155 = vmatprep.subr.bf16.mxu0 0
    %1156 = vmatpush1.bf16.msra.mxu0 0
    %1157 = vmatprep.subr.bf16.mxu0 0
    %1158 = vmatpush1.bf16.msra.mxu0 0
    %1159 = vmatprep.subr.bf16.mxu0 0
    %1160 = vmatpush1.bf16.msra.mxu0 0
    %1161 = vmatprep.mubr.bf16.mxu0 0
    %1162 = vmatmul.mubr.bf16.gmra.mrb[0].mxu0 %v1124
    %v1163 = vpop.f32.mrb[0].mxu0
    %v1164 = vadd.f32 0.0, %v1163
    %v1165 = vpop.f32.mrb[0].mxu0
    %v1166 = vpop.f32.mrb[0].mxu0
    %v1167 = vpop.f32.mrb[0].mxu0
    %1168 = vdwg.mxu0
    %1169 = vrot.lane.b32.xlu0 %v324, 40
    %v1170 = vpop.permute.xlu0 %1169
    %v1172 = vsel %vm340, %v1120, 0
    %v1175 = vsel %vm465, %v1170, 0
    %1177 = vmatprep.subr.bf16.mxu0 0
    %1178 = vmatpush1.bf16.msra.mxu0 %v1175
    %1179 = vmatprep.subr.bf16.mxu0 0
    %1180 = vmatpush1.bf16.msra.mxu0 0
    %1181 = vmatprep.subr.bf16.mxu0 0
    %1182 = vmatpush1.bf16.msra.mxu0 0
    %1183 = vmatprep.subr.bf16.mxu0 0
    %1184 = vmatpush1.bf16.msra.mxu0 0
    %1185 = vmatprep.subr.bf16.mxu0 0
    %1186 = vmatpush1.bf16.msra.mxu0 0
    %1187 = vmatprep.subr.bf16.mxu0 0
    %1188 = vmatpush1.bf16.msra.mxu0 0
    %1189 = vmatprep.subr.bf16.mxu0 0
    %1190 = vmatpush1.bf16.msra.mxu0 0
    %1191 = vmatprep.subr.bf16.mxu0 0
    %1192 = vmatpush1.bf16.msra.mxu0 0
    %1193 = vmatprep.subr.bf16.mxu0 0
    %1194 = vmatpush1.bf16.msra.mxu0 0
    %1195 = vmatprep.subr.bf16.mxu0 0
    %1196 = vmatpush1.bf16.msra.mxu0 0
    %1197 = vmatprep.subr.bf16.mxu0 0
    %1198 = vmatpush1.bf16.msra.mxu0 0
    %1199 = vmatprep.subr.bf16.mxu0 0
    %1200 = vmatpush1.bf16.msra.mxu0 0
    %1201 = vmatprep.subr.bf16.mxu0 0
    %1202 = vmatpush1.bf16.msra.mxu0 0
    %1203 = vmatprep.subr.bf16.mxu0 0
    %1204 = vmatpush1.bf16.msra.mxu0 0
    %1205 = vmatprep.subr.bf16.mxu0 0
    %1206 = vmatpush1.bf16.msra.mxu0 0
    %1207 = vmatprep.subr.bf16.mxu0 0
    %1208 = vmatpush1.bf16.msra.mxu0 0
    %1209 = vmatprep.mubr.bf16.mxu0 0
    %1210 = vmatmul.mubr.bf16.gmra.mrb[0].mxu0 %v1172
    %v1211 = vpop.f32.mrb[0].mxu0
    %v1212 = vadd.f32 0.0, %v1211
    %v1213 = vpop.f32.mrb[0].mxu0
    %v1214 = vpop.f32.mrb[0].mxu0
    %v1215 = vpop.f32.mrb[0].mxu0
    %1216 = vdwg.mxu0
    %1219 = vrot.lane.b32.xlu0 %v724, 8
    %v1220 = vpop.permute.xlu0 %1219
    %1221 = vrot.lane.b32.xlu0 %v772, 8
    %v1222 = vpop.permute.xlu0 %1221
    %1227 = vrot.lane.b32.xlu0 %v944, 16
    %v1228 = vpop.permute.xlu0 %1227
    %1229 = vrot.lane.b32.xlu0 %v992, 16
    %v1230 = vpop.permute.xlu0 %1229
    %1235 = vrot.lane.b32.xlu0 %v1164, 24
    %v1236 = vpop.permute.xlu0 %1235
    %1237 = vrot.lane.b32.xlu0 %v1212, 24
    %v1238 = vpop.permute.xlu0 %1237
    %v1241 = vsel %vm340, %v504, %v1220
    %v1242 = vsel %vm340, %v552, %v1222
    %vm1243 = vcmask 130048
    %v1244 = vsel %vm1243, %v1241, %v1228
    %v1245 = vsel %vm1243, %v1242, %v1230
    %vm1246 = vcmask 195584
    %v1247 = vsel %vm1246, %v1244, %v1236
    %v1248 = vsel %vm1246, %v1245, %v1238
    %v1249 = vld [vmem:[%s9] sm:$0xf]
    %v1250 = vld [vmem:[%s9 + $0x4] sm:$0xf]
    %v1251 = vld [vmem:[%s9 + $0x8] sm:$0xf]
    %v1252 = vld [vmem:[%s9 + $0xc] sm:$0xf]
    %v1253 = vpack.c.bf16 %v1248, %v1247
    %v1254 = vld [vmem:[%s10] sm:$0x1]
    %v1256 = vlaneseq
    %v1257 = vshrl.u32 %v1256, 7
    %v1258 = vsub.s32 0, %v1257
    %v1259 = vrot.slane %v1254, %v1258
    %v1265 = vunpack.c.l.b16 %v1249
    %v1266 = vunpack.c.l.b16 %v1250
    %v1267 = vunpack.c.l.b16 %v1251
    %v1268 = vunpack.c.l.b16 %v1252
    %v1269 = vpack.c.b16 %v1266, %v1265
    %v1270 = vpack.c.b16 %v1268, %v1267
    %v1274 = vsel %vm205, %v1253, 0
    %1276 = vmatprep.subr.bf16.mxu0 0
    %1277 = vmatpush1.bf16.msra.mxu0 %v1269
    %1278 = vmatprep.subr.bf16.mxu0 0
    %1279 = vmatpush1.bf16.msra.mxu0 %v1270
    %1280 = vmatprep.subr.bf16.mxu0 0
    %1281 = vmatpush1.bf16.msra.mxu0 0
    %1282 = vmatprep.subr.bf16.mxu0 0
    %1283 = vmatpush1.bf16.msra.mxu0 0
    %1284 = vmatprep.subr.bf16.mxu0 0
    %1285 = vmatpush1.bf16.msra.mxu0 0
    %1286 = vmatprep.subr.bf16.mxu0 0
    %1287 = vmatpush1.bf16.msra.mxu0 0
    %1288 = vmatprep.subr.bf16.mxu0 0
    %1289 = vmatpush1.bf16.msra.mxu0 0
    %1290 = vmatprep.subr.bf16.mxu0 0
    %1291 = vmatpush1.bf16.msra.mxu0 0
    %1292 = vmatprep.subr.bf16.mxu0 0
    %1293 = vmatpush1.bf16.msra.mxu0 0
    %1294 = vmatprep.subr.bf16.mxu0 0
    %1295 = vmatpush1.bf16.msra.mxu0 0
    %1296 = vmatprep.subr.bf16.mxu0 0
    %1297 = vmatpush1.bf16.msra.mxu0 0
    %1298 = vmatprep.subr.bf16.mxu0 0
    %1299 = vmatpush1.bf16.msra.mxu0 0
    %1300 = vmatprep.subr.bf16.mxu0 0
    %1301 = vmatpush1.bf16.msra.mxu0 0
    %1302 = vmatprep.subr.bf16.mxu0 0
    %1303 = vmatpush1.bf16.msra.mxu0 0
    %1304 = vmatprep.subr.bf16.mxu0 0
    %1305 = vmatpush1.bf16.msra.mxu0 0
    %1306 = vmatprep.subr.bf16.mxu0 0
    %1307 = vmatpush1.bf16.msra.mxu0 0
    %1308 = vmatprep.mubr.bf16.mxu0 0
    %1309 = vmatmul.mubr.bf16.gmra.mrb[0].mxu0 %v1274
    %v1310 = vpop.f32.mrb[0].mxu0
    %v1311 = vadd.f32 %v1259, %v1310
    %v1312 = vpop.f32.mrb[0].mxu0
    %v1313 = vpop.f32.mrb[0].mxu0
    %v1314 = vadd.f32 %v1259, %v1313
    %v1315 = vpop.f32.mrb[0].mxu0
    %1316 = vdwg.mxu0
    %v1317 = vadd.f32 %v1311, %v247
    %v1318 = vadd.f32 %v1314, %v248
    %v1319 = vld [vmem:[%s11] sm:$0x1]
    %v1320 = vld [vmem:[%s12] sm:$0x1]
    %v1321 = vsel %vm205, %v1317, 0.0
    %1322 = vadd.xlane.f32.xlu0 %v1321
    %v1323 = vpop.xlane.xlu0 %1322
    %v1324 = vsel %vm205, %v1318, 0.0
    %1325 = vadd.xlane.f32.xlu0 %v1324
    %v1326 = vpop.xlane.xlu0 %1325
    %v1327 = vmul.f32 %v1323, %v212
    %v1328 = vmul.f32 %v1326, %v212
    %v1329 = vsub.f32 %v1317, %v1327
    %v1330 = vsub.f32 %v1318, %v1328
    %v1331 = vmul.f32 %v1329, %v1329
    %v1332 = vmul.f32 %v1330, %v1330
    %v1333 = vsel %vm205, %v1331, 0.0
    %1334 = vadd.xlane.f32.xlu0 %v1333
    %v1335 = vpop.xlane.xlu0 %1334
    %v1336 = vsel %vm205, %v1332, 0.0
    %1337 = vadd.xlane.f32.xlu0 %v1336
    %v1338 = vpop.xlane.xlu0 %1337
    %v1339 = vmul.f32 %v1335, %v212
    %v1340 = vmul.f32 %v1338, %v212
    %v1341 = vadd.f32 %v1339, 1e-12
    %v1342 = vadd.f32 %v1340, 1e-12
    %v1343 = vrsqrt.pop %v1341
    %v1344 = vrsqrt.pop %v1342
    %v1345 = vmul.f32 %v1329, %v1343
    %v1346 = vmul.f32 %v1330, %v1344
    %v1348 = vlaneseq
    %v1349 = vshrl.u32 %v1348, 7
    %v1350 = vsub.s32 0, %v1349
    %v1351 = vrot.slane %v1319, %v1350
    %v1353 = vmul.f32 %v1345, %v1351
    %v1354 = vmul.f32 %v1346, %v1351
    %v1356 = vlaneseq
    %v1357 = vshrl.u32 %v1356, 7
    %v1358 = vsub.s32 0, %v1357
    %v1359 = vrot.slane %v1320, %v1358
    %v1361 = vadd.f32 %v1353, %v1359
    %v1362 = vadd.f32 %v1354, %v1359
    %v1363 = vld [vmem:[%s13] sm:$0xf]
    %v1364 = vld [vmem:[%s13 + $0x4] sm:$0xf]
    %v1365 = vld [vmem:[%s13 + $0x8] sm:$0xf]
    %v1366 = vld [vmem:[%s13 + $0xc] sm:$0xf]
    %v1367 = vpack.c.bf16 %v1362, %v1361
    %v1368 = vld [vmem:[%s14] sm:$0x1]
    %v1370 = vlaneseq
    %v1371 = vshrl.u32 %v1370, 7
    %v1372 = vsub.s32 0, %v1371
    %v1373 = vrot.slane %v1368, %v1372
    %v1379 = vunpack.c.l.b16 %v1363
    %v1380 = vunpack.c.l.b16 %v1364
    %v1381 = vunpack.c.l.b16 %v1365
    %v1382 = vunpack.c.l.b16 %v1366
    %v1383 = vpack.c.b16 %v1380, %v1379
    %v1384 = vpack.c.b16 %v1382, %v1381
    %v1388 = vsel %vm205, %v1367, 0
    %1390 = vmatprep.subr.bf16.mxu0 0
    %1391 = vmatpush1.bf16.msra.mxu0 %v1383
    %1392 = vmatprep.subr.bf16.mxu0 0
    %1393 = vmatpush1.bf16.msra.mxu0 %v1384
    %1394 = vmatprep.subr.bf16.mxu0 0
    %1395 = vmatpush1.bf16.msra.mxu0 0
    %1396 = vmatprep.subr.bf16.mxu0 0
    %1397 = vmatpush1.bf16.msra.mxu0 0
    %1398 = vmatprep.subr.bf16.mxu0 0
    %1399 = vmatpush1.bf16.msra.mxu0 0
    %1400 = vmatprep.subr.bf16.mxu0 0
    %1401 = vmatpush1.bf16.msra.mxu0 0
    %1402 = vmatprep.subr.bf16.mxu0 0
    %1403 = vmatpush1.bf16.msra.mxu0 0
    %1404 = vmatprep.subr.bf16.mxu0 0
    %1405 = vmatpush1.bf16.msra.mxu0 0
    %1406 = vmatprep.subr.bf16.mxu0 0
    %1407 = vmatpush1.bf16.msra.mxu0 0
    %1408 = vmatprep.subr.bf16.mxu0 0
    %1409 = vmatpush1.bf16.msra.mxu0 0
    %1410 = vmatprep.subr.bf16.mxu0 0
    %1411 = vmatpush1.bf16.msra.mxu0 0
    %1412 = vmatprep.subr.bf16.mxu0 0
    %1413 = vmatpush1.bf16.msra.mxu0 0
    %1414 = vmatprep.subr.bf16.mxu0 0
    %1415 = vmatpush1.bf16.msra.mxu0 0
    %1416 = vmatprep.subr.bf16.mxu0 0
    %1417 = vmatpush1.bf16.msra.mxu0 0
    %1418 = vmatprep.subr.bf16.mxu0 0
    %1419 = vmatpush1.bf16.msra.mxu0 0
    %1420 = vmatprep.subr.bf16.mxu0 0
    %1421 = vmatpush1.bf16.msra.mxu0 0
    %1422 = vmatprep.mubr.bf16.mxu0 0
    %1423 = vmatmul.mubr.bf16.gmra.mrb[0].mxu0 %v1388
    %v1424 = vpop.f32.mrb[0].mxu0
    %v1425 = vadd.f32 %v1373, %v1424
    %v1426 = vpop.f32.mrb[0].mxu0
    %v1427 = vpop.f32.mrb[0].mxu0
    %v1428 = vadd.f32 %v1373, %v1427
    %v1429 = vpop.f32.mrb[0].mxu0
    %1430 = vdwg.mxu0
    %v1431 = vmul.f32 %v1425, %v1425
    %v1432 = vmul.f32 %v1428, %v1428
    %v1433 = vmul.f32 %v1425, %v1431
    %v1434 = vmul.f32 %v1428, %v1432
    %v1435 = vmul.f32 %v1433, 0.044715
    %v1436 = vmul.f32 %v1434, 0.044715
    %v1437 = vadd.f32 %v1425, %v1435
    %v1438 = vadd.f32 %v1428, %v1436
    %v1439 = vmul.f32 %v1437, 0.7978846
    %v1440 = vmul.f32 %v1438, 0.7978846
    %v1441 = vtanh.pop %v1439
    %v1442 = vtanh.pop %v1440
    %v1443 = vadd.f32 %v1441, 1.0
    %v1444 = vadd.f32 %v1442, 1.0
    %v1445 = vmul.f32 %v1443, 0.5
    %v1446 = vmul.f32 %v1444, 0.5
    %v1447 = vmul.f32 %v1425, %v1445
    %v1448 = vmul.f32 %v1428, %v1446
    %v1449 = vld [vmem:[%s15] sm:$0xf]
    %v1450 = vld [vmem:[%s15 + $0x4] sm:$0xf]
    %v1451 = vld [vmem:[%s15 + $0x8] sm:$0xf]
    %v1452 = vld [vmem:[%s15 + $0xc] sm:$0xf]
    %v1453 = vld [vmem:[%s15 + $0x10] sm:$0xf]
    %v1454 = vld [vmem:[%s15 + $0x14] sm:$0xf]
    %v1455 = vld [vmem:[%s15 + $0x18] sm:$0xf]
    %v1456 = vld [vmem:[%s15 + $0x1c] sm:$0xf]
    %v1457 = vpack.c.bf16 %v1448, %v1447
    %v1458 = vld [vmem:[%s16] sm:$0x1]
    %v1460 = vlaneseq
    %v1461 = vshrl.u32 %v1460, 7
    %v1462 = vsub.s32 0, %v1461
    %v1463 = vrot.slane %v1458, %v1462
    %v1473 = vunpack.c.l.b16 %v1449
    %v1474 = vunpack.c.l.b16 %v1450
    %v1475 = vunpack.c.l.b16 %v1451
    %v1476 = vunpack.c.l.b16 %v1452
    %v1477 = vunpack.c.l.b16 %v1453
    %v1478 = vunpack.c.l.b16 %v1454
    %v1479 = vunpack.c.l.b16 %v1455
    %v1480 = vunpack.c.l.b16 %v1456
    %v1481 = vpack.c.b16 %v1474, %v1473
    %v1482 = vpack.c.b16 %v1476, %v1475
    %v1483 = vpack.c.b16 %v1478, %v1477
    %v1484 = vpack.c.b16 %v1480, %v1479
    %vm1489 = vcmask 523264
    %v1491 = vsel %vm1489, %v1457, 0
    %1493 = vmatprep.subr.bf16.mxu0 0
    %1494 = vmatpush1.bf16.msra.mxu0 %v1481
    %1495 = vmatprep.subr.bf16.mxu0 0
    %1496 = vmatpush1.bf16.msra.mxu0 %v1482
    %1497 = vmatprep.subr.bf16.mxu0 0
    %1498 = vmatpush1.bf16.msra.mxu0 %v1483
    %1499 = vmatprep.subr.bf16.mxu0 0
    %1500 = vmatpush1.bf16.msra.mxu0 %v1484
    %1501 = vmatprep.subr.bf16.mxu0 0
    %1502 = vmatpush1.bf16.msra.mxu0 0
    %1503 = vmatprep.subr.bf16.mxu0 0
    %1504 = vmatpush1.bf16.msra.mxu0 0
    %1505 = vmatprep.subr.bf16.mxu0 0
    %1506 = vmatpush1.bf16.msra.mxu0 0
    %1507 = vmatprep.subr.bf16.mxu0 0
    %1508 = vmatpush1.bf16.msra.mxu0 0
    %1509 = vmatprep.subr.bf16.mxu0 0
    %1510 = vmatpush1.bf16.msra.mxu0 0
    %1511 = vmatprep.subr.bf16.mxu0 0
    %1512 = vmatpush1.bf16.msra.mxu0 0
    %1513 = vmatprep.subr.bf16.mxu0 0
    %1514 = vmatpush1.bf16.msra.mxu0 0
    %1515 = vmatprep.subr.bf16.mxu0 0
    %1516 = vmatpush1.bf16.msra.mxu0 0
    %1517 = vmatprep.subr.bf16.mxu0 0
    %1518 = vmatpush1.bf16.msra.mxu0 0
    %1519 = vmatprep.subr.bf16.mxu0 0
    %1520 = vmatpush1.bf16.msra.mxu0 0
    %1521 = vmatprep.subr.bf16.mxu0 0
    %1522 = vmatpush1.bf16.msra.mxu0 0
    %1523 = vmatprep.subr.bf16.mxu0 0
    %1524 = vmatpush1.bf16.msra.mxu0 0
    %1525 = vmatprep.mubr.bf16.mxu0 0
    %1526 = vmatmul.mubr.bf16.gmra.mrb[0].mxu0 %v1491
    %v1527 = vpop.f32.mrb[0].mxu0
    %v1528 = vadd.f32 %v1463, %v1527
    %v1529 = vpop.f32.mrb[0].mxu0
    %v1530 = vpop.f32.mrb[0].mxu0
    %v1531 = vadd.f32 %v1463, %v1530
    %v1532 = vpop.f32.mrb[0].mxu0
    %1533 = vdwg.mxu0
    %v1534 = vadd.f32 %v1528, %v1361
    %v1535 = vadd.f32 %v1531, %v1362
    %v1536 = vld [vmem:[%s17] sm:$0x1]
    %v1537 = vld [vmem:[%s18] sm:$0x1]
    %v1538 = vsel %vm205, %v1534, 0.0
    %1539 = vadd.xlane.f32.xlu0 %v1538
    %v1540 = vpop.xlane.xlu0 %1539
    %v1541 = vsel %vm205, %v1535, 0.0
    %1542 = vadd.xlane.f32.xlu0 %v1541
    %v1543 = vpop.xlane.xlu0 %1542
    %v1544 = vmul.f32 %v1540, %v212
    %v1545 = vmul.f32 %v1543, %v212
    %v1546 = vsub.f32 %v1534, %v1544
    %v1547 = vsub.f32 %v1535, %v1545
    %v1548 = vmul.f32 %v1546, %v1546
    %v1549 = vmul.f32 %v1547, %v1547
    %v1550 = vsel %vm205, %v1548, 0.0
    %1551 = vadd.xlane.f32.xlu0 %v1550
    %v1552 = vpop.xlane.xlu0 %1551
    %v1553 = vsel %vm205, %v1549, 0.0
    %1554 = vadd.xlane.f32.xlu0 %v1553
    %v1555 = vpop.xlane.xlu0 %1554
    %v1556 = vmul.f32 %v1552, %v212
    %v1557 = vmul.f32 %v1555, %v212
    %v1558 = vadd.f32 %v1556, 1e-12
    %v1559 = vadd.f32 %v1557, 1e-12
    %v1560 = vrsqrt.pop %v1558
    %v1561 = vrsqrt.pop %v1559
    %v1562 = vmul.f32 %v1546, %v1560
    %v1563 = vmul.f32 %v1547, %v1561
    %v1565 = vlaneseq
    %v1566 = vshrl.u32 %v1565, 7
    %v1567 = vsub.s32 0, %v1566
    %v1568 = vrot.slane %v1536, %v1567
    %v1570 = vmul.f32 %v1562, %v1568
    %v1571 = vmul.f32 %v1563, %v1568
    %v1573 = vlaneseq
    %v1574 = vshrl.u32 %v1573, 7
    %v1575 = vsub.s32 0, %v1574
    %v1576 = vrot.slane %v1537, %v1575
    %v1578 = vadd.f32 %v1570, %v1576
    %v1579 = vadd.f32 %v1571, %v1576
    %s1580 = scalar_lea.vmem %s7, 16
    %v1581 = vld [vmem:[%s1580] sm:$0xf]
    %v1582 = vld [vmem:[%s1580 + $0x4] sm:$0xf]
    %v1583 = vld [vmem:[%s1580 + $0x8] sm:$0xf]
    %v1584 = vld [vmem:[%s1580 + $0xc] sm:$0xf]
    %v1585 = vpack.c.bf16 %v1579, %v1578
    %s1586 = scalar_lea.vmem %s8, 1
    %v1587 = vld [vmem:[%s1586] sm:$0x1]
    %v1589 = vlaneseq
    %v1590 = vshrl.u32 %v1589, 7
    %v1591 = vsub.s32 0, %v1590
    %v1592 = vrot.slane %v1587, %v1591
    %v1598 = vunpack.c.l.b16 %v1581
    %v1599 = vunpack.c.l.b16 %v1582
    %v1600 = vunpack.c.l.b16 %v1583
    %v1601 = vunpack.c.l.b16 %v1584
    %v1602 = vpack.c.b16 %v1599, %v1598
    %v1603 = vpack.c.b16 %v1601, %v1600
    %v1607 = vsel %vm205, %v1585, 0
    %1609 = vmatprep.subr.bf16.mxu0 0
    %1610 = vmatpush1.bf16.msra.mxu0 %v1602
    %1611 = vmatprep.subr.bf16.mxu0 0
    %1612 = vmatpush1.bf16.msra.mxu0 %v1603
    %1613 = vmatprep.subr.bf16.mxu0 0
    %1614 = vmatpush1.bf16.msra.mxu0 0
    %1615 = vmatprep.subr.bf16.mxu0 0
    %1616 = vmatpush1.bf16.msra.mxu0 0
    %1617 = vmatprep.subr.bf16.mxu0 0
    %1618 = vmatpush1.bf16.msra.mxu0 0
    %1619 = vmatprep.subr.bf16.mxu0 0
    %1620 = vmatpush1.bf16.msra.mxu0 0
    %1621 = vmatprep.subr.bf16.mxu0 0
    %1622 = vmatpush1.bf16.msra.mxu0 0
    %1623 = vmatprep.subr.bf16.mxu0 0
    %1624 = vmatpush1.bf16.msra.mxu0 0
    %1625 = vmatprep.subr.bf16.mxu0 0
    %1626 = vmatpush1.bf16.msra.mxu0 0
    %1627 = vmatprep.subr.bf16.mxu0 0
    %1628 = vmatpush1.bf16.msra.mxu0 0
    %1629 = vmatprep.subr.bf16.mxu0 0
    %1630 = vmatpush1.bf16.msra.mxu0 0
    %1631 = vmatprep.subr.bf16.mxu0 0
    %1632 = vmatpush1.bf16.msra.mxu0 0
    %1633 = vmatprep.subr.bf16.mxu0 0
    %1634 = vmatpush1.bf16.msra.mxu0 0
    %1635 = vmatprep.subr.bf16.mxu0 0
    %1636 = vmatpush1.bf16.msra.mxu0 0
    %1637 = vmatprep.subr.bf16.mxu0 0
    %1638 = vmatpush1.bf16.msra.mxu0 0
    %1639 = vmatprep.subr.bf16.mxu0 0
    %1640 = vmatpush1.bf16.msra.mxu0 0
    %1641 = vmatprep.mubr.bf16.mxu0 0
    %1642 = vmatmul.mubr.bf16.gmra.mrb[0].mxu0 %v1607
    %v1643 = vpop.f32.mrb[0].mxu0
    %v1644 = vadd.f32 %v1592, %v1643
    %v1645 = vpop.f32.mrb[0].mxu0
    %v1646 = vpop.f32.mrb[0].mxu0
    %v1647 = vadd.f32 %v1592, %v1646
    %v1648 = vpop.f32.mrb[0].mxu0
    %1649 = vdwg.mxu0
    %v1650 = vpack.c.bf16 %v1644, %v1644
    %v1651 = vpack.c.bf16 %v1647, %v1647
    %1653 = vrot.lane.b32.xlu0 %v1650, 96
    %v1654 = vpop.permute.xlu0 %1653
    %v1656 = vsel %vm340, %v1650, 0
    %v1659 = vsel %vm340, %v1654, 0
    %1661 = vmatprep.subr.bf16.mxu0 0
    %1662 = vmatpush1.bf16.xpose.msra.mxu0 %v1659
    %1663 = vmatprep.subr.bf16.mxu0 0
    %1664 = vmatpush1.bf16.xpose.msra.mxu0 0
    %1665 = vmatprep.subr.bf16.mxu0 0
    %1666 = vmatpush1.bf16.xpose.msra.mxu0 0
    %1667 = vmatprep.subr.bf16.mxu0 0
    %1668 = vmatpush1.bf16.xpose.msra.mxu0 0
    %1669 = vmatprep.subr.bf16.mxu0 0
    %1670 = vmatpush1.bf16.xpose.msra.mxu0 0
    %1671 = vmatprep.subr.bf16.mxu0 0
    %1672 = vmatpush1.bf16.xpose.msra.mxu0 0
    %1673 = vmatprep.subr.bf16.mxu0 0
    %1674 = vmatpush1.bf16.xpose.msra.mxu0 0
    %1675 = vmatprep.subr.bf16.mxu0 0
    %1676 = vmatpush1.bf16.xpose.msra.mxu0 0
    %1677 = vmatprep.subr.bf16.mxu0 0
    %1678 = vmatpush1.bf16.xpose.msra.mxu0 0
    %1679 = vmatprep.subr.bf16.mxu0 0
    %1680 = vmatpush1.bf16.xpose.msra.mxu0 0
    %1681 = vmatprep.subr.bf16.mxu0 0
    %1682 = vmatpush1.bf16.xpose.msra.mxu0 0
    %1683 = vmatprep.subr.bf16.mxu0 0
    %1684 = vmatpush1.bf16.xpose.msra.mxu0 0
    %1685 = vmatprep.subr.bf16.mxu0 0
    %1686 = vmatpush1.bf16.xpose.msra.mxu0 0
    %1687 = vmatprep.subr.bf16.mxu0 0
    %1688 = vmatpush1.bf16.xpose.msra.mxu0 0
    %1689 = vmatprep.subr.bf16.mxu0 0
    %1690 = vmatpush1.bf16.xpose.msra.mxu0 0
    %1691 = vmatprep.subr.bf16.mxu0 0
    %1692 = vmatpush1.bf16.xpose.msra.mxu0 0
    %1693 = vmatprep.mubr.bf16.mxu0 0
    %1694 = vmatmul.mubr.bf16.gmra.mrb[0].mxu0 %v1656
    %v1695 = vpop.f32.mrb[0].mxu0
    %v1696 = vadd.f32 %v330, %v1695
    %v1697 = vpop.f32.mrb[0].mxu0
    %v1698 = vpop.f32.mrb[0].mxu0
    %v1699 = vpop.f32.mrb[0].mxu0
    %1700 = vdwg.mxu0
    %1702 = vrot.lane.b32.xlu0 %v1651, 96
    %v1703 = vpop.permute.xlu0 %1702
    %v1705 = vsel %vm340, %v1651, 0
    %v1708 = vsel %vm340, %v1703, 0
    %1710 = vmatprep.subr.bf16.mxu0 0
    %1711 = vmatpush1.bf16.xpose.msra.mxu0 %v1708
    %1712 = vmatprep.subr.bf16.mxu0 0
    %1713 = vmatpush1.bf16.xpose.msra.mxu0 0
    %1714 = vmatprep.subr.bf16.mxu0 0
    %1715 = vmatpush1.bf16.xpose.msra.mxu0 0
    %1716 = vmatprep.subr.bf16.mxu0 0
    %1717 = vmatpush1.bf16.xpose.msra.mxu0 0
    %1718 = vmatprep.subr.bf16.mxu0 0
    %1719 = vmatpush1.bf16.xpose.msra.mxu0 0
    %1720 = vmatprep.subr.bf16.mxu0 0
    %1721 = vmatpush1.bf16.xpose.msra.mxu0 0
    %1722 = vmatprep.subr.bf16.mxu0 0
    %1723 = vmatpush1.bf16.xpose.msra.mxu0 0
    %1724 = vmatprep.subr.bf16.mxu0 0
    %1725 = vmatpush1.bf16.xpose.msra.mxu0 0
    %1726 = vmatprep.subr.bf16.mxu0 0
    %1727 = vmatpush1.bf16.xpose.msra.mxu0 0
    %1728 = vmatprep.subr.bf16.mxu0 0
    %1729 = vmatpush1.bf16.xpose.msra.mxu0 0
    %1730 = vmatprep.subr.bf16.mxu0 0
    %1731 = vmatpush1.bf16.xpose.msra.mxu0 0
    %1732 = vmatprep.subr.bf16.mxu0 0
    %1733 = vmatpush1.bf16.xpose.msra.mxu0 0
    %1734 = vmatprep.subr.bf16.mxu0 0
    %1735 = vmatpush1.bf16.xpose.msra.mxu0 0
    %1736 = vmatprep.subr.bf16.mxu0 0
    %1737 = vmatpush1.bf16.xpose.msra.mxu0 0
    %1738 = vmatprep.subr.bf16.mxu0 0
    %1739 = vmatpush1.bf16.xpose.msra.mxu0 0
    %1740 = vmatprep.subr.bf16.mxu0 0
    %1741 = vmatpush1.bf16.xpose.msra.mxu0 0
    %1742 = vmatprep.mubr.bf16.mxu0 0
    %1743 = vmatmul.mubr.bf16.gmra.mrb[0].mxu0 %v1705
    %v1744 = vpop.f32.mrb[0].mxu0
    %v1745 = vadd.f32 %v334, %v1744
    %v1746 = vpop.f32.mrb[0].mxu0
    %v1747 = vpop.f32.mrb[0].mxu0
    %v1748 = vpop.f32.mrb[0].mxu0
    %1749 = vdwg.mxu0
    %v1750 = vsel %vm340, %v1696, -inf
    %1751 = vmax.xlane.f32.xlu0 %v1750
    %v1752 = vpop.xlane.xlu0 %1751
    %v1753 = vsel %vm340, %v1745, -inf
    %1754 = vmax.xlane.f32.xlu0 %v1753
    %v1755 = vpop.xlane.xlu0 %1754
    %v1756 = vsub.f32 %v1696, %v1752
    %v1757 = vsub.f32 %v1745, %v1755
    %v1758 = vmul.f32 %v1756, 1.442695
    %v1759 = vpow.pop %v1758
    %v1760 = vmul.f32 %v1757, 1.442695
    %v1761 = vpow.pop %v1760
    %v1762 = vsel %vm340, %v1759, 0.0
    %1763 = vadd.xlane.f32.xlu0 %v1762
    %v1764 = vpop.xlane.xlu0 %1763
    %v1765 = vsel %vm340, %v1761, 0.0
    %1766 = vadd.xlane.f32.xlu0 %v1765
    %v1767 = vpop.xlane.xlu0 %1766
    %v1768 = vrcp.pop %v1764
    %v1769 = vrcp.pop %v1767
    %v1770 = vmul.f32 %v1759, %v1768
    %v1771 = vmul.f32 %v1761, %v1769
    %v1772 = vpack.c.bf16 %v1770, %v1770
    %v1773 = vpack.c.bf16 %v1771, %v1771
    %1774 = vrot.lane.b32.xlu0 %v1650, 64
    %v1775 = vpop.permute.xlu0 %1774
    %v1777 = vsel %vm340, %v1772, 0
    %v1780 = vsel %vm465, %v1775, 0
    %1782 = vmatprep.subr.bf16.mxu0 0
    %1783 = vmatpush1.bf16.msra.mxu0 %v1780
    %1784 = vmatprep.subr.bf16.mxu0 0
    %1785 = vmatpush1.bf16.msra.mxu0 0
    %1786 = vmatprep.subr.bf16.mxu0 0
    %1787 = vmatpush1.bf16.msra.mxu0 0
    %1788 = vmatprep.subr.bf16.mxu0 0
    %1789 = vmatpush1.bf16.msra.mxu0 0
    %1790 = vmatprep.subr.bf16.mxu0 0
    %1791 = vmatpush1.bf16.msra.mxu0 0
    %1792 = vmatprep.subr.bf16.mxu0 0
    %1793 = vmatpush1.bf16.msra.mxu0 0
    %1794 = vmatprep.subr.bf16.mxu0 0
    %1795 = vmatpush1.bf16.msra.mxu0 0
    %1796 = vmatprep.subr.bf16.mxu0 0
    %1797 = vmatpush1.bf16.msra.mxu0 0
    %1798 = vmatprep.subr.bf16.mxu0 0
    %1799 = vmatpush1.bf16.msra.mxu0 0
    %1800 = vmatprep.subr.bf16.mxu0 0
    %1801 = vmatpush1.bf16.msra.mxu0 0
    %1802 = vmatprep.subr.bf16.mxu0 0
    %1803 = vmatpush1.bf16.msra.mxu0 0
    %1804 = vmatprep.subr.bf16.mxu0 0
    %1805 = vmatpush1.bf16.msra.mxu0 0
    %1806 = vmatprep.subr.bf16.mxu0 0
    %1807 = vmatpush1.bf16.msra.mxu0 0
    %1808 = vmatprep.subr.bf16.mxu0 0
    %1809 = vmatpush1.bf16.msra.mxu0 0
    %1810 = vmatprep.subr.bf16.mxu0 0
    %1811 = vmatpush1.bf16.msra.mxu0 0
    %1812 = vmatprep.subr.bf16.mxu0 0
    %1813 = vmatpush1.bf16.msra.mxu0 0
    %1814 = vmatprep.mubr.bf16.mxu0 0
    %1815 = vmatmul.mubr.bf16.gmra.mrb[0].mxu0 %v1777
    %v1816 = vpop.f32.mrb[0].mxu0
    %v1817 = vadd.f32 0.0, %v1816
    %v1818 = vpop.f32.mrb[0].mxu0
    %v1819 = vpop.f32.mrb[0].mxu0
    %v1820 = vpop.f32.mrb[0].mxu0
    %1821 = vdwg.mxu0
    %1822 = vrot.lane.b32.xlu0 %v1651, 64
    %v1823 = vpop.permute.xlu0 %1822
    %v1825 = vsel %vm340, %v1773, 0
    %v1828 = vsel %vm465, %v1823, 0
    %1830 = vmatprep.subr.bf16.mxu0 0
    %1831 = vmatpush1.bf16.msra.mxu0 %v1828
    %1832 = vmatprep.subr.bf16.mxu0 0
    %1833 = vmatpush1.bf16.msra.mxu0 0
    %1834 = vmatprep.subr.bf16.mxu0 0
    %1835 = vmatpush1.bf16.msra.mxu0 0
    %1836 = vmatprep.subr.bf16.mxu0 0
    %1837 = vmatpush1.bf16.msra.mxu0 0
    %1838 = vmatprep.subr.bf16.mxu0 0
    %1839 = vmatpush1.bf16.msra.mxu0 0
    %1840 = vmatprep.subr.bf16.mxu0 0
    %1841 = vmatpush1.bf16.msra.mxu0 0
    %1842 = vmatprep.subr.bf16.mxu0 0
    %1843 = vmatpush1.bf16.msra.mxu0 0
    %1844 = vmatprep.subr.bf16.mxu0 0
    %1845 = vmatpush1.bf16.msra.mxu0 0
    %1846 = vmatprep.subr.bf16.mxu0 0
    %1847 = vmatpush1.bf16.msra.mxu0 0
    %1848 = vmatprep.subr.bf16.mxu0 0
    %1849 = vmatpush1.bf16.msra.mxu0 0
    %1850 = vmatprep.subr.bf16.mxu0 0
    %1851 = vmatpush1.bf16.msra.mxu0 0
    %1852 = vmatprep.subr.bf16.mxu0 0
    %1853 = vmatpush1.bf16.msra.mxu0 0
    %1854 = vmatprep.subr.bf16.mxu0 0
    %1855 = vmatpush1.bf16.msra.mxu0 0
    %1856 = vmatprep.subr.bf16.mxu0 0
    %1857 = vmatpush1.bf16.msra.mxu0 0
    %1858 = vmatprep.subr.bf16.mxu0 0
    %1859 = vmatpush1.bf16.msra.mxu0 0
    %1860 = vmatprep.subr.bf16.mxu0 0
    %1861 = vmatpush1.bf16.msra.mxu0 0
    %1862 = vmatprep.mubr.bf16.mxu0 0
    %1863 = vmatmul.mubr.bf16.gmra.mrb[0].mxu0 %v1825
    %v1864 = vpop.f32.mrb[0].mxu0
    %v1865 = vadd.f32 0.0, %v1864
    %v1866 = vpop.f32.mrb[0].mxu0
    %v1867 = vpop.f32.mrb[0].mxu0
    %v1868 = vpop.f32.mrb[0].mxu0
    %1869 = vdwg.mxu0
    %1870 = vrot.lane.b32.xlu0 %v1650, 120
    %v1871 = vpop.permute.xlu0 %1870
    %1872 = vrot.lane.b32.xlu0 %v1650, 88
    %v1873 = vpop.permute.xlu0 %1872
    %v1875 = vsel %vm340, %v1871, 0
    %v1878 = vsel %vm340, %v1873, 0
    %1880 = vmatprep.subr.bf16.mxu0 0
    %1881 = vmatpush1.bf16.xpose.msra.mxu0 %v1878
    %1882 = vmatprep.subr.bf16.mxu0 0
    %1883 = vmatpush1.bf16.xpose.msra.mxu0 0
    %1884 = vmatprep.subr.bf16.mxu0 0
    %1885 = vmatpush1.bf16.xpose.msra.mxu0 0
    %1886 = vmatprep.subr.bf16.mxu0 0
    %1887 = vmatpush1.bf16.xpose.msra.mxu0 0
    %1888 = vmatprep.subr.bf16.mxu0 0
    %1889 = vmatpush1.bf16.xpose.msra.mxu0 0
    %1890 = vmatprep.subr.bf16.mxu0 0
    %1891 = vmatpush1.bf16.xpose.msra.mxu0 0
    %1892 = vmatprep.subr.bf16.mxu0 0
    %1893 = vmatpush1.bf16.xpose.msra.mxu0 0
    %1894 = vmatprep.subr.bf16.mxu0 0
    %1895 = vmatpush1.bf16.xpose.msra.mxu0 0
    %1896 = vmatprep.subr.bf16.mxu0 0
    %1897 = vmatpush1.bf16.xpose.msra.mxu0 0
    %1898 = vmatprep.subr.bf16.mxu0 0
    %1899 = vmatpush1.bf16.xpose.msra.mxu0 0
    %1900 = vmatprep.subr.bf16.mxu0 0
    %1901 = vmatpush1.bf16.xpose.msra.mxu0 0
    %1902 = vmatprep.subr.bf16.mxu0 0
    %1903 = vmatpush1.bf16.xpose.msra.mxu0 0
    %1904 = vmatprep.subr.bf16.mxu0 0
    %1905 = vmatpush1.bf16.xpose.msra.mxu0 0
    %1906 = vmatprep.subr.bf16.mxu0 0
    %1907 = vmatpush1.bf16.xpose.msra.mxu0 0
    %1908 = vmatprep.subr.bf16.mxu0 0
    %1909 = vmatpush1.bf16.xpose.msra.mxu0 0
    %1910 = vmatprep.subr.bf16.mxu0 0
    %1911 = vmatpush1.bf16.xpose.msra.mxu0 0
    %1912 = vmatprep.mubr.bf16.mxu0 0
    %1913 = vmatmul.mubr.bf16.gmra.mrb[0].mxu0 %v1875
    %v1914 = vpop.f32.mrb[0].mxu0
    %v1915 = vadd.f32 %v330, %v1914
    %v1916 = vpop.f32.mrb[0].mxu0
    %v1917 = vpop.f32.mrb[0].mxu0
    %v1918 = vpop.f32.mrb[0].mxu0
    %1919 = vdwg.mxu0
    %1920 = vrot.lane.b32.xlu0 %v1651, 120
    %v1921 = vpop.permute.xlu0 %1920
    %1922 = vrot.lane.b32.xlu0 %v1651, 88
    %v1923 = vpop.permute.xlu0 %1922
    %v1925 = vsel %vm340, %v1921, 0
    %v1928 = vsel %vm340, %v1923, 0
    %1930 = vmatprep.subr.bf16.mxu0 0
    %1931 = vmatpush1.bf16.xpose.msra.mxu0 %v1928
    %1932 = vmatprep.subr.bf16.mxu0 0
    %1933 = vmatpush1.bf16.xpose.msra.mxu0 0
    %1934 = vmatprep.subr.bf16.mxu0 0
    %1935 = vmatpush1.bf16.xpose.msra.mxu0 0
    %1936 = vmatprep.subr.bf16.mxu0 0
    %1937 = vmatpush1.bf16.xpose.msra.mxu0 0
    %1938 = vmatprep.subr.bf16.mxu0 0
    %1939 = vmatpush1.bf16.xpose.msra.mxu0 0
    %1940 = vmatprep.subr.bf16.mxu0 0
    %1941 = vmatpush1.bf16.xpose.msra.mxu0 0
    %1942 = vmatprep.subr.bf16.mxu0 0
    %1943 = vmatpush1.bf16.xpose.msra.mxu0 0
    %1944 = vmatprep.subr.bf16.mxu0 0
    %1945 = vmatpush1.bf16.xpose.msra.mxu0 0
    %1946 = vmatprep.subr.bf16.mxu0 0
    %1947 = vmatpush1.bf16.xpose.msra.mxu0 0
    %1948 = vmatprep.subr.bf16.mxu0 0
    %1949 = vmatpush1.bf16.xpose.msra.mxu0 0
    %1950 = vmatprep.subr.bf16.mxu0 0
    %1951 = vmatpush1.bf16.xpose.msra.mxu0 0
    %1952 = vmatprep.subr.bf16.mxu0 0
    %1953 = vmatpush1.bf16.xpose.msra.mxu0 0
    %1954 = vmatprep.subr.bf16.mxu0 0
    %1955 = vmatpush1.bf16.xpose.msra.mxu0 0
    %1956 = vmatprep.subr.bf16.mxu0 0
    %1957 = vmatpush1.bf16.xpose.msra.mxu0 0
    %1958 = vmatprep.subr.bf16.mxu0 0
    %1959 = vmatpush1.bf16.xpose.msra.mxu0 0
    %1960 = vmatprep.subr.bf16.mxu0 0
    %1961 = vmatpush1.bf16.xpose.msra.mxu0 0
    %1962 = vmatprep.mubr.bf16.mxu0 0
    %1963 = vmatmul.mubr.bf16.gmra.mrb[0].mxu0 %v1925
    %v1964 = vpop.f32.mrb[0].mxu0
    %v1965 = vadd.f32 %v334, %v1964
    %v1966 = vpop.f32.mrb[0].mxu0
    %v1967 = vpop.f32.mrb[0].mxu0
    %v1968 = vpop.f32.mrb[0].mxu0
    %1969 = vdwg.mxu0
    %v1970 = vsel %vm340, %v1915, -inf
    %1971 = vmax.xlane.f32.xlu0 %v1970
    %v1972 = vpop.xlane.xlu0 %1971
    %v1973 = vsel %vm340, %v1965, -inf
    %1974 = vmax.xlane.f32.xlu0 %v1973
    %v1975 = vpop.xlane.xlu0 %1974
    %v1976 = vsub.f32 %v1915, %v1972
    %v1977 = vsub.f32 %v1965, %v1975
    %v1978 = vmul.f32 %v1976, 1.442695
    %v1979 = vpow.pop %v1978
    %v1980 = vmul.f32 %v1977, 1.442695
    %v1981 = vpow.pop %v1980
    %v1982 = vsel %vm340, %v1979, 0.0
    %1983 = vadd.xlane.f32.xlu0 %v1982
    %v1984 = vpop.xlane.xlu0 %1983
    %v1985 = vsel %vm340, %v1981, 0.0
    %1986 = vadd.xlane.f32.xlu0 %v1985
    %v1987 = vpop.xlane.xlu0 %1986
    %v1988 = vrcp.pop %v1984
    %v1989 = vrcp.pop %v1987
    %v1990 = vmul.f32 %v1979, %v1988
    %v1991 = vmul.f32 %v1981, %v1989
    %v1992 = vpack.c.bf16 %v1990, %v1990
    %v1993 = vpack.c.bf16 %v1991, %v1991
    %1994 = vrot.lane.b32.xlu0 %v1650, 56
    %v1995 = vpop.permute.xlu0 %1994
    %v1997 = vsel %vm340, %v1992, 0
    %v2000 = vsel %vm465, %v1995, 0
    %2002 = vmatprep.subr.bf16.mxu0 0
    %2003 = vmatpush1.bf16.msra.mxu0 %v2000
    %2004 = vmatprep.subr.bf16.mxu0 0
    %2005 = vmatpush1.bf16.msra.mxu0 0
    %2006 = vmatprep.subr.bf16.mxu0 0
    %2007 = vmatpush1.bf16.msra.mxu0 0
    %2008 = vmatprep.subr.bf16.mxu0 0
    %2009 = vmatpush1.bf16.msra.mxu0 0
    %2010 = vmatprep.subr.bf16.mxu0 0
    %2011 = vmatpush1.bf16.msra.mxu0 0
    %2012 = vmatprep.subr.bf16.mxu0 0
    %2013 = vmatpush1.bf16.msra.mxu0 0
    %2014 = vmatprep.subr.bf16.mxu0 0
    %2015 = vmatpush1.bf16.msra.mxu0 0
    %2016 = vmatprep.subr.bf16.mxu0 0
    %2017 = vmatpush1.bf16.msra.mxu0 0
    %2018 = vmatprep.subr.bf16.mxu0 0
    %2019 = vmatpush1.bf16.msra.mxu0 0
    %2020 = vmatprep.subr.bf16.mxu0 0
    %2021 = vmatpush1.bf16.msra.mxu0 0
    %2022 = vmatprep.subr.bf16.mxu0 0
    %2023 = vmatpush1.bf16.msra.mxu0 0
    %2024 = vmatprep.subr.bf16.mxu0 0
    %2025 = vmatpush1.bf16.msra.mxu0 0
    %2026 = vmatprep.subr.bf16.mxu0 0
    %2027 = vmatpush1.bf16.msra.mxu0 0
    %2028 = vmatprep.subr.bf16.mxu0 0
    %2029 = vmatpush1.bf16.msra.mxu0 0
    %2030 = vmatprep.subr.bf16.mxu0 0
    %2031 = vmatpush1.bf16.msra.mxu0 0
    %2032 = vmatprep.subr.bf16.mxu0 0
    %2033 = vmatpush1.bf16.msra.mxu0 0
    %2034 = vmatprep.mubr.bf16.mxu0 0
    %2035 = vmatmul.mubr.bf16.gmra.mrb[0].mxu0 %v1997
    %v2036 = vpop.f32.mrb[0].mxu0
    %v2037 = vadd.f32 0.0, %v2036
    %v2038 = vpop.f32.mrb[0].mxu0
    %v2039 = vpop.f32.mrb[0].mxu0
    %v2040 = vpop.f32.mrb[0].mxu0
    %2041 = vdwg.mxu0
    %2042 = vrot.lane.b32.xlu0 %v1651, 56
    %v2043 = vpop.permute.xlu0 %2042
    %v2045 = vsel %vm340, %v1993, 0
    %v2048 = vsel %vm465, %v2043, 0
    %2050 = vmatprep.subr.bf16.mxu0 0
    %2051 = vmatpush1.bf16.msra.mxu0 %v2048
    %2052 = vmatprep.subr.bf16.mxu0 0
    %2053 = vmatpush1.bf16.msra.mxu0 0
    %2054 = vmatprep.subr.bf16.mxu0 0
    %2055 = vmatpush1.bf16.msra.mxu0 0
    %2056 = vmatprep.subr.bf16.mxu0 0
    %2057 = vmatpush1.bf16.msra.mxu0 0
    %2058 = vmatprep.subr.bf16.mxu0 0
    %2059 = vmatpush1.bf16.msra.mxu0 0
    %2060 = vmatprep.subr.bf16.mxu0 0
    %2061 = vmatpush1.bf16.msra.mxu0 0
    %2062 = vmatprep.subr.bf16.mxu0 0
    %2063 = vmatpush1.bf16.msra.mxu0 0
    %2064 = vmatprep.subr.bf16.mxu0 0
    %2065 = vmatpush1.bf16.msra.mxu0 0
    %2066 = vmatprep.subr.bf16.mxu0 0
    %2067 = vmatpush1.bf16.msra.mxu0 0
    %2068 = vmatprep.subr.bf16.mxu0 0
    %2069 = vmatpush1.bf16.msra.mxu0 0
    %2070 = vmatprep.subr.bf16.mxu0 0
    %2071 = vmatpush1.bf16.msra.mxu0 0
    %2072 = vmatprep.subr.bf16.mxu0 0
    %2073 = vmatpush1.bf16.msra.mxu0 0
    %2074 = vmatprep.subr.bf16.mxu0 0
    %2075 = vmatpush1.bf16.msra.mxu0 0
    %2076 = vmatprep.subr.bf16.mxu0 0
    %2077 = vmatpush1.bf16.msra.mxu0 0
    %2078 = vmatprep.subr.bf16.mxu0 0
    %2079 = vmatpush1.bf16.msra.mxu0 0
    %2080 = vmatprep.subr.bf16.mxu0 0
    %2081 = vmatpush1.bf16.msra.mxu0 0
    %2082 = vmatprep.mubr.bf16.mxu0 0
    %2083 = vmatmul.mubr.bf16.gmra.mrb[0].mxu0 %v2045
    %v2084 = vpop.f32.mrb[0].mxu0
    %v2085 = vadd.f32 0.0, %v2084
    %v2086 = vpop.f32.mrb[0].mxu0
    %v2087 = vpop.f32.mrb[0].mxu0
    %v2088 = vpop.f32.mrb[0].mxu0
    %2089 = vdwg.mxu0
    %2090 = vrot.lane.b32.xlu0 %v1650, 112
    %v2091 = vpop.permute.xlu0 %2090
    %2092 = vrot.lane.b32.xlu0 %v1650, 80
    %v2093 = vpop.permute.xlu0 %2092
    %v2095 = vsel %vm340, %v2091, 0
    %v2098 = vsel %vm340, %v2093, 0
    %2100 = vmatprep.subr.bf16.mxu0 0
    %2101 = vmatpush1.bf16.xpose.msra.mxu0 %v2098
    %2102 = vmatprep.subr.bf16.mxu0 0
    %2103 = vmatpush1.bf16.xpose.msra.mxu0 0
    %2104 = vmatprep.subr.bf16.mxu0 0
    %2105 = vmatpush1.bf16.xpose.msra.mxu0 0
    %2106 = vmatprep.subr.bf16.mxu0 0
    %2107 = vmatpush1.bf16.xpose.msra.mxu0 0
    %2108 = vmatprep.subr.bf16.mxu0 0
    %2109 = vmatpush1.bf16.xpose.msra.mxu0 0
    %2110 = vmatprep.subr.bf16.mxu0 0
    %2111 = vmatpush1.bf16.xpose.msra.mxu0 0
    %2112 = vmatprep.subr.bf16.mxu0 0
    %2113 = vmatpush1.bf16.xpose.msra.mxu0 0
    %2114 = vmatprep.subr.bf16.mxu0 0
    %2115 = vmatpush1.bf16.xpose.msra.mxu0 0
    %2116 = vmatprep.subr.bf16.mxu0 0
    %2117 = vmatpush1.bf16.xpose.msra.mxu0 0
    %2118 = vmatprep.subr.bf16.mxu0 0
    %2119 = vmatpush1.bf16.xpose.msra.mxu0 0
    %2120 = vmatprep.subr.bf16.mxu0 0
    %2121 = vmatpush1.bf16.xpose.msra.mxu0 0
    %2122 = vmatprep.subr.bf16.mxu0 0
    %2123 = vmatpush1.bf16.xpose.msra.mxu0 0
    %2124 = vmatprep.subr.bf16.mxu0 0
    %2125 = vmatpush1.bf16.xpose.msra.mxu0 0
    %2126 = vmatprep.subr.bf16.mxu0 0
    %2127 = vmatpush1.bf16.xpose.msra.mxu0 0
    %2128 = vmatprep.subr.bf16.mxu0 0
    %2129 = vmatpush1.bf16.xpose.msra.mxu0 0
    %2130 = vmatprep.subr.bf16.mxu0 0
    %2131 = vmatpush1.bf16.xpose.msra.mxu0 0
    %2132 = vmatprep.mubr.bf16.mxu0 0
    %2133 = vmatmul.mubr.bf16.gmra.mrb[0].mxu0 %v2095
    %v2134 = vpop.f32.mrb[0].mxu0
    %v2135 = vadd.f32 %v330, %v2134
    %v2136 = vpop.f32.mrb[0].mxu0
    %v2137 = vpop.f32.mrb[0].mxu0
    %v2138 = vpop.f32.mrb[0].mxu0
    %2139 = vdwg.mxu0
    %2140 = vrot.lane.b32.xlu0 %v1651, 112
    %v2141 = vpop.permute.xlu0 %2140
    %2142 = vrot.lane.b32.xlu0 %v1651, 80
    %v2143 = vpop.permute.xlu0 %2142
    %v2145 = vsel %vm340, %v2141, 0
    %v2148 = vsel %vm340, %v2143, 0
    %2150 = vmatprep.subr.bf16.mxu0 0
    %2151 = vmatpush1.bf16.xpose.msra.mxu0 %v2148
    %2152 = vmatprep.subr.bf16.mxu0 0
    %2153 = vmatpush1.bf16.xpose.msra.mxu0 0
    %2154 = vmatprep.subr.bf16.mxu0 0
    %2155 = vmatpush1.bf16.xpose.msra.mxu0 0
    %2156 = vmatprep.subr.bf16.mxu0 0
    %2157 = vmatpush1.bf16.xpose.msra.mxu0 0
    %2158 = vmatprep.subr.bf16.mxu0 0
    %2159 = vmatpush1.bf16.xpose.msra.mxu0 0
    %2160 = vmatprep.subr.bf16.mxu0 0
    %2161 = vmatpush1.bf16.xpose.msra.mxu0 0
    %2162 = vmatprep.subr.bf16.mxu0 0
    %2163 = vmatpush1.bf16.xpose.msra.mxu0 0
    %2164 = vmatprep.subr.bf16.mxu0 0
    %2165 = vmatpush1.bf16.xpose.msra.mxu0 0
    %2166 = vmatprep.subr.bf16.mxu0 0
    %2167 = vmatpush1.bf16.xpose.msra.mxu0 0
    %2168 = vmatprep.subr.bf16.mxu0 0
    %2169 = vmatpush1.bf16.xpose.msra.mxu0 0
    %2170 = vmatprep.subr.bf16.mxu0 0
    %2171 = vmatpush1.bf16.xpose.msra.mxu0 0
    %2172 = vmatprep.subr.bf16.mxu0 0
    %2173 = vmatpush1.bf16.xpose.msra.mxu0 0
    %2174 = vmatprep.subr.bf16.mxu0 0
    %2175 = vmatpush1.bf16.xpose.msra.mxu0 0
    %2176 = vmatprep.subr.bf16.mxu0 0
    %2177 = vmatpush1.bf16.xpose.msra.mxu0 0
    %2178 = vmatprep.subr.bf16.mxu0 0
    %2179 = vmatpush1.bf16.xpose.msra.mxu0 0
    %2180 = vmatprep.subr.bf16.mxu0 0
    %2181 = vmatpush1.bf16.xpose.msra.mxu0 0
    %2182 = vmatprep.mubr.bf16.mxu0 0
    %2183 = vmatmul.mubr.bf16.gmra.mrb[0].mxu0 %v2145
    %v2184 = vpop.f32.mrb[0].mxu0
    %v2185 = vadd.f32 %v334, %v2184
    %v2186 = vpop.f32.mrb[0].mxu0
    %v2187 = vpop.f32.mrb[0].mxu0
    %v2188 = vpop.f32.mrb[0].mxu0
    %2189 = vdwg.mxu0
    %v2190 = vsel %vm340, %v2135, -inf
    %2191 = vmax.xlane.f32.xlu0 %v2190
    %v2192 = vpop.xlane.xlu0 %2191
    %v2193 = vsel %vm340, %v2185, -inf
    %2194 = vmax.xlane.f32.xlu0 %v2193
    %v2195 = vpop.xlane.xlu0 %2194
    %v2196 = vsub.f32 %v2135, %v2192
    %v2197 = vsub.f32 %v2185, %v2195
    %v2198 = vmul.f32 %v2196, 1.442695
    %v2199 = vpow.pop %v2198
    %v2200 = vmul.f32 %v2197, 1.442695
    %v2201 = vpow.pop %v2200
    %v2202 = vsel %vm340, %v2199, 0.0
    %2203 = vadd.xlane.f32.xlu0 %v2202
    %v2204 = vpop.xlane.xlu0 %2203
    %v2205 = vsel %vm340, %v2201, 0.0
    %2206 = vadd.xlane.f32.xlu0 %v2205
    %v2207 = vpop.xlane.xlu0 %2206
    %v2208 = vrcp.pop %v2204
    %v2209 = vrcp.pop %v2207
    %v2210 = vmul.f32 %v2199, %v2208
    %v2211 = vmul.f32 %v2201, %v2209
    %v2212 = vpack.c.bf16 %v2210, %v2210
    %v2213 = vpack.c.bf16 %v2211, %v2211
    %2214 = vrot.lane.b32.xlu0 %v1650, 48
    %v2215 = vpop.permute.xlu0 %2214
    %v2217 = vsel %vm340, %v2212, 0
    %v2220 = vsel %vm465, %v2215, 0
    %2222 = vmatprep.subr.bf16.mxu0 0
    %2223 = vmatpush1.bf16.msra.mxu0 %v2220
    %2224 = vmatprep.subr.bf16.mxu0 0
    %2225 = vmatpush1.bf16.msra.mxu0 0
    %2226 = vmatprep.subr.bf16.mxu0 0
    %2227 = vmatpush1.bf16.msra.mxu0 0
    %2228 = vmatprep.subr.bf16.mxu0 0
    %2229 = vmatpush1.bf16.msra.mxu0 0
    %2230 = vmatprep.subr.bf16.mxu0 0
    %2231 = vmatpush1.bf16.msra.mxu0 0
    %2232 = vmatprep.subr.bf16.mxu0 0
    %2233 = vmatpush1.bf16.msra.mxu0 0
    %2234 = vmatprep.subr.bf16.mxu0 0
    %2235 = vmatpush1.bf16.msra.mxu0 0
    %2236 = vmatprep.subr.bf16.mxu0 0
    %2237 = vmatpush1.bf16.msra.mxu0 0
    %2238 = vmatprep.subr.bf16.mxu0 0
    %2239 = vmatpush1.bf16.msra.mxu0 0
    %2240 = vmatprep.subr.bf16.mxu0 0
    %2241 = vmatpush1.bf16.msra.mxu0 0
    %2242 = vmatprep.subr.bf16.mxu0 0
    %2243 = vmatpush1.bf16.msra.mxu0 0
    %2244 = vmatprep.subr.bf16.mxu0 0
    %2245 = vmatpush1.bf16.msra.mxu0 0
    %2246 = vmatprep.subr.bf16.mxu0 0
    %2247 = vmatpush1.bf16.msra.mxu0 0
    %2248 = vmatprep.subr.bf16.mxu0 0
    %2249 = vmatpush1.bf16.msra.mxu0 0
    %2250 = vmatprep.subr.bf16.mxu0 0
    %2251 = vmatpush1.bf16.msra.mxu0 0
    %2252 = vmatprep.subr.bf16.mxu0 0
    %2253 = vmatpush1.bf16.msra.mxu0 0
    %2254 = vmatprep.mubr.bf16.mxu0 0
    %2255 = vmatmul.mubr.bf16.gmra.mrb[0].mxu0 %v2217
    %v2256 = vpop.f32.mrb[0].mxu0
    %v2257 = vadd.f32 0.0, %v2256
    %v2258 = vpop.f32.mrb[0].mxu0
    %v2259 = vpop.f32.mrb[0].mxu0
    %v2260 = vpop.f32.mrb[0].mxu0
    %2261 = vdwg.mxu0
    %2262 = vrot.lane.b32.xlu0 %v1651, 48
    %v2263 = vpop.permute.xlu0 %2262
    %v2265 = vsel %vm340, %v2213, 0
    %v2268 = vsel %vm465, %v2263, 0
    %2270 = vmatprep.subr.bf16.mxu0 0
    %2271 = vmatpush1.bf16.msra.mxu0 %v2268
    %2272 = vmatprep.subr.bf16.mxu0 0
    %2273 = vmatpush1.bf16.msra.mxu0 0
    %2274 = vmatprep.subr.bf16.mxu0 0
    %2275 = vmatpush1.bf16.msra.mxu0 0
    %2276 = vmatprep.subr.bf16.mxu0 0
    %2277 = vmatpush1.bf16.msra.mxu0 0
    %2278 = vmatprep.subr.bf16.mxu0 0
    %2279 = vmatpush1.bf16.msra.mxu0 0
    %2280 = vmatprep.subr.bf16.mxu0 0
    %2281 = vmatpush1.bf16.msra.mxu0 0
    %2282 = vmatprep.subr.bf16.mxu0 0
    %2283 = vmatpush1.bf16.msra.mxu0 0
    %2284 = vmatprep.subr.bf16.mxu0 0
    %2285 = vmatpush1.bf16.msra.mxu0 0
    %2286 = vmatprep.subr.bf16.mxu0 0
    %2287 = vmatpush1.bf16.msra.mxu0 0
    %2288 = vmatprep.subr.bf16.mxu0 0
    %2289 = vmatpush1.bf16.msra.mxu0 0
    %2290 = vmatprep.subr.bf16.mxu0 0
    %2291 = vmatpush1.bf16.msra.mxu0 0
    %2292 = vmatprep.subr.bf16.mxu0 0
    %2293 = vmatpush1.bf16.msra.mxu0 0
    %2294 = vmatprep.subr.bf16.mxu0 0
    %2295 = vmatpush1.bf16.msra.mxu0 0
    %2296 = vmatprep.subr.bf16.mxu0 0
    %2297 = vmatpush1.bf16.msra.mxu0 0
    %2298 = vmatprep.subr.bf16.mxu0 0
    %2299 = vmatpush1.bf16.msra.mxu0 0
    %2300 = vmatprep.subr.bf16.mxu0 0
    %2301 = vmatpush1.bf16.msra.mxu0 0
    %2302 = vmatprep.mubr.bf16.mxu0 0
    %2303 = vmatmul.mubr.bf16.gmra.mrb[0].mxu0 %v2265
    %v2304 = vpop.f32.mrb[0].mxu0
    %v2305 = vadd.f32 0.0, %v2304
    %v2306 = vpop.f32.mrb[0].mxu0
    %v2307 = vpop.f32.mrb[0].mxu0
    %v2308 = vpop.f32.mrb[0].mxu0
    %2309 = vdwg.mxu0
    %2310 = vrot.lane.b32.xlu0 %v1650, 104
    %v2311 = vpop.permute.xlu0 %2310
    %2312 = vrot.lane.b32.xlu0 %v1650, 72
    %v2313 = vpop.permute.xlu0 %2312
    %v2315 = vsel %vm340, %v2311, 0
    %v2318 = vsel %vm340, %v2313, 0
    %2320 = vmatprep.subr.bf16.mxu0 0
    %2321 = vmatpush1.bf16.xpose.msra.mxu0 %v2318
    %2322 = vmatprep.subr.bf16.mxu0 0
    %2323 = vmatpush1.bf16.xpose.msra.mxu0 0
    %2324 = vmatprep.subr.bf16.mxu0 0
    %2325 = vmatpush1.bf16.xpose.msra.mxu0 0
    %2326 = vmatprep.subr.bf16.mxu0 0
    %2327 = vmatpush1.bf16.xpose.msra.mxu0 0
    %2328 = vmatprep.subr.bf16.mxu0 0
    %2329 = vmatpush1.bf16.xpose.msra.mxu0 0
    %2330 = vmatprep.subr.bf16.mxu0 0
    %2331 = vmatpush1.bf16.xpose.msra.mxu0 0
    %2332 = vmatprep.subr.bf16.mxu0 0
    %2333 = vmatpush1.bf16.xpose.msra.mxu0 0
    %2334 = vmatprep.subr.bf16.mxu0 0
    %2335 = vmatpush1.bf16.xpose.msra.mxu0 0
    %2336 = vmatprep.subr.bf16.mxu0 0
    %2337 = vmatpush1.bf16.xpose.msra.mxu0 0
    %2338 = vmatprep.subr.bf16.mxu0 0
    %2339 = vmatpush1.bf16.xpose.msra.mxu0 0
    %2340 = vmatprep.subr.bf16.mxu0 0
    %2341 = vmatpush1.bf16.xpose.msra.mxu0 0
    %2342 = vmatprep.subr.bf16.mxu0 0
    %2343 = vmatpush1.bf16.xpose.msra.mxu0 0
    %2344 = vmatprep.subr.bf16.mxu0 0
    %2345 = vmatpush1.bf16.xpose.msra.mxu0 0
    %2346 = vmatprep.subr.bf16.mxu0 0
    %2347 = vmatpush1.bf16.xpose.msra.mxu0 0
    %2348 = vmatprep.subr.bf16.mxu0 0
    %2349 = vmatpush1.bf16.xpose.msra.mxu0 0
    %2350 = vmatprep.subr.bf16.mxu0 0
    %2351 = vmatpush1.bf16.xpose.msra.mxu0 0
    %2352 = vmatprep.mubr.bf16.mxu0 0
    %2353 = vmatmul.mubr.bf16.gmra.mrb[0].mxu0 %v2315
    %v2354 = vpop.f32.mrb[0].mxu0
    %v2355 = vadd.f32 %v330, %v2354
    %v2356 = vpop.f32.mrb[0].mxu0
    %v2357 = vpop.f32.mrb[0].mxu0
    %v2358 = vpop.f32.mrb[0].mxu0
    %2359 = vdwg.mxu0
    %2360 = vrot.lane.b32.xlu0 %v1651, 104
    %v2361 = vpop.permute.xlu0 %2360
    %2362 = vrot.lane.b32.xlu0 %v1651, 72
    %v2363 = vpop.permute.xlu0 %2362
    %v2365 = vsel %vm340, %v2361, 0
    %v2368 = vsel %vm340, %v2363, 0
    %2370 = vmatprep.subr.bf16.mxu0 0
    %2371 = vmatpush1.bf16.xpose.msra.mxu0 %v2368
    %2372 = vmatprep.subr.bf16.mxu0 0
    %2373 = vmatpush1.bf16.xpose.msra.mxu0 0
    %2374 = vmatprep.subr.bf16.mxu0 0
    %2375 = vmatpush1.bf16.xpose.msra.mxu0 0
    %2376 = vmatprep.subr.bf16.mxu0 0
    %2377 = vmatpush1.bf16.xpose.msra.mxu0 0
    %2378 = vmatprep.subr.bf16.mxu0 0
    %2379 = vmatpush1.bf16.xpose.msra.mxu0 0
    %2380 = vmatprep.subr.bf16.mxu0 0
    %2381 = vmatpush1.bf16.xpose.msra.mxu0 0
    %2382 = vmatprep.subr.bf16.mxu0 0
    %2383 = vmatpush1.bf16.xpose.msra.mxu0 0
    %2384 = vmatprep.subr.bf16.mxu0 0
    %2385 = vmatpush1.bf16.xpose.msra.mxu0 0
    %2386 = vmatprep.subr.bf16.mxu0 0
    %2387 = vmatpush1.bf16.xpose.msra.mxu0 0
    %2388 = vmatprep.subr.bf16.mxu0 0
    %2389 = vmatpush1.bf16.xpose.msra.mxu0 0
    %2390 = vmatprep.subr.bf16.mxu0 0
    %2391 = vmatpush1.bf16.xpose.msra.mxu0 0
    %2392 = vmatprep.subr.bf16.mxu0 0
    %2393 = vmatpush1.bf16.xpose.msra.mxu0 0
    %2394 = vmatprep.subr.bf16.mxu0 0
    %2395 = vmatpush1.bf16.xpose.msra.mxu0 0
    %2396 = vmatprep.subr.bf16.mxu0 0
    %2397 = vmatpush1.bf16.xpose.msra.mxu0 0
    %2398 = vmatprep.subr.bf16.mxu0 0
    %2399 = vmatpush1.bf16.xpose.msra.mxu0 0
    %2400 = vmatprep.subr.bf16.mxu0 0
    %2401 = vmatpush1.bf16.xpose.msra.mxu0 0
    %2402 = vmatprep.mubr.bf16.mxu0 0
    %2403 = vmatmul.mubr.bf16.gmra.mrb[0].mxu0 %v2365
    %v2404 = vpop.f32.mrb[0].mxu0
    %v2405 = vadd.f32 %v334, %v2404
    %v2406 = vpop.f32.mrb[0].mxu0
    %v2407 = vpop.f32.mrb[0].mxu0
    %v2408 = vpop.f32.mrb[0].mxu0
    %2409 = vdwg.mxu0
    %v2410 = vsel %vm340, %v2355, -inf
    %2411 = vmax.xlane.f32.xlu0 %v2410
    %v2412 = vpop.xlane.xlu0 %2411
    %v2413 = vsel %vm340, %v2405, -inf
    %2414 = vmax.xlane.f32.xlu0 %v2413
    %v2415 = vpop.xlane.xlu0 %2414
    %v2416 = vsub.f32 %v2355, %v2412
    %v2417 = vsub.f32 %v2405, %v2415
    %v2418 = vmul.f32 %v2416, 1.442695
    %v2419 = vpow.pop %v2418
    %v2420 = vmul.f32 %v2417, 1.442695
    %v2421 = vpow.pop %v2420
    %v2422 = vsel %vm340, %v2419, 0.0
    %2423 = vadd.xlane.f32.xlu0 %v2422
    %v2424 = vpop.xlane.xlu0 %2423
    %v2425 = vsel %vm340, %v2421, 0.0
    %2426 = vadd.xlane.f32.xlu0 %v2425
    %v2427 = vpop.xlane.xlu0 %2426
    %v2428 = vrcp.pop %v2424
    %v2429 = vrcp.pop %v2427
    %v2430 = vmul.f32 %v2419, %v2428
    %v2431 = vmul.f32 %v2421, %v2429
    %v2432 = vpack.c.bf16 %v2430, %v2430
    %v2433 = vpack.c.bf16 %v2431, %v2431
    %2434 = vrot.lane.b32.xlu0 %v1650, 40
    %v2435 = vpop.permute.xlu0 %2434
    %v2437 = vsel %vm340, %v2432, 0
    %v2440 = vsel %vm465, %v2435, 0
    %2442 = vmatprep.subr.bf16.mxu0 0
    %2443 = vmatpush1.bf16.msra.mxu0 %v2440
    %2444 = vmatprep.subr.bf16.mxu0 0
    %2445 = vmatpush1.bf16.msra.mxu0 0
    %2446 = vmatprep.subr.bf16.mxu0 0
    %2447 = vmatpush1.bf16.msra.mxu0 0
    %2448 = vmatprep.subr.bf16.mxu0 0
    %2449 = vmatpush1.bf16.msra.mxu0 0
    %2450 = vmatprep.subr.bf16.mxu0 0
    %2451 = vmatpush1.bf16.msra.mxu0 0
    %2452 = vmatprep.subr.bf16.mxu0 0
    %2453 = vmatpush1.bf16.msra.mxu0 0
    %2454 = vmatprep.subr.bf16.mxu0 0
    %2455 = vmatpush1.bf16.msra.mxu0 0
    %2456 = vmatprep.subr.bf16.mxu0 0
    %2457 = vmatpush1.bf16.msra.mxu0 0
    %2458 = vmatprep.subr.bf16.mxu0 0
    %2459 = vmatpush1.bf16.msra.mxu0 0
    %2460 = vmatprep.subr.bf16.mxu0 0
    %2461 = vmatpush1.bf16.msra.mxu0 0
    %2462 = vmatprep.subr.bf16.mxu0 0
    %2463 = vmatpush1.bf16.msra.mxu0 0
    %2464 = vmatprep.subr.bf16.mxu0 0
    %2465 = vmatpush1.bf16.msra.mxu0 0
    %2466 = vmatprep.subr.bf16.mxu0 0
    %2467 = vmatpush1.bf16.msra.mxu0 0
    %2468 = vmatprep.subr.bf16.mxu0 0
    %2469 = vmatpush1.bf16.msra.mxu0 0
    %2470 = vmatprep.subr.bf16.mxu0 0
    %2471 = vmatpush1.bf16.msra.mxu0 0
    %2472 = vmatprep.subr.bf16.mxu0 0
    %2473 = vmatpush1.bf16.msra.mxu0 0
    %2474 = vmatprep.mubr.bf16.mxu0 0
    %2475 = vmatmul.mubr.bf16.gmra.mrb[0].mxu0 %v2437
    %v2476 = vpop.f32.mrb[0].mxu0
    %v2477 = vadd.f32 0.0, %v2476
    %v2478 = vpop.f32.mrb[0].mxu0
    %v2479 = vpop.f32.mrb[0].mxu0
    %v2480 = vpop.f32.mrb[0].mxu0
    %2481 = vdwg.mxu0
    %2482 = vrot.lane.b32.xlu0 %v1651, 40
    %v2483 = vpop.permute.xlu0 %2482
    %v2485 = vsel %vm340, %v2433, 0
    %v2488 = vsel %vm465, %v2483, 0
    %2490 = vmatprep.subr.bf16.mxu0 0
    %2491 = vmatpush1.bf16.msra.mxu0 %v2488
    %2492 = vmatprep.subr.bf16.mxu0 0
    %2493 = vmatpush1.bf16.msra.mxu0 0
    %2494 = vmatprep.subr.bf16.mxu0 0
    %2495 = vmatpush1.bf16.msra.mxu0 0
    %2496 = vmatprep.subr.bf16.mxu0 0
    %2497 = vmatpush1.bf16.msra.mxu0 0
    %2498 = vmatprep.subr.bf16.mxu0 0
    %2499 = vmatpush1.bf16.msra.mxu0 0
    %2500 = vmatprep.subr.bf16.mxu0 0
    %2501 = vmatpush1.bf16.msra.mxu0 0
    %2502 = vmatprep.subr.bf16.mxu0 0
    %2503 = vmatpush1.bf16.msra.mxu0 0
    %2504 = vmatprep.subr.bf16.mxu0 0
    %2505 = vmatpush1.bf16.msra.mxu0 0
    %2506 = vmatprep.subr.bf16.mxu0 0
    %2507 = vmatpush1.bf16.msra.mxu0 0
    %2508 = vmatprep.subr.bf16.mxu0 0
    %2509 = vmatpush1.bf16.msra.mxu0 0
    %2510 = vmatprep.subr.bf16.mxu0 0
    %2511 = vmatpush1.bf16.msra.mxu0 0
    %2512 = vmatprep.subr.bf16.mxu0 0
    %2513 = vmatpush1.bf16.msra.mxu0 0
    %2514 = vmatprep.subr.bf16.mxu0 0
    %2515 = vmatpush1.bf16.msra.mxu0 0
    %2516 = vmatprep.subr.bf16.mxu0 0
    %2517 = vmatpush1.bf16.msra.mxu0 0
    %2518 = vmatprep.subr.bf16.mxu0 0
    %2519 = vmatpush1.bf16.msra.mxu0 0
    %2520 = vmatprep.subr.bf16.mxu0 0
    %2521 = vmatpush1.bf16.msra.mxu0 0
    %2522 = vmatprep.mubr.bf16.mxu0 0
    %2523 = vmatmul.mubr.bf16.gmra.mrb[0].mxu0 %v2485
    %v2524 = vpop.f32.mrb[0].mxu0
    %v2525 = vadd.f32 0.0, %v2524
    %v2526 = vpop.f32.mrb[0].mxu0
    %v2527 = vpop.f32.mrb[0].mxu0
    %v2528 = vpop.f32.mrb[0].mxu0
    %2529 = vdwg.mxu0
    %2532 = vrot.lane.b32.xlu0 %v2037, 8
    %v2533 = vpop.permute.xlu0 %2532
    %2534 = vrot.lane.b32.xlu0 %v2085, 8
    %v2535 = vpop.permute.xlu0 %2534
    %2540 = vrot.lane.b32.xlu0 %v2257, 16
    %v2541 = vpop.permute.xlu0 %2540
    %2542 = vrot.lane.b32.xlu0 %v2305, 16
    %v2543 = vpop.permute.xlu0 %2542
    %2548 = vrot.lane.b32.xlu0 %v2477, 24
    %v2549 = vpop.permute.xlu0 %2548
    %2550 = vrot.lane.b32.xlu0 %v2525, 24
    %v2551 = vpop.permute.xlu0 %2550
    %v2554 = vsel %vm340, %v1817, %v2533
    %v2555 = vsel %vm340, %v1865, %v2535
    %v2556 = vsel %vm1243, %v2554, %v2541
    %v2557 = vsel %vm1243, %v2555, %v2543
    %v2558 = vsel %vm1246, %v2556, %v2549
    %v2559 = vsel %vm1246, %v2557, %v2551
    %s2560 = scalar_lea.vmem %s9, 16
    %v2561 = vld [vmem:[%s2560] sm:$0xf]
    %v2562 = vld [vmem:[%s2560 + $0x4] sm:$0xf]
    %v2563 = vld [vmem:[%s2560 + $0x8] sm:$0xf]
    %v2564 = vld [vmem:[%s2560 + $0xc] sm:$0xf]
    %v2565 = vpack.c.bf16 %v2559, %v2558
    %s2566 = scalar_lea.vmem %s10, 1
    %v2567 = vld [vmem:[%s2566] sm:$0x1]
    %v2569 = vlaneseq
    %v2570 = vshrl.u32 %v2569, 7
    %v2571 = vsub.s32 0, %v2570
    %v2572 = vrot.slane %v2567, %v2571
    %v2578 = vunpack.c.l.b16 %v2561
    %v2579 = vunpack.c.l.b16 %v2562
    %v2580 = vunpack.c.l.b16 %v2563
    %v2581 = vunpack.c.l.b16 %v2564
    %v2582 = vpack.c.b16 %v2579, %v2578
    %v2583 = vpack.c.b16 %v2581, %v2580
    %v2587 = vsel %vm205, %v2565, 0
    %2589 = vmatprep.subr.bf16.mxu0 0
    %2590 = vmatpush1.bf16.msra.mxu0 %v2582
    %2591 = vmatprep.subr.bf16.mxu0 0
    %2592 = vmatpush1.bf16.msra.mxu0 %v2583
    %2593 = vmatprep.subr.bf16.mxu0 0
    %2594 = vmatpush1.bf16.msra.mxu0 0
    %2595 = vmatprep.subr.bf16.mxu0 0
    %2596 = vmatpush1.bf16.msra.mxu0 0
    %2597 = vmatprep.subr.bf16.mxu0 0
    %2598 = vmatpush1.bf16.msra.mxu0 0
    %2599 = vmatprep.subr.bf16.mxu0 0
    %2600 = vmatpush1.bf16.msra.mxu0 0
    %2601 = vmatprep.subr.bf16.mxu0 0
    %2602 = vmatpush1.bf16.msra.mxu0 0
    %2603 = vmatprep.subr.bf16.mxu0 0
    %2604 = vmatpush1.bf16.msra.mxu0 0
    %2605 = vmatprep.subr.bf16.mxu0 0
    %2606 = vmatpush1.bf16.msra.mxu0 0
    %2607 = vmatprep.subr.bf16.mxu0 0
    %2608 = vmatpush1.bf16.msra.mxu0 0
    %2609 = vmatprep.subr.bf16.mxu0 0
    %2610 = vmatpush1.bf16.msra.mxu0 0
    %2611 = vmatprep.subr.bf16.mxu0 0
    %2612 = vmatpush1.bf16.msra.mxu0 0
    %2613 = vmatprep.subr.bf16.mxu0 0
    %2614 = vmatpush1.bf16.msra.mxu0 0
    %2615 = vmatprep.subr.bf16.mxu0 0
    %2616 = vmatpush1.bf16.msra.mxu0 0
    %2617 = vmatprep.subr.bf16.mxu0 0
    %2618 = vmatpush1.bf16.msra.mxu0 0
    %2619 = vmatprep.subr.bf16.mxu0 0
    %2620 = vmatpush1.bf16.msra.mxu0 0
    %2621 = vmatprep.mubr.bf16.mxu0 0
    %2622 = vmatmul.mubr.bf16.gmra.mrb[0].mxu0 %v2587
    %v2623 = vpop.f32.mrb[0].mxu0
    %v2624 = vadd.f32 %v2572, %v2623
    %v2625 = vpop.f32.mrb[0].mxu0
    %v2626 = vpop.f32.mrb[0].mxu0
    %v2627 = vadd.f32 %v2572, %v2626
    %v2628 = vpop.f32.mrb[0].mxu0
    %2629 = vdwg.mxu0
    %v2630 = vadd.f32 %v2624, %v1578
    %v2631 = vadd.f32 %v2627, %v1579
    %s2632 = scalar_lea.vmem %s11, 1
    %v2633 = vld [vmem:[%s2632] sm:$0x1]
    %s2634 = scalar_lea.vmem %s12, 1
    %v2635 = vld [vmem:[%s2634] sm:$0x1]
    %v2636 = vsel %vm205, %v2630, 0.0
    %2637 = vadd.xlane.f32.xlu0 %v2636
    %v2638 = vpop.xlane.xlu0 %2637
    %v2639 = vsel %vm205, %v2631, 0.0
    %2640 = vadd.xlane.f32.xlu0 %v2639
    %v2641 = vpop.xlane.xlu0 %2640
    %v2642 = vmul.f32 %v2638, %v212
    %v2643 = vmul.f32 %v2641, %v212
    %v2644 = vsub.f32 %v2630, %v2642
    %v2645 = vsub.f32 %v2631, %v2643
    %v2646 = vmul.f32 %v2644, %v2644
    %v2647 = vmul.f32 %v2645, %v2645
    %v2648 = vsel %vm205, %v2646, 0.0
    %2649 = vadd.xlane.f32.xlu0 %v2648
    %v2650 = vpop.xlane.xlu0 %2649
    %v2651 = vsel %vm205, %v2647, 0.0
    %2652 = vadd.xlane.f32.xlu0 %v2651
    %v2653 = vpop.xlane.xlu0 %2652
    %v2654 = vmul.f32 %v2650, %v212
    %v2655 = vmul.f32 %v2653, %v212
    %v2656 = vadd.f32 %v2654, 1e-12
    %v2657 = vadd.f32 %v2655, 1e-12
    %v2658 = vrsqrt.pop %v2656
    %v2659 = vrsqrt.pop %v2657
    %v2660 = vmul.f32 %v2644, %v2658
    %v2661 = vmul.f32 %v2645, %v2659
    %v2663 = vlaneseq
    %v2664 = vshrl.u32 %v2663, 7
    %v2665 = vsub.s32 0, %v2664
    %v2666 = vrot.slane %v2633, %v2665
    %v2668 = vmul.f32 %v2660, %v2666
    %v2669 = vmul.f32 %v2661, %v2666
    %v2671 = vlaneseq
    %v2672 = vshrl.u32 %v2671, 7
    %v2673 = vsub.s32 0, %v2672
    %v2674 = vrot.slane %v2635, %v2673
    %v2676 = vadd.f32 %v2668, %v2674
    %v2677 = vadd.f32 %v2669, %v2674
    %s2678 = scalar_lea.vmem %s13, 16
    %v2679 = vld [vmem:[%s2678] sm:$0xf]
    %v2680 = vld [vmem:[%s2678 + $0x4] sm:$0xf]
    %v2681 = vld [vmem:[%s2678 + $0x8] sm:$0xf]
    %v2682 = vld [vmem:[%s2678 + $0xc] sm:$0xf]
    %v2683 = vpack.c.bf16 %v2677, %v2676
    %s2684 = scalar_lea.vmem %s14, 1
    %v2685 = vld [vmem:[%s2684] sm:$0x1]
    %v2687 = vlaneseq
    %v2688 = vshrl.u32 %v2687, 7
    %v2689 = vsub.s32 0, %v2688
    %v2690 = vrot.slane %v2685, %v2689
    %v2696 = vunpack.c.l.b16 %v2679
    %v2697 = vunpack.c.l.b16 %v2680
    %v2698 = vunpack.c.l.b16 %v2681
    %v2699 = vunpack.c.l.b16 %v2682
    %v2700 = vpack.c.b16 %v2697, %v2696
    %v2701 = vpack.c.b16 %v2699, %v2698
    %v2705 = vsel %vm205, %v2683, 0
    %2707 = vmatprep.subr.bf16.mxu0 0
    %2708 = vmatpush1.bf16.msra.mxu0 %v2700
    %2709 = vmatprep.subr.bf16.mxu0 0
    %2710 = vmatpush1.bf16.msra.mxu0 %v2701
    %2711 = vmatprep.subr.bf16.mxu0 0
    %2712 = vmatpush1.bf16.msra.mxu0 0
    %2713 = vmatprep.subr.bf16.mxu0 0
    %2714 = vmatpush1.bf16.msra.mxu0 0
    %2715 = vmatprep.subr.bf16.mxu0 0
    %2716 = vmatpush1.bf16.msra.mxu0 0
    %2717 = vmatprep.subr.bf16.mxu0 0
    %2718 = vmatpush1.bf16.msra.mxu0 0
    %2719 = vmatprep.subr.bf16.mxu0 0
    %2720 = vmatpush1.bf16.msra.mxu0 0
    %2721 = vmatprep.subr.bf16.mxu0 0
    %2722 = vmatpush1.bf16.msra.mxu0 0
    %2723 = vmatprep.subr.bf16.mxu0 0
    %2724 = vmatpush1.bf16.msra.mxu0 0
    %2725 = vmatprep.subr.bf16.mxu0 0
    %2726 = vmatpush1.bf16.msra.mxu0 0
    %2727 = vmatprep.subr.bf16.mxu0 0
    %2728 = vmatpush1.bf16.msra.mxu0 0
    %2729 = vmatprep.subr.bf16.mxu0 0
    %2730 = vmatpush1.bf16.msra.mxu0 0
    %2731 = vmatprep.subr.bf16.mxu0 0
    %2732 = vmatpush1.bf16.msra.mxu0 0
    %2733 = vmatprep.subr.bf16.mxu0 0
    %2734 = vmatpush1.bf16.msra.mxu0 0
    %2735 = vmatprep.subr.bf16.mxu0 0
    %2736 = vmatpush1.bf16.msra.mxu0 0
    %2737 = vmatprep.subr.bf16.mxu0 0
    %2738 = vmatpush1.bf16.msra.mxu0 0
    %2739 = vmatprep.mubr.bf16.mxu0 0
    %2740 = vmatmul.mubr.bf16.gmra.mrb[0].mxu0 %v2705
    %v2741 = vpop.f32.mrb[0].mxu0
    %v2742 = vadd.f32 %v2690, %v2741
    %v2743 = vpop.f32.mrb[0].mxu0
    %v2744 = vpop.f32.mrb[0].mxu0
    %v2745 = vadd.f32 %v2690, %v2744
    %v2746 = vpop.f32.mrb[0].mxu0
    %2747 = vdwg.mxu0
    %v2748 = vmul.f32 %v2742, %v2742
    %v2749 = vmul.f32 %v2745, %v2745
    %v2750 = vmul.f32 %v2742, %v2748
    %v2751 = vmul.f32 %v2745, %v2749
    %v2752 = vmul.f32 %v2750, 0.044715
    %v2753 = vmul.f32 %v2751, 0.044715
    %v2754 = vadd.f32 %v2742, %v2752
    %v2755 = vadd.f32 %v2745, %v2753
    %v2756 = vmul.f32 %v2754, 0.7978846
    %v2757 = vmul.f32 %v2755, 0.7978846
    %v2758 = vtanh.pop %v2756
    %v2759 = vtanh.pop %v2757
    %v2760 = vadd.f32 %v2758, 1.0
    %v2761 = vadd.f32 %v2759, 1.0
    %v2762 = vmul.f32 %v2760, 0.5
    %v2763 = vmul.f32 %v2761, 0.5
    %v2764 = vmul.f32 %v2742, %v2762
    %v2765 = vmul.f32 %v2745, %v2763
    %s2766 = scalar_lea.vmem %s15, 32
    %v2767 = vld [vmem:[%s2766] sm:$0xf]
    %v2768 = vld [vmem:[%s2766 + $0x4] sm:$0xf]
    %v2769 = vld [vmem:[%s2766 + $0x8] sm:$0xf]
    %v2770 = vld [vmem:[%s2766 + $0xc] sm:$0xf]
    %v2771 = vld [vmem:[%s2766 + $0x10] sm:$0xf]
    %v2772 = vld [vmem:[%s2766 + $0x14] sm:$0xf]
    %v2773 = vld [vmem:[%s2766 + $0x18] sm:$0xf]
    %v2774 = vld [vmem:[%s2766 + $0x1c] sm:$0xf]
    %v2775 = vpack.c.bf16 %v2765, %v2764
    %s2776 = scalar_lea.vmem %s16, 1
    %v2777 = vld [vmem:[%s2776] sm:$0x1]
    %v2779 = vlaneseq
    %v2780 = vshrl.u32 %v2779, 7
    %v2781 = vsub.s32 0, %v2780
    %v2782 = vrot.slane %v2777, %v2781
    %v2792 = vunpack.c.l.b16 %v2767
    %v2793 = vunpack.c.l.b16 %v2768
    %v2794 = vunpack.c.l.b16 %v2769
    %v2795 = vunpack.c.l.b16 %v2770
    %v2796 = vunpack.c.l.b16 %v2771
    %v2797 = vunpack.c.l.b16 %v2772
    %v2798 = vunpack.c.l.b16 %v2773
    %v2799 = vunpack.c.l.b16 %v2774
    %v2800 = vpack.c.b16 %v2793, %v2792
    %v2801 = vpack.c.b16 %v2795, %v2794
    %v2802 = vpack.c.b16 %v2797, %v2796
    %v2803 = vpack.c.b16 %v2799, %v2798
    %v2809 = vsel %vm1489, %v2775, 0
    %2811 = vmatprep.subr.bf16.mxu0 0
    %2812 = vmatpush1.bf16.msra.mxu0 %v2800
    %2813 = vmatprep.subr.bf16.mxu0 0
    %2814 = vmatpush1.bf16.msra.mxu0 %v2801
    %2815 = vmatprep.subr.bf16.mxu0 0
    %2816 = vmatpush1.bf16.msra.mxu0 %v2802
    %2817 = vmatprep.subr.bf16.mxu0 0
    %2818 = vmatpush1.bf16.msra.mxu0 %v2803
    %2819 = vmatprep.subr.bf16.mxu0 0
    %2820 = vmatpush1.bf16.msra.mxu0 0
    %2821 = vmatprep.subr.bf16.mxu0 0
    %2822 = vmatpush1.bf16.msra.mxu0 0
    %2823 = vmatprep.subr.bf16.mxu0 0
    %2824 = vmatpush1.bf16.msra.mxu0 0
    %2825 = vmatprep.subr.bf16.mxu0 0
    %2826 = vmatpush1.bf16.msra.mxu0 0
    %2827 = vmatprep.subr.bf16.mxu0 0
    %2828 = vmatpush1.bf16.msra.mxu0 0
    %2829 = vmatprep.subr.bf16.mxu0 0
    %2830 = vmatpush1.bf16.msra.mxu0 0
    %2831 = vmatprep.subr.bf16.mxu0 0
    %2832 = vmatpush1.bf16.msra.mxu0 0
    %2833 = vmatprep.subr.bf16.mxu0 0
    %2834 = vmatpush1.bf16.msra.mxu0 0
    %2835 = vmatprep.subr.bf16.mxu0 0
    %2836 = vmatpush1.bf16.msra.mxu0 0
    %2837 = vmatprep.subr.bf16.mxu0 0
    %2838 = vmatpush1.bf16.msra.mxu0 0
    %2839 = vmatprep.subr.bf16.mxu0 0
    %2840 = vmatpush1.bf16.msra.mxu0 0
    %2841 = vmatprep.subr.bf16.mxu0 0
    %2842 = vmatpush1.bf16.msra.mxu0 0
    %2843 = vmatprep.mubr.bf16.mxu0 0
    %2844 = vmatmul.mubr.bf16.gmra.mrb[0].mxu0 %v2809
    %v2845 = vpop.f32.mrb[0].mxu0
    %v2846 = vadd.f32 %v2782, %v2845
    %v2847 = vpop.f32.mrb[0].mxu0
    %v2848 = vpop.f32.mrb[0].mxu0
    %v2849 = vadd.f32 %v2782, %v2848
    %v2850 = vpop.f32.mrb[0].mxu0
    %2851 = vdwg.mxu0
    %v2852 = vadd.f32 %v2846, %v2676
    %v2853 = vadd.f32 %v2849, %v2677
    %s2854 = scalar_lea.vmem %s17, 1
    %v2855 = vld [vmem:[%s2854] sm:$0x1]
    %s2856 = scalar_lea.vmem %s18, 1
    %v2857 = vld [vmem:[%s2856] sm:$0x1]
    %v2858 = vsel %vm205, %v2852, 0.0
    %2859 = vadd.xlane.f32.xlu0 %v2858
    %v2860 = vpop.xlane.xlu0 %2859
    %v2861 = vsel %vm205, %v2853, 0.0
    %2862 = vadd.xlane.f32.xlu0 %v2861
    %v2863 = vpop.xlane.xlu0 %2862
    %v2864 = vmul.f32 %v2860, %v212
    %v2865 = vmul.f32 %v2863, %v212
    %v2866 = vsub.f32 %v2852, %v2864
    %v2867 = vsub.f32 %v2853, %v2865
    %v2868 = vmul.f32 %v2866, %v2866
    %v2869 = vmul.f32 %v2867, %v2867
    %v2870 = vsel %vm205, %v2868, 0.0
    %2871 = vadd.xlane.f32.xlu0 %v2870
    %v2872 = vpop.xlane.xlu0 %2871
    %v2873 = vsel %vm205, %v2869, 0.0
    %2874 = vadd.xlane.f32.xlu0 %v2873
    %v2875 = vpop.xlane.xlu0 %2874
    %v2876 = vmul.f32 %v2872, %v212
    %v2877 = vmul.f32 %v2875, %v212
    %v2878 = vadd.f32 %v2876, 1e-12
    %v2879 = vadd.f32 %v2877, 1e-12
    %v2880 = vrsqrt.pop %v2878
    %v2881 = vrsqrt.pop %v2879
    %v2882 = vmul.f32 %v2866, %v2880
    %v2883 = vmul.f32 %v2867, %v2881
    %v2885 = vlaneseq
    %v2886 = vshrl.u32 %v2885, 7
    %v2887 = vsub.s32 0, %v2886
    %v2888 = vrot.slane %v2855, %v2887
    %v2890 = vmul.f32 %v2882, %v2888
    %v2891 = vmul.f32 %v2883, %v2888
    %v2893 = vlaneseq
    %v2894 = vshrl.u32 %v2893, 7
    %v2895 = vsub.s32 0, %v2894
    %v2896 = vrot.slane %v2857, %v2895
    %v2898 = vadd.f32 %v2890, %v2896
    %v2899 = vadd.f32 %v2891, %v2896
    %2900 = vst.msk [vmem:[#allocation2] sm:$0xff] %vm205, %v2898
    %2901 = vst.msk [vmem:[#allocation2 + $0x8] sm:$0xff] %vm205, %v2899
    %v2903 = vrot.slane %v2899, 7
    %vm2905 = vcmask 1040384
    %v2906 = vsel %vm2905, %v2898, %v2903
    %v2907 = vld [vmem:[%s19] sm:$0xf]
    %v2908 = vld [vmem:[%s19 + $0x4] sm:$0xf]
    %v2909 = vld [vmem:[%s19 + $0x8] sm:$0xf]
    %v2910 = vld [vmem:[%s19 + $0xc] sm:$0xf]
    %v2911 = vpack.c.bf16 %v2906, %v2906
    %v2912 = vld [vmem:[%s20] sm:$0x1]
    %v2914 = vlaneseq
    %v2915 = vshrl.u32 %v2914, 7
    %v2916 = vsub.s32 0, %v2915
    %v2917 = vrot.slane %v2912, %v2916
    %v2923 = vunpack.c.l.b16 %v2907
    %v2924 = vunpack.c.l.b16 %v2908
    %v2925 = vunpack.c.l.b16 %v2909
    %v2926 = vunpack.c.l.b16 %v2910
    %v2927 = vpack.c.b16 %v2924, %v2923
    %v2928 = vpack.c.b16 %v2926, %v2925
    %v2932 = vsel %vm205, %v2911, 0
    %2934 = vmatprep.subr.bf16.mxu0 0
    %2935 = vmatpush1.bf16.msra.mxu0 %v2927
    %2936 = vmatprep.subr.bf16.mxu0 0
    %2937 = vmatpush1.bf16.msra.mxu0 %v2928
    %2938 = vmatprep.subr.bf16.mxu0 0
    %2939 = vmatpush1.bf16.msra.mxu0 0
    %2940 = vmatprep.subr.bf16.mxu0 0
    %2941 = vmatpush1.bf16.msra.mxu0 0
    %2942 = vmatprep.subr.bf16.mxu0 0
    %2943 = vmatpush1.bf16.msra.mxu0 0
    %2944 = vmatprep.subr.bf16.mxu0 0
    %2945 = vmatpush1.bf16.msra.mxu0 0
    %2946 = vmatprep.subr.bf16.mxu0 0
    %2947 = vmatpush1.bf16.msra.mxu0 0
    %2948 = vmatprep.subr.bf16.mxu0 0
    %2949 = vmatpush1.bf16.msra.mxu0 0
    %2950 = vmatprep.subr.bf16.mxu0 0
    %2951 = vmatpush1.bf16.msra.mxu0 0
    %2952 = vmatprep.subr.bf16.mxu0 0
    %2953 = vmatpush1.bf16.msra.mxu0 0
    %2954 = vmatprep.subr.bf16.mxu0 0
    %2955 = vmatpush1.bf16.msra.mxu0 0
    %2956 = vmatprep.subr.bf16.mxu0 0
    %2957 = vmatpush1.bf16.msra.mxu0 0
    %2958 = vmatprep.subr.bf16.mxu0 0
    %2959 = vmatpush1.bf16.msra.mxu0 0
    %2960 = vmatprep.subr.bf16.mxu0 0
    %2961 = vmatpush1.bf16.msra.mxu0 0
    %2962 = vmatprep.subr.bf16.mxu0 0
    %2963 = vmatpush1.bf16.msra.mxu0 0
    %2964 = vmatprep.subr.bf16.mxu0 0
    %2965 = vmatpush1.bf16.msra.mxu0 0
    %2966 = vmatprep.mubr.bf16.mxu0 0
    %2967 = vmatmul.mubr.bf16.gmra.mrb[0].mxu0 %v2932
    %v2968 = vpop.f32.mrb[0].mxu0
    %v2969 = vadd.f32 %v2917, %v2968
    %v2970 = vpop.f32.mrb[0].mxu0
    %v2971 = vpop.f32.mrb[0].mxu0
    %v2972 = vpop.f32.mrb[0].mxu0
    %2973 = vdwg.mxu0
    %v2974 = vtanh.pop %v2969
    %vm2975 = vcmask 254976
    %2976 = vst.msk [vmem:[#allocation4] sm:$0x3] %vm2975, %v2974
    %v2977 = vld [vmem:[%s21] sm:$0xf]
    %v2978 = vld [vmem:[%s21 + $0x4] sm:$0xf]
    %v2979 = vld [vmem:[%s21 + $0x8] sm:$0xf]
    %v2980 = vld [vmem:[%s21 + $0xc] sm:$0xf]
    %v2981 = vpack.c.bf16 %v2974, %v2974
    %v2982 = vld [vmem:[%s22] sm:$0x1]
    %v2984 = vlaneseq
    %v2985 = vshrl.u32 %v2984, 7
    %v2986 = vsub.s32 0, %v2985
    %v2987 = vrot.slane %v2982, %v2986
    %v2993 = vunpack.c.l.b16 %v2977
    %v2994 = vunpack.c.l.b16 %v2978
    %v2995 = vunpack.c.l.b16 %v2979
    %v2996 = vunpack.c.l.b16 %v2980
    %v2997 = vpack.c.b16 %v2994, %v2993
    %v2998 = vpack.c.b16 %v2996, %v2995
    %v3002 = vsel %vm205, %v2981, 0
    %3004 = vmatprep.subr.bf16.mxu0 0
    %3005 = vmatpush1.bf16.msra.mxu0 %v2997
    %3006 = vmatprep.subr.bf16.mxu0 0
    %3007 = vmatpush1.bf16.msra.mxu0 %v2998
    %3008 = vmatprep.subr.bf16.mxu0 0
    %3009 = vmatpush1.bf16.msra.mxu0 0
    %3010 = vmatprep.subr.bf16.mxu0 0
    %3011 = vmatpush1.bf16.msra.mxu0 0
    %3012 = vmatprep.subr.bf16.mxu0 0
    %3013 = vmatpush1.bf16.msra.mxu0 0
    %3014 = vmatprep.subr.bf16.mxu0 0
    %3015 = vmatpush1.bf16.msra.mxu0 0
    %3016 = vmatprep.subr.bf16.mxu0 0
    %3017 = vmatpush1.bf16.msra.mxu0 0
    %3018 = vmatprep.subr.bf16.mxu0 0
    %3019 = vmatpush1.bf16.msra.mxu0 0
    %3020 = vmatprep.subr.bf16.mxu0 0
    %3021 = vmatpush1.bf16.msra.mxu0 0
    %3022 = vmatprep.subr.bf16.mxu0 0
    %3023 = vmatpush1.bf16.msra.mxu0 0
    %3024 = vmatprep.subr.bf16.mxu0 0
    %3025 = vmatpush1.bf16.msra.mxu0 0
    %3026 = vmatprep.subr.bf16.mxu0 0
    %3027 = vmatpush1.bf16.msra.mxu0 0
    %3028 = vmatprep.subr.bf16.mxu0 0
    %3029 = vmatpush1.bf16.msra.mxu0 0
    %3030 = vmatprep.subr.bf16.mxu0 0
    %3031 = vmatpush1.bf16.msra.mxu0 0
    %3032 = vmatprep.subr.bf16.mxu0 0
    %3033 = vmatpush1.bf16.msra.mxu0 0
    %3034 = vmatprep.subr.bf16.mxu0 0
    %3035 = vmatpush1.bf16.msra.mxu0 0
    %3036 = vmatprep.mubr.bf16.mxu0 0
    %3037 = vmatmul.mubr.bf16.gmra.mrb[0].mxu0 %v3002
    %v3038 = vpop.f32.mrb[0].mxu0
    %v3039 = vadd.f32 %v2987, %v3038
    %v3040 = vpop.f32.mrb[0].mxu0
    %v3041 = vpop.f32.mrb[0].mxu0
    %v3042 = vpop.f32.mrb[0].mxu0
    %3043 = vdwg.mxu0
    %v3044 = vtanh.pop %v3039
    %v3045 = vld [vmem:[%s23] sm:$0xf]
    %v3046 = vld [vmem:[%s23 + $0x4] sm:$0xf]
    %v3047 = vld [vmem:[%s23 + $0x8] sm:$0xf]
    %v3048 = vld [vmem:[%s23 + $0xc] sm:$0xf]
    %v3049 = vpack.c.bf16 %v3044, %v3044
    %v3050 = vld [vmem:[%s24] sm:$0x1]
    %v3052 = vlaneseq
    %v3053 = vshrl.u32 %v3052, 7
    %v3054 = vsub.s32 0, %v3053
    %v3055 = vrot.slane %v3050, %v3054
    %v3061 = vunpack.c.l.b16 %v3045
    %v3062 = vunpack.c.l.b16 %v3046
    %v3063 = vunpack.c.l.b16 %v3047
    %v3064 = vunpack.c.l.b16 %v3048
    %v3065 = vpack.c.b16 %v3062, %v3061
    %v3066 = vpack.c.b16 %v3064, %v3063
    %v3070 = vsel %vm205, %v3049, 0
    %3072 = vmatprep.subr.bf16.mxu0 0
    %3073 = vmatpush1.bf16.msra.mxu0 %v3065
    %3074 = vmatprep.subr.bf16.mxu0 0
    %3075 = vmatpush1.bf16.msra.mxu0 %v3066
    %3076 = vmatprep.subr.bf16.mxu0 0
    %3077 = vmatpush1.bf16.msra.mxu0 0
    %3078 = vmatprep.subr.bf16.mxu0 0
    %3079 = vmatpush1.bf16.msra.mxu0 0
    %3080 = vmatprep.subr.bf16.mxu0 0
    %3081 = vmatpush1.bf16.msra.mxu0 0
    %3082 = vmatprep.subr.bf16.mxu0 0
    %3083 = vmatpush1.bf16.msra.mxu0 0
    %3084 = vmatprep.subr.bf16.mxu0 0
    %3085 = vmatpush1.bf16.msra.mxu0 0
    %3086 = vmatprep.subr.bf16.mxu0 0
    %3087 = vmatpush1.bf16.msra.mxu0 0
    %3088 = vmatprep.subr.bf16.mxu0 0
    %3089 = vmatpush1.bf16.msra.mxu0 0
    %3090 = vmatprep.subr.bf16.mxu0 0
    %3091 = vmatpush1.bf16.msra.mxu0 0
    %3092 = vmatprep.subr.bf16.mxu0 0
    %3093 = vmatpush1.bf16.msra.mxu0 0
    %3094 = vmatprep.subr.bf16.mxu0 0
    %3095 = vmatpush1.bf16.msra.mxu0 0
    %3096 = vmatprep.subr.bf16.mxu0 0
    %3097 = vmatpush1.bf16.msra.mxu0 0
    %3098 = vmatprep.subr.bf16.mxu0 0
    %3099 = vmatpush1.bf16.msra.mxu0 0
    %3100 = vmatprep.subr.bf16.mxu0 0
    %3101 = vmatpush1.bf16.msra.mxu0 0
    %3102 = vmatprep.subr.bf16.mxu0 0
    %3103 = vmatpush1.bf16.msra.mxu0 0
    %3104 = vmatprep.mubr.bf16.mxu0 0
    %3105 = vmatmul.mubr.bf16.gmra.mrb[0].mxu0 %v3070
    %v3106 = vpop.f32.mrb[0].mxu0
    %v3107 = vadd.f32 %v3055, %v3106
    %v3108 = vpop.f32.mrb[0].mxu0
    %v3109 = vpop.f32.mrb[0].mxu0
    %v3110 = vpop.f32.mrb[0].mxu0
    %3111 = vdwg.mxu0
    %3112 = vst [vmem:[#allocation6] sm:$0x3] %v3107
    // Predicated region
    $region102: #{bert_forward.1} parent=1 // pred_check
      _
    $region103: #{bert_forward.1} parent=1 // pred_check_branch
      %3114 = sbr.rel (0) target = $region105
    $region104: #{bert_forward.1} parent=1 // pred_region
      %s3116 = ssub.s32 256, 256
      %3117 = vsyncadd [#allocation3], %s3116
      %s3118 = sshll.u32 [#allocation2], 4
      %s3119 = int_to_ptr.vmem [resolvable:$true] %s3118
      %3124 = dma.vmem_to_hbm [thread:$0]  %s3119, 256, %s25, [#allocation3], 128, 128, 8
    $region105: #{bert_forward.1} parent=1 // pred_fallthru
      _
    // Predicated region
    $region106: #{bert_forward.1} parent=1 // pred_check
      _
    $region107: #{bert_forward.1} parent=1 // pred_check_branch
      %3126 = sbr.rel (0) target = $region109
    $region108: #{bert_forward.1} parent=1 // pred_region
      %s3128 = ssub.s32 32, 32
      %3129 = vsyncadd [#allocation5], %s3128
      %s3131 = sshll.u32 [#allocation4], 4
      %s3132 = int_to_ptr.vmem [resolvable:$true] %s3131
      %3134 = dma.vmem_to_hbm [thread:$0]  %s3132, 32, %s26, [#allocation5]
    $region109: #{bert_forward.1} parent=1 // pred_fallthru
      _
    // Predicated region
    $region110: #{bert_forward.1} parent=1 // pred_check
      _
    $region111: #{bert_forward.1} parent=1 // pred_check_branch
      %3136 = sbr.rel (0) target = $region113
    $region112: #{bert_forward.1} parent=1 // pred_region
      %s3138 = ssub.s32 32, 32
      %3139 = vsyncadd [#allocation5], %s3138
      %s3141 = sshll.u32 [#allocation6], 4
      %s3142 = int_to_ptr.vmem [resolvable:$true] %s3141
      %3144 = dma.vmem_to_hbm [thread:$0]  %s3142, 32, %s27, [#allocation5]
    $region113: #{bert_forward.1} parent=1 // pred_fallthru
      _
    // Predicated region
    $region114: #{bert_forward.1} parent=1 // pred_check
      _
    $region115: #{bert_forward.1} parent=1 // pred_check_branch
      %3146 = sbr.rel (0) target = $region117
    $region116: #{bert_forward.1} parent=1 // pred_region
      %3147 = dma.done [#allocation3], 256
    $region117: #{bert_forward.1} parent=1 // pred_fallthru
      _
    // Predicated region
    $region118: #{bert_forward.1} parent=1 // pred_check
      _
    $region119: #{bert_forward.1} parent=1 // pred_check_branch
      %3149 = sbr.rel (0) target = $region121
    $region120: #{bert_forward.1} parent=1 // pred_region
      %3150 = dma.done [#allocation5], 32
    $region121: #{bert_forward.1} parent=1 // pred_fallthru
      _
    // Predicated region
    $region122: #{bert_forward.1} parent=1 // pred_check
      _
    $region123: #{bert_forward.1} parent=1 // pred_check_branch
      %3152 = sbr.rel (0) target = $region125
    $region124: #{bert_forward.1} parent=1 // pred_region
      %3153 = dma.done [#allocation5], 32
    $region125: #{bert_forward.1} parent=1 // pred_fallthru
      _
    %3154 = vsyncpa [#allocation3], 1
    %3155 = vsyncpa [#allocation5], 1

</llo_original>
